<compile_context>
chip_gen: v6e
topology: v6e:2x2x1
jax: 0.10.0
libtpu: 0.0.40
codegen_flags: <defaults>
</compile_context>

<pallas_src>
import functools

import jax
import jax.numpy as jnp
from jax.experimental import pallas as pl
from jax.experimental.pallas import tpu as pltpu


# ------------------------------ Pallas kernel ------------------------------ #

def _res_block_kernel(x_ref, w1_ref, b1_ref, w2_ref, b2_ref, wd_ref, bd_ref,
                      o_ref, h1pw_ref, *, band):
    # x_ref   : (1, H+4, W+2, Ci) f32  whole zero-padded image for one batch elem
    #                                  (block is resident across the band axis).
    # w1_ref  : (3, 3*Ci, Co) bf16     conv1 taps, BN1 scale folded, (dx, cin) K dim
    # w2_ref  : (3, 3*Co, Co) bf16     conv2 taps, BN2 scale folded
    # wd_ref  : (Ci, Co)      bf16     1x1 downsample, BNd scale folded
    # b*_ref  : (1, Co)       f32      folded biases
    # o_ref   : (1, band*W, Co)        lane-dense output slab for this band
    # h1pw_ref: (band+2, W+2, Co) f32  scratch: h1 slab with 1-px zero halo
    W = x_ref.shape[2] - 2
    Ci = x_ref.shape[3]
    Co = wd_ref.shape[1]
    R1 = band + 2                      # h1 rows: band + 1-row halo each side
    RX = band + 4                      # x rows feeding those h1 rows

    b = pl.program_id(1)
    nb = pl.num_programs(1)
    y0 = pl.multiple_of(b * band, band)           # first padded-x row of this band

    xb = x_ref[0, pl.ds(y0, RX), :, :]            # (RX, W+2, Ci) f32

    def conv3x3(src, rows, w_ref):
        # 3 accumulating dots of K=3*C (one per dy tap row) instead of one 9*C
        # im2col; operands cast to bf16, accumulation stays f32.
        c = src.shape[2]
        acc = jnp.zeros((rows * W, w_ref.shape[2]), jnp.float32)
        for dy in range(3):
            taps = jnp.concatenate(
                [src[dy:dy + rows, dx:dx + W, :] for dx in range(3)], axis=-1)
            acc = acc + jnp.dot(
                taps.reshape(rows * W, 3 * c).astype(jnp.bfloat16),
                w_ref[dy], preferred_element_type=jnp.float32)
        return acc

    # --- conv1 (3x3) + folded BN1 + ReLU on band + 1-row halo ----------------
    h1 = jnp.maximum(conv3x3(xb, R1, w1_ref) + b1_ref[...], 0.0)    # (R1*W, Co)

    # --- downsample branch: 1x1 conv + folded BNd on the band rows -----------
    xc = xb[2:2 + band, 1:1 + W, :]                                  # (band, W, Ci)
    res = jnp.dot(xc.reshape(band * W, Ci).astype(jnp.bfloat16), wd_ref[...],
                  preferred_element_type=jnp.float32) + bd_ref[...]

    # --- stage h1 with a 1-px zero halo (only the halo gets zeroed) ----------
    zcol = jnp.zeros((R1, 1, Co), jnp.float32)
    h1pw_ref[:, 0:1, :] = zcol                    # image column -1
    h1pw_ref[:, W + 1:W + 2, :] = zcol            # image column W
    h1pw_ref[:, 1:W + 1, :] = h1.reshape(R1, W, Co)

    @pl.when(b == 0)                              # conv2's zero-pad row -1 is 0,
    def _():                                      # not conv1 applied to zero rows
        h1pw_ref[0:1, :, :] = jnp.zeros((1, W + 2, Co), jnp.float32)

    @pl.when(b == nb - 1)                         # conv2's zero-pad row H is 0
    def _():
        h1pw_ref[R1 - 1:R1, :, :] = jnp.zeros((1, W + 2, Co), jnp.float32)

    # --- conv2 (3x3) + folded BN2, residual add, final ReLU ------------------
    h2 = conv3x3(h1pw_ref[...], band, w2_ref) + b2_ref[...]
    out = jnp.maximum(h2 + res, 0.0)              # (band*W, Co)
    o_ref[0] = out.astype(o_ref.dtype)            # unmasked lane-dense store


# -------------------------------- wrapper ----------------------------------- #

def _round_up(x, m):
    return (x + m - 1) // m * m


def _pick_band(h):
    # TODO(synk): derive from pltpu.get_tpu_info() VMEM budget at production sizes.
    for band in (8, 4, 2, 1):
        if h % band == 0:
            return band
    return h


def _fold_bn(p, w, eps=1e-5):
    """Fold eval-mode BN (and the conv bias) into a weight scale + output bias."""
    s = p["gamma"] / jnp.sqrt(p["var"] + eps)                 # (Cout,)
    b = (p["conv_b"] - p["mean"]) * s + p["beta"]             # (Cout,)
    return w * s, b


def res_block_forward(x_nchw, params, band=None):
    """PyTorch res_block forward (downsample=False). Input/output are NCHW f32."""
    x = jnp.transpose(x_nchw, (0, 2, 3, 1))                   # NCHW -> NHWC
    N, H, W, Cin = x.shape
    Cout = params["conv1"]["w_hwio"].shape[-1]
    Ci = _round_up(Cin, 128)                                  # lane-dense channels
    Co = _round_up(Cout, 128)

    w1, b1 = _fold_bn(params["conv1"], params["conv1"]["w_hwio"])   # (3,3,Cin,Cout)
    w2, b2 = _fold_bn(params["conv2"], params["conv2"]["w_hwio"])
    wd, bd = _fold_bn(params["down"], params["down"]["w_io"])       # (Cin,Cout)

    w1 = jnp.pad(w1, ((0, 0), (0, 0), (0, Ci - Cin), (0, Co - Cout)))
    w2 = jnp.pad(w2, ((0, 0), (0, 0), (0, Co - Cout), (0, Co - Cout)))
    wd = jnp.pad(wd, ((0, Ci - Cin), (0, Co - Cout)))
    w1 = w1.reshape(3, 3 * Ci, Co).astype(jnp.bfloat16)       # (dy, dx*cin, cout)
    w2 = w2.reshape(3, 3 * Co, Co).astype(jnp.bfloat16)
    wd = wd.astype(jnp.bfloat16)
    pad_b = lambda v: jnp.pad(v, (0, Co - Cout)).reshape(1, Co).astype(jnp.float32)
    b1, b2, bd = pad_b(b1), pad_b(b2), pad_b(bd)

    band = _pick_band(H) if band is None else band
    nb = H // band
    # One wrapper-side pad builds the whole conv halo + lane padding:
    # +2 zero rows (H) and +1 zero col (W) each side, channels -> Ci.
    xp = jnp.pad(x, ((0, 0), (2, 2), (1, 1), (0, Ci - Cin)))
    Hp, Wp = H + 4, W + 2

    kernel = functools.partial(_res_block_kernel, band=band)
    out = pl.pallas_call(
        kernel,
        out_shape=jax.ShapeDtypeStruct((N, H * W, Co), jnp.float32),
        grid=(N, nb),
        in_specs=[
            pl.BlockSpec((1, Hp, Wp, Ci), lambda n, b: (n, 0, 0, 0)),   # x (padded)
            pl.BlockSpec((3, 3 * Ci, Co), lambda n, b: (0, 0, 0)),      # w1
            pl.BlockSpec((1, Co), lambda n, b: (0, 0)),                 # b1
            pl.BlockSpec((3, 3 * Co, Co), lambda n, b: (0, 0, 0)),      # w2
            pl.BlockSpec((1, Co), lambda n, b: (0, 0)),                 # b2
            pl.BlockSpec((Ci, Co), lambda n, b: (0, 0)),                # wd
            pl.BlockSpec((1, Co), lambda n, b: (0, 0)),                 # bd
        ],
        out_specs=pl.BlockSpec((1, band * W, Co), lambda n, b: (n, b, 0)),
        scratch_shapes=[pltpu.VMEM((band + 2, W + 2, Co), jnp.float32)],
        compiler_params=pltpu.CompilerParams(
            dimension_semantics=("parallel", "parallel"),
            vmem_limit_bytes=32 * 1024 * 1024),
    )(xp, w1, b1, w2, b2, wd, bd)

    out = out.reshape(N, H, W, Co)[..., :Cout]                # drop lane padding
    return jnp.transpose(out, (0, 3, 1, 2))                   # NHWC -> NCHW


# --------------------------- params & reference ----------------------------- #

def _init_conv_bn(key, cin, cout, k):
    ks = jax.random.split(key, 6)
    w = jax.random.normal(ks[0], (cout, cin, k, k), jnp.float32) * 0.1   # OIHW
    conv_b = jax.random.normal(ks[1], (cout,), jnp.float32) * 0.05
    return dict(
        w=w,
        w_hwio=jnp.transpose(w, (2, 3, 1, 0)),                # (k,k,Cin,Cout)
        w_io=jnp.transpose(w[:, :, 0, 0], (1, 0)),            # (Cin,Cout) for 1x1
        conv_b=conv_b,
        gamma=jax.random.uniform(ks[2], (cout,), jnp.float32, 0.5, 1.5),
        beta=jax.random.normal(ks[3], (cout,), jnp.float32) * 0.1,
        mean=jax.random.normal(ks[4], (cout,), jnp.float32) * 0.1,
        var=jax.random.uniform(ks[5], (cout,), jnp.float32, 0.5, 1.5),
    )


def init_params(key, cin, cout):
    k1, k2, k3 = jax.random.split(key, 3)
    return dict(
        conv1=_init_conv_bn(k1, cin, cout, 3),
        conv2=_init_conv_bn(k2, cout, cout, 3),
        down=_init_conv_bn(k3, cin, cout, 1),
    )


def ref_res_block(x, params, eps=1e-5):
    """Pure-JAX NCHW reference mirroring the PyTorch module (eval-mode BN)."""
    def conv(x, w, b, pad):
        y = jax.lax.conv_general_dilated(
            x, w, (1, 1), [(pad, pad), (pad, pad)],
            dimension_numbers=("NCHW", "OIHW", "NCHW"))
        return y + b[None, :, None, None]

    def bn(x, p):
        s = p["gamma"] / jnp.sqrt(p["var"] + eps)
        return x * s[None, :, None, None] + (p["beta"] - p["mean"] * s)[None, :, None, None]

    p1, p2, pd = params["conv1"], params["conv2"], params["down"]
    h1 = jax.nn.relu(bn(conv(x, p1["w"], p1["conv_b"], 1), p1))
    h2 = bn(conv(h1, p2["w"], p2["conv_b"], 1), p2)
    r = bn(conv(x, pd["w"], pd["conv_b"], 0), pd)
    return jax.nn.relu(h2 + r)


# ---------------------------------- main ------------------------------------ #

if __name__ == "__main__":
    key = jax.random.PRNGKey(0)
    kx, kp = jax.random.split(key)

    N, Cin, H, W = 2, 4, 16, 16
    Cout = 8

    x = jax.random.normal(kx, (N, Cin, H, W), jnp.float32)    # PyTorch NCHW input
    params = init_params(kp, Cin, Cout)

    out = jax.block_until_ready(res_block_forward(x, params))
    ref = ref_res_block(x, params)

    assert out.shape == (N, Cout, H, W), out.shape
    # bf16 MXU operands (f32 accumulation) -> looser tolerance than pure-f32.
    if not jnp.allclose(out, ref, atol=3e-2, rtol=3e-2):
        raise SystemExit("mismatch vs JAX reference")
    print("KERNEL_OK")
</pallas_src>

<mosaic_0001>
module attributes {stable_mosaic.version = 11 : i64} {
  func.func @_res_block_kernel(%arg0: i32, %arg1: i32, %arg2: memref<1x20x18x128xf32, #tpu.memory_space<vmem>>, %arg3: memref<3x384x128xbf16, #tpu.memory_space<vmem>>, %arg4: memref<1x128xf32, #tpu.memory_space<vmem>>, %arg5: memref<3x384x128xbf16, #tpu.memory_space<vmem>>, %arg6: memref<1x128xf32, #tpu.memory_space<vmem>>, %arg7: memref<128x128xbf16, #tpu.memory_space<vmem>>, %arg8: memref<1x128xf32, #tpu.memory_space<vmem>>, %arg9: memref<1x128x128xf32, #tpu.memory_space<vmem>>, %arg10: memref<10x18x128xf32, #tpu.memory_space<vmem>>) attributes {dimension_semantics = [#tpu.dimension_semantics<parallel>, #tpu.dimension_semantics<parallel>], iteration_bounds = array<i64: 2, 2>, scalar_prefetch = 0 : i64, scratch_operands = 1 : i64, tpu.core_type = #tpu.core_type<tc>, window_params = [{transform_indices = @transform_0, window_bounds = array<i64: 1, 20, 18, 128>}, {pipeline_mode = #tpu.pipeline_mode<synchronous>, transform_indices = @transform_1, window_bounds = array<i64: 3, 384, 128>}, {pipeline_mode = #tpu.pipeline_mode<synchronous>, transform_indices = @transform_2, window_bounds = array<i64: 1, 128>}, {pipeline_mode = #tpu.pipeline_mode<synchronous>, transform_indices = @transform_3, window_bounds = array<i64: 3, 384, 128>}, {pipeline_mode = #tpu.pipeline_mode<synchronous>, transform_indices = @transform_4, window_bounds = array<i64: 1, 128>}, {pipeline_mode = #tpu.pipeline_mode<synchronous>, transform_indices = @transform_5, window_bounds = array<i64: 128, 128>}, {pipeline_mode = #tpu.pipeline_mode<synchronous>, transform_indices = @transform_6, window_bounds = array<i64: 1, 128>}, {transform_indices = @transform_7, window_bounds = array<i64: 1, 128, 128>}]} {
    %c8_i32 = arith.constant 8 : i32
    %0 = arith.muli %arg1, %c8_i32 : i32
    %1 = tpu.assume_multiple %0, 8 : i32
    %c0 = arith.constant 0 : index
    %2 = arith.index_cast %1 : i32 to index
    %c0_0 = arith.constant 0 : index
    %c0_1 = arith.constant 0 : index
    %3 = vector.load %arg2[%c0, %2, %c0_0, %c0_1] : memref<1x20x18x128xf32, #tpu.memory_space<vmem>>, vector<1x12x18x128xf32>
    %4 = vector.shape_cast %3 : vector<1x12x18x128xf32> to vector<12x18x128xf32>
    %cst = arith.constant 0.000000e+00 : f32
    %5 = vector.broadcast %cst : f32 to vector<160x128xf32>
    %6 = vector.extract_strided_slice %4 {offsets = [0, 0, 0], sizes = [10, 16, 128], strides = [1, 1, 1]} : vector<12x18x128xf32> to vector<10x16x128xf32>
    %7 = vector.extract_strided_slice %4 {offsets = [0, 1, 0], sizes = [10, 16, 128], strides = [1, 1, 1]} : vector<12x18x128xf32> to vector<10x16x128xf32>
    %8 = vector.extract_strided_slice %4 {offsets = [0, 2, 0], sizes = [10, 16, 128], strides = [1, 1, 1]} : vector<12x18x128xf32> to vector<10x16x128xf32>
    %9 = tpu.concatenate %6, %7, %8 in 2 : vector<10x16x128xf32>, vector<10x16x128xf32>, vector<10x16x128xf32> -> vector<10x16x384xf32>
    %10 = vector.shape_cast %9 : vector<10x16x384xf32> to vector<160x384xf32>
    %11 = arith.truncf %10 : vector<160x384xf32> to vector<160x384xbf16>
    %c0_2 = arith.constant 0 : index
    %c0_3 = arith.constant 0 : index
    %c0_4 = arith.constant 0 : index
    %12 = vector.load %arg3[%c0_2, %c0_3, %c0_4] : memref<3x384x128xbf16, #tpu.memory_space<vmem>>, vector<1x384x128xbf16>
    %13 = vector.shape_cast %12 : vector<1x384x128xbf16> to vector<384x128xbf16>
    %cst_5 = arith.constant dense<0.000000e+00> : vector<160x128xf32>
    %14 = tpu.matmul %11, %13, %cst_5 {dimension_numbers = #tpu.dot_dimension_numbers<[1], [0], [0], [1], [0, 0, 1, 1], [], []>} : vector<160x384xbf16>, vector<384x128xbf16>, vector<160x128xf32> -> vector<160x128xf32>
    %15 = arith.addf %5, %14 : vector<160x128xf32>
    %16 = vector.extract_strided_slice %4 {offsets = [1, 0, 0], sizes = [10, 16, 128], strides = [1, 1, 1]} : vector<12x18x128xf32> to vector<10x16x128xf32>
    %17 = vector.extract_strided_slice %4 {offsets = [1, 1, 0], sizes = [10, 16, 128], strides = [1, 1, 1]} : vector<12x18x128xf32> to vector<10x16x128xf32>
    %18 = vector.extract_strided_slice %4 {offsets = [1, 2, 0], sizes = [10, 16, 128], strides = [1, 1, 1]} : vector<12x18x128xf32> to vector<10x16x128xf32>
    %19 = tpu.concatenate %16, %17, %18 in 2 : vector<10x16x128xf32>, vector<10x16x128xf32>, vector<10x16x128xf32> -> vector<10x16x384xf32>
    %20 = vector.shape_cast %19 : vector<10x16x384xf32> to vector<160x384xf32>
    %21 = arith.truncf %20 : vector<160x384xf32> to vector<160x384xbf16>
    %c1 = arith.constant 1 : index
    %c0_6 = arith.constant 0 : index
    %c0_7 = arith.constant 0 : index
    %22 = vector.load %arg3[%c1, %c0_6, %c0_7] : memref<3x384x128xbf16, #tpu.memory_space<vmem>>, vector<1x384x128xbf16>
    %23 = vector.shape_cast %22 : vector<1x384x128xbf16> to vector<384x128xbf16>
    %cst_8 = arith.constant dense<0.000000e+00> : vector<160x128xf32>
    %24 = tpu.matmul %21, %23, %cst_8 {dimension_numbers = #tpu.dot_dimension_numbers<[1], [0], [0], [1], [0, 0, 1, 1], [], []>} : vector<160x384xbf16>, vector<384x128xbf16>, vector<160x128xf32> -> vector<160x128xf32>
    %25 = arith.addf %15, %24 : vector<160x128xf32>
    %26 = vector.extract_strided_slice %4 {offsets = [2, 0, 0], sizes = [10, 16, 128], strides = [1, 1, 1]} : vector<12x18x128xf32> to vector<10x16x128xf32>
    %27 = vector.extract_strided_slice %4 {offsets = [2, 1, 0], sizes = [10, 16, 128], strides = [1, 1, 1]} : vector<12x18x128xf32> to vector<10x16x128xf32>
    %28 = vector.extract_strided_slice %4 {offsets = [2, 2, 0], sizes = [10, 16, 128], strides = [1, 1, 1]} : vector<12x18x128xf32> to vector<10x16x128xf32>
    %29 = tpu.concatenate %26, %27, %28 in 2 : vector<10x16x128xf32>, vector<10x16x128xf32>, vector<10x16x128xf32> -> vector<10x16x384xf32>
    %30 = vector.shape_cast %29 : vector<10x16x384xf32> to vector<160x384xf32>
    %31 = arith.truncf %30 : vector<160x384xf32> to vector<160x384xbf16>
    %c2 = arith.constant 2 : index
    %c0_9 = arith.constant 0 : index
    %c0_10 = arith.constant 0 : index
    %32 = vector.load %arg3[%c2, %c0_9, %c0_10] : memref<3x384x128xbf16, #tpu.memory_space<vmem>>, vector<1x384x128xbf16>
    %33 = vector.shape_cast %32 : vector<1x384x128xbf16> to vector<384x128xbf16>
    %cst_11 = arith.constant dense<0.000000e+00> : vector<160x128xf32>
    %34 = tpu.matmul %31, %33, %cst_11 {dimension_numbers = #tpu.dot_dimension_numbers<[1], [0], [0], [1], [0, 0, 1, 1], [], []>} : vector<160x384xbf16>, vector<384x128xbf16>, vector<160x128xf32> -> vector<160x128xf32>
    %35 = arith.addf %25, %34 : vector<160x128xf32>
    %c0_12 = arith.constant 0 : index
    %c0_13 = arith.constant 0 : index
    %36 = vector.load %arg4[%c0_12, %c0_13] : memref<1x128xf32, #tpu.memory_space<vmem>>, vector<1x128xf32>
    %37 = vector.broadcast %36 : vector<1x128xf32> to vector<160x128xf32>
    %38 = arith.addf %35, %37 : vector<160x128xf32>
    %cst_14 = arith.constant 0.000000e+00 : f32
    %39 = vector.broadcast %cst_14 : f32 to vector<160x128xf32>
    %40 = arith.maximumf %38, %39 : vector<160x128xf32>
    %41 = vector.extract_strided_slice %4 {offsets = [2, 1, 0], sizes = [8, 16, 128], strides = [1, 1, 1]} : vector<12x18x128xf32> to vector<8x16x128xf32>
    %42 = vector.shape_cast %41 : vector<8x16x128xf32> to vector<128x128xf32>
    %43 = arith.truncf %42 : vector<128x128xf32> to vector<128x128xbf16>
    %c0_15 = arith.constant 0 : index
    %c0_16 = arith.constant 0 : index
    %44 = vector.load %arg7[%c0_15, %c0_16] : memref<128x128xbf16, #tpu.memory_space<vmem>>, vector<128x128xbf16>
    %cst_17 = arith.constant dense<0.000000e+00> : vector<128x128xf32>
    %45 = tpu.matmul %43, %44, %cst_17 {dimension_numbers = #tpu.dot_dimension_numbers<[1], [0], [0], [1], [0, 0, 1, 1], [], []>} : vector<128x128xbf16>, vector<128x128xbf16>, vector<128x128xf32> -> vector<128x128xf32>
    %c0_18 = arith.constant 0 : index
    %c0_19 = arith.constant 0 : index
    %46 = vector.load %arg8[%c0_18, %c0_19] : memref<1x128xf32, #tpu.memory_space<vmem>>, vector<1x128xf32>
    %47 = vector.broadcast %46 : vector<1x128xf32> to vector<128x128xf32>
    %48 = arith.addf %45, %47 : vector<128x128xf32>
    %cst_20 = arith.constant 0.000000e+00 : f32
    %49 = vector.broadcast %cst_20 : f32 to vector<10x1x128xf32>
    %c0_21 = arith.constant 0 : index
    %c0_22 = arith.constant 0 : index
    %c0_23 = arith.constant 0 : index
    %50 = vector.load %arg10[%c0_21, %c0_22, %c0_23] : memref<10x18x128xf32, #tpu.memory_space<vmem>>, vector<10x1x128xf32>
    tpu.vector_store %arg10[%c0_21, %c0_22, %c0_23], %49 {strides = array<i32>} : memref<10x18x128xf32, #tpu.memory_space<vmem>>, vector<10x1x128xf32>,
    %c0_24 = arith.constant 0 : index
    %c17 = arith.constant 17 : index
    %c0_25 = arith.constant 0 : index
    %51 = vector.load %arg10[%c0_24, %c17, %c0_25] : memref<10x18x128xf32, #tpu.memory_space<vmem>>, vector<10x1x128xf32>
    tpu.vector_store %arg10[%c0_24, %c17, %c0_25], %49 {strides = array<i32>} : memref<10x18x128xf32, #tpu.memory_space<vmem>>, vector<10x1x128xf32>,
    %52 = vector.shape_cast %40 : vector<160x128xf32> to vector<10x16x128xf32>
    %c0_26 = arith.constant 0 : index
    %c1_27 = arith.constant 1 : index
    %c0_28 = arith.constant 0 : index
    %53 = vector.load %arg10[%c0_26, %c1_27, %c0_28] : memref<10x18x128xf32, #tpu.memory_space<vmem>>, vector<10x16x128xf32>
    tpu.vector_store %arg10[%c0_26, %c1_27, %c0_28], %52 {strides = array<i32>} : memref<10x18x128xf32, #tpu.memory_space<vmem>>, vector<10x16x128xf32>,
    %c0_i32 = arith.constant 0 : i32
    %54 = arith.cmpi eq, %arg1, %c0_i32 : i32
    %55 = arith.extui %54 : i1 to i32
    %c0_i32_29 = arith.constant 0 : i32
    %56 = arith.cmpi ne, %55, %c0_i32_29 : i32
    scf.if %56 {
      %cst_53 = arith.constant 0.000000e+00 : f32
      %101 = vector.broadcast %cst_53 : f32 to vector<1x18x128xf32>
      %c0_54 = arith.constant 0 : index
      %c0_55 = arith.constant 0 : index
      %c0_56 = arith.constant 0 : index
      %102 = vector.load %arg10[%c0_54, %c0_55, %c0_56] : memref<10x18x128xf32, #tpu.memory_space<vmem>>, vector<1x18x128xf32>
      tpu.vector_store %arg10[%c0_54, %c0_55, %c0_56], %101 {strides = array<i32>} : memref<10x18x128xf32, #tpu.memory_space<vmem>>, vector<1x18x128xf32>,
    } else {
    }
    %c1_i32 = arith.constant 1 : i32
    %57 = arith.cmpi eq, %arg1, %c1_i32 : i32
    %58 = arith.extui %57 : i1 to i32
    %c0_i32_30 = arith.constant 0 : i32
    %59 = arith.cmpi ne, %58, %c0_i32_30 : i32
    scf.if %59 {
      %cst_53 = arith.constant 0.000000e+00 : f32
      %101 = vector.broadcast %cst_53 : f32 to vector<1x18x128xf32>
      %c9 = arith.constant 9 : index
      %c0_54 = arith.constant 0 : index
      %c0_55 = arith.constant 0 : index
      %102 = vector.load %arg10[%c9, %c0_54, %c0_55] : memref<10x18x128xf32, #tpu.memory_space<vmem>>, vector<1x18x128xf32>
      tpu.vector_store %arg10[%c9, %c0_54, %c0_55], %101 {strides = array<i32>} : memref<10x18x128xf32, #tpu.memory_space<vmem>>, vector<1x18x128xf32>,
    } else {
    }
    %c0_31 = arith.constant 0 : index
    %c0_32 = arith.constant 0 : index
    %c0_33 = arith.constant 0 : index
    %60 = vector.load %arg10[%c0_31, %c0_32, %c0_33] : memref<10x18x128xf32, #tpu.memory_space<vmem>>, vector<10x18x128xf32>
    %cst_34 = arith.constant 0.000000e+00 : f32
    %61 = vector.broadcast %cst_34 : f32 to vector<128x128xf32>
    %62 = vector.extract_strided_slice %60 {offsets = [0, 0, 0], sizes = [8, 16, 128], strides = [1, 1, 1]} : vector<10x18x128xf32> to vector<8x16x128xf32>
    %63 = vector.extract_strided_slice %60 {offsets = [0, 1, 0], sizes = [8, 16, 128], strides = [1, 1, 1]} : vector<10x18x128xf32> to vector<8x16x128xf32>
    %64 = vector.extract_strided_slice %60 {offsets = [0, 2, 0], sizes = [8, 16, 128], strides = [1, 1, 1]} : vector<10x18x128xf32> to vector<8x16x128xf32>
    %65 = tpu.concatenate %62, %63, %64 in 2 : vector<8x16x128xf32>, vector<8x16x128xf32>, vector<8x16x128xf32> -> vector<8x16x384xf32>
    %66 = vector.shape_cast %65 : vector<8x16x384xf32> to vector<128x384xf32>
    %67 = arith.truncf %66 : vector<128x384xf32> to vector<128x384xbf16>
    %c0_35 = arith.constant 0 : index
    %c0_36 = arith.constant 0 : index
    %c0_37 = arith.constant 0 : index
    %68 = vector.load %arg5[%c0_35, %c0_36, %c0_37] : memref<3x384x128xbf16, #tpu.memory_space<vmem>>, vector<1x384x128xbf16>
    %69 = vector.shape_cast %68 : vector<1x384x128xbf16> to vector<384x128xbf16>
    %cst_38 = arith.constant dense<0.000000e+00> : vector<128x128xf32>
    %70 = tpu.matmul %67, %69, %cst_38 {dimension_numbers = #tpu.dot_dimension_numbers<[1], [0], [0], [1], [0, 0, 1, 1], [], []>} : vector<128x384xbf16>, vector<384x128xbf16>, vector<128x128xf32> -> vector<128x128xf32>
    %71 = arith.addf %61, %70 : vector<128x128xf32>
    %72 = vector.extract_strided_slice %60 {offsets = [1, 0, 0], sizes = [8, 16, 128], strides = [1, 1, 1]} : vector<10x18x128xf32> to vector<8x16x128xf32>
    %73 = vector.extract_strided_slice %60 {offsets = [1, 1, 0], sizes = [8, 16, 128], strides = [1, 1, 1]} : vector<10x18x128xf32> to vector<8x16x128xf32>
    %74 = vector.extract_strided_slice %60 {offsets = [1, 2, 0], sizes = [8, 16, 128], strides = [1, 1, 1]} : vector<10x18x128xf32> to vector<8x16x128xf32>
    %75 = tpu.concatenate %72, %73, %74 in 2 : vector<8x16x128xf32>, vector<8x16x128xf32>, vector<8x16x128xf32> -> vector<8x16x384xf32>
    %76 = vector.shape_cast %75 : vector<8x16x384xf32> to vector<128x384xf32>
    %77 = arith.truncf %76 : vector<128x384xf32> to vector<128x384xbf16>
    %c1_39 = arith.constant 1 : index
    %c0_40 = arith.constant 0 : index
    %c0_41 = arith.constant 0 : index
    %78 = vector.load %arg5[%c1_39, %c0_40, %c0_41] : memref<3x384x128xbf16, #tpu.memory_space<vmem>>, vector<1x384x128xbf16>
    %79 = vector.shape_cast %78 : vector<1x384x128xbf16> to vector<384x128xbf16>
    %cst_42 = arith.constant dense<0.000000e+00> : vector<128x128xf32>
    %80 = tpu.matmul %77, %79, %cst_42 {dimension_numbers = #tpu.dot_dimension_numbers<[1], [0], [0], [1], [0, 0, 1, 1], [], []>} : vector<128x384xbf16>, vector<384x128xbf16>, vector<128x128xf32> -> vector<128x128xf32>
    %81 = arith.addf %71, %80 : vector<128x128xf32>
    %82 = vector.extract_strided_slice %60 {offsets = [2, 0, 0], sizes = [8, 16, 128], strides = [1, 1, 1]} : vector<10x18x128xf32> to vector<8x16x128xf32>
    %83 = vector.extract_strided_slice %60 {offsets = [2, 1, 0], sizes = [8, 16, 128], strides = [1, 1, 1]} : vector<10x18x128xf32> to vector<8x16x128xf32>
    %84 = vector.extract_strided_slice %60 {offsets = [2, 2, 0], sizes = [8, 16, 128], strides = [1, 1, 1]} : vector<10x18x128xf32> to vector<8x16x128xf32>
    %85 = tpu.concatenate %82, %83, %84 in 2 : vector<8x16x128xf32>, vector<8x16x128xf32>, vector<8x16x128xf32> -> vector<8x16x384xf32>
    %86 = vector.shape_cast %85 : vector<8x16x384xf32> to vector<128x384xf32>
    %87 = arith.truncf %86 : vector<128x384xf32> to vector<128x384xbf16>
    %c2_43 = arith.constant 2 : index
    %c0_44 = arith.constant 0 : index
    %c0_45 = arith.constant 0 : index
    %88 = vector.load %arg5[%c2_43, %c0_44, %c0_45] : memref<3x384x128xbf16, #tpu.memory_space<vmem>>, vector<1x384x128xbf16>
    %89 = vector.shape_cast %88 : vector<1x384x128xbf16> to vector<384x128xbf16>
    %cst_46 = arith.constant dense<0.000000e+00> : vector<128x128xf32>
    %90 = tpu.matmul %87, %89, %cst_46 {dimension_numbers = #tpu.dot_dimension_numbers<[1], [0], [0], [1], [0, 0, 1, 1], [], []>} : vector<128x384xbf16>, vector<384x128xbf16>, vector<128x128xf32> -> vector<128x128xf32>
    %91 = arith.addf %81, %90 : vector<128x128xf32>
    %c0_47 = arith.constant 0 : index
    %c0_48 = arith.constant 0 : index
    %92 = vector.load %arg6[%c0_47, %c0_48] : memref<1x128xf32, #tpu.memory_space<vmem>>, vector<1x128xf32>
    %93 = vector.broadcast %92 : vector<1x128xf32> to vector<128x128xf32>
    %94 = arith.addf %91, %93 : vector<128x128xf32>
    %95 = arith.addf %94, %48 : vector<128x128xf32>
    %cst_49 = arith.constant 0.000000e+00 : f32
    %96 = vector.broadcast %cst_49 : f32 to vector<128x128xf32>
    %97 = arith.maximumf %95, %96 : vector<128x128xf32>
    %c0_50 = arith.constant 0 : index
    %c0_51 = arith.constant 0 : index
    %c0_52 = arith.constant 0 : index
    %98 = vector.load %arg9[%c0_50, %c0_51, %c0_52] : memref<1x128x128xf32, #tpu.memory_space<vmem>>, vector<1x128x128xf32>
    %99 = vector.shape_cast %98 : vector<1x128x128xf32> to vector<128x128xf32>
    %100 = vector.shape_cast %97 : vector<128x128xf32> to vector<1x128x128xf32>
    tpu.vector_store %arg9[%c0_50, %c0_51, %c0_52], %100 {strides = array<i32>} : memref<1x128x128xf32, #tpu.memory_space<vmem>>, vector<1x128x128xf32>,
    return
  }
  func.func @transform_0(%arg0: i32, %arg1: i32) -> (i32, i32, i32, i32) {
    %c0_i32 = arith.constant 0 : i32
    %c0_i32_0 = arith.constant 0 : i32
    %c0_i32_1 = arith.constant 0 : i32
    %c0_i32_2 = arith.constant 0 : i32
    return %arg0, %c0_i32, %c0_i32_0, %c0_i32_1 : i32, i32, i32, i32
  }
  func.func @transform_1(%arg0: i32, %arg1: i32) -> (i32, i32, i32) {
    %c0_i32 = arith.constant 0 : i32
    %c0_i32_0 = arith.constant 0 : i32
    %c0_i32_1 = arith.constant 0 : i32
    %c0_i32_2 = arith.constant 0 : i32
    return %c0_i32, %c0_i32_0, %c0_i32_1 : i32, i32, i32
  }
  func.func @transform_2(%arg0: i32, %arg1: i32) -> (i32, i32) {
    %c0_i32 = arith.constant 0 : i32
    %c0_i32_0 = arith.constant 0 : i32
    %c0_i32_1 = arith.constant 0 : i32
    return %c0_i32, %c0_i32_0 : i32, i32
  }
  func.func @transform_3(%arg0: i32, %arg1: i32) -> (i32, i32, i32) {
    %c0_i32 = arith.constant 0 : i32
    %c0_i32_0 = arith.constant 0 : i32
    %c0_i32_1 = arith.constant 0 : i32
    %c0_i32_2 = arith.constant 0 : i32
    return %c0_i32, %c0_i32_0, %c0_i32_1 : i32, i32, i32
  }
  func.func @transform_4(%arg0: i32, %arg1: i32) -> (i32, i32) {
    %c0_i32 = arith.constant 0 : i32
    %c0_i32_0 = arith.constant 0 : i32
    %c0_i32_1 = arith.constant 0 : i32
    return %c0_i32, %c0_i32_0 : i32, i32
  }
  func.func @transform_5(%arg0: i32, %arg1: i32) -> (i32, i32) {
    %c0_i32 = arith.constant 0 : i32
    %c0_i32_0 = arith.constant 0 : i32
    %c0_i32_1 = arith.constant 0 : i32
    return %c0_i32, %c0_i32_0 : i32, i32
  }
  func.func @transform_6(%arg0: i32, %arg1: i32) -> (i32, i32) {
    %c0_i32 = arith.constant 0 : i32
    %c0_i32_0 = arith.constant 0 : i32
    %c0_i32_1 = arith.constant 0 : i32
    return %c0_i32, %c0_i32_0 : i32, i32
  }
  func.func @transform_7(%arg0: i32, %arg1: i32) -> (i32, i32, i32) {
    %c0_i32 = arith.constant 0 : i32
    %c0_i32_0 = arith.constant 0 : i32
    return %arg0, %arg1, %c0_i32 : i32, i32, i32
  }
}

</mosaic_0001>

<llo_original>
// kernel: tpu_custom_call.1
$region0: #{tpu_custom_call.1}
  #allocation0 [shape = 'u32[]', space=smem, size = 0x4, offset = 0x4, fixed_abs, tag = 'smem constant byte address 0x4 - core index']
  #allocation1 [shape = 'u32[144,128]{1,0:T(1,128)}', space=vmem, size = 0x12000, scoped, tag = 'internal scratch']
  #allocation2 [shape = 'f32[10,18,128]{2,1,0:T(8,128)}', space=vmem, size = 0x1e000, scoped, tag = 'scratch operand']
  %s0 = inlined_call_operand.vmem [shape: f32[2,20,18,128], index: 0, kind: input, shape index: {}]
  %s1 = inlined_call_operand.vmem [shape: bf16[3,384,128], index: 1, kind: input, shape index: {}]
  %s2 = inlined_call_operand.vmem [shape: f32[1,128], index: 2, kind: input, shape index: {}]
  %s3 = inlined_call_operand.vmem [shape: bf16[3,384,128], index: 3, kind: input, shape index: {}]
  %s4 = inlined_call_operand.vmem [shape: f32[1,128], index: 4, kind: input, shape index: {}]
  %s5 = inlined_call_operand.vmem [shape: bf16[128,128], index: 5, kind: input, shape index: {}]
  %s6 = inlined_call_operand.vmem [shape: f32[1,128], index: 6, kind: input, shape index: {}]
  %s7 = inlined_call_operand.hbm [shape: f32[2,256,128], index: 7, kind: output, shape index: {}]
  %s8 = sld [smem:[#allocation0]]
  $region69: #{tpu_custom_call.1} parent=0
    _
  %s10 = ssub.s32 1, %s8
  %s11 = scalar_select 0, %s10, %s8
  $region1: #{tpu_custom_call.1} parent=0
    #allocation3 [shape = 'u8[131072]{0}', space=vmem, size = 0x20000, scoped, tag = 'output window, operand 0']
    #allocation4 [shape = 's32[2]{0}', space=sflag, size = 0x8, scoped, tag = 'scoped memory for tpu_custom_call.1']
    %12 = vsyncpa [#allocation4], 0
    %s13 = scalar_lea.sflag [#allocation4], 1
    %14 = vsyncpa %s13, 0
    loop: start=0, step=1, limit=6
    $region2: #{tpu_custom_call.1} parent=1 // loop_pre_header
      _
    $region3: #{tpu_custom_call.1} parent=1 // loop_header
      %s16 = sphi 0, %s20
      %p17 = scmp.ge.s32.totalorder %s16, 6
      %s23 = sphi 0, %s35
      %s24 = sphi 0, %s31
      %s25 = sphi 0, %s23
      %s26 = sphi 0, %s24
      %s27 = sphi 0, %s25
      %s28 = sphi 0, %s26
      %s38 = sphi 0, %s40
      %s41 = sphi 0, %s38
      %s42 = sphi 0, %s41
      %s58 = sphi 0, %s42
      %s62 = sphi 0, %s62
      %s64 = sphi 0, %s62
      %s65 = sphi 0, %s64
      %s79 = sphi 0, %s65
      %s83 = sphi 0, %s83
      %s85 = sphi 0, %s83
      %s86 = sphi 0, %s85
      %s100 = sphi 0, %s86
      %s104 = sphi 0, %s104
      %s106 = sphi 0, %s104
      %s107 = sphi 0, %s106
      %s121 = sphi 0, %s107
      %s125 = sphi 0, %s125
      %s127 = sphi 0, %s125
      %s128 = sphi 0, %s127
      %s142 = sphi 0, %s128
      %s146 = sphi 0, %s146
      %s148 = sphi 0, %s146
      %s149 = sphi 0, %s148
      %s163 = sphi 0, %s149
      %s167 = sphi 0, %s167
      %s169 = sphi 0, %s167
      %s170 = sphi 0, %s169
      %s184 = sphi 0, %s170
      %s192 = sphi 0, %s194
      %s195 = sphi 0, %s192
      %s196 = sphi 0, %s195
      %s212 = sphi 0, %s196
    $region4: #{tpu_custom_call.1} parent=1 // loop_header_branch
      %19 = sbr.rel (%p17) target = $region8
    $region5: #{tpu_custom_call.1} parent=1 // loop_body
      %s21 = ssub.s32 %s16, 1
      %s22 = ssub.s32 %s16, 2
      %s29 = sadd.s32 1, %s24
      %p30 = scmp.ge.s32.totalorder %s29, 2
      %s31 = scalar_select %p30, 0, %s29
      %s32 = sadd.s32 1, %s23
      %s33 = scalar_select %p30, %s32, %s23
      %p34 = scmp.ge.s32.totalorder %s33, 2
      %s35 = scalar_select %p34, 0, %s33
      %s36 = ssub.s32 %s23, %s35
      %p37 = scmp.eq.s32.totalorder %s36, 0
      %s39 = sadd.s32 %s38, 1
      %s40 = scalar_select %p37, %s38, %s39
      %p43 = pneg %p37
      %p44 = scmp.eq.s32.totalorder %s16, 3
      %p45 = por %p43, %p44
      %p46 = scmp.ne.s32.totalorder %s38, %s41
      %p47 = scmp.eq.s32.totalorder %s16, 0
      %p48 = por %p46, %p47
      %p49 = scmp.ne.s32.totalorder %s38, %s41
      %p50 = scmp.eq.s32.totalorder %s21, 3
      %p51 = por %p49, %p50
      %p52 = scmp.ne.s32.totalorder %s41, %s42
      %p53 = scmp.eq.s32.totalorder %s21, 0
      %p54 = por %p52, %p53
      %p55 = scmp.ne.s32.totalorder %s41, %s42
      %p56 = scmp.eq.s32.totalorder %s22, 3
      %p57 = por %p55, %p56
      %p59 = scmp.ne.s32.totalorder %s42, %s58
      %p60 = scmp.eq.s32.totalorder %s22, 0
      %p61 = por %p59, %p60
      %s63 = sadd.s32 %s62, 1
      %p66 = scmp.eq.s32.totalorder %s16, 3
      %p67 = scmp.ne.s32.totalorder %s62, %s64
      %p68 = scmp.eq.s32.totalorder %s16, 0
      %p69 = por %p67, %p68
      %p70 = scmp.ne.s32.totalorder %s62, %s64
      %p71 = scmp.eq.s32.totalorder %s21, 3
      %p72 = por %p70, %p71
      %p73 = scmp.ne.s32.totalorder %s64, %s65
      %p74 = scmp.eq.s32.totalorder %s21, 0
      %p75 = por %p73, %p74
      %p76 = scmp.ne.s32.totalorder %s64, %s65
      %p77 = scmp.eq.s32.totalorder %s22, 3
      %p78 = por %p76, %p77
      %p80 = scmp.ne.s32.totalorder %s65, %s79
      %p81 = scmp.eq.s32.totalorder %s22, 0
      %p82 = por %p80, %p81
      %s84 = sadd.s32 %s83, 1
      %p87 = scmp.eq.s32.totalorder %s16, 3
      %p88 = scmp.ne.s32.totalorder %s83, %s85
      %p89 = scmp.eq.s32.totalorder %s16, 0
      %p90 = por %p88, %p89
      %p91 = scmp.ne.s32.totalorder %s83, %s85
      %p92 = scmp.eq.s32.totalorder %s21, 3
      %p93 = por %p91, %p92
      %p94 = scmp.ne.s32.totalorder %s85, %s86
      %p95 = scmp.eq.s32.totalorder %s21, 0
      %p96 = por %p94, %p95
      %p97 = scmp.ne.s32.totalorder %s85, %s86
      %p98 = scmp.eq.s32.totalorder %s22, 3
      %p99 = por %p97, %p98
      %p101 = scmp.ne.s32.totalorder %s86, %s100
      %p102 = scmp.eq.s32.totalorder %s22, 0
      %p103 = por %p101, %p102
      %s105 = sadd.s32 %s104, 1
      %p108 = scmp.eq.s32.totalorder %s16, 3
      %p109 = scmp.ne.s32.totalorder %s104, %s106
      %p110 = scmp.eq.s32.totalorder %s16, 0
      %p111 = por %p109, %p110
      %p112 = scmp.ne.s32.totalorder %s104, %s106
      %p113 = scmp.eq.s32.totalorder %s21, 3
      %p114 = por %p112, %p113
      %p115 = scmp.ne.s32.totalorder %s106, %s107
      %p116 = scmp.eq.s32.totalorder %s21, 0
      %p117 = por %p115, %p116
      %p118 = scmp.ne.s32.totalorder %s106, %s107
      %p119 = scmp.eq.s32.totalorder %s22, 3
      %p120 = por %p118, %p119
      %p122 = scmp.ne.s32.totalorder %s107, %s121
      %p123 = scmp.eq.s32.totalorder %s22, 0
      %p124 = por %p122, %p123
      %s126 = sadd.s32 %s125, 1
      %p129 = scmp.eq.s32.totalorder %s16, 3
      %p130 = scmp.ne.s32.totalorder %s125, %s127
      %p131 = scmp.eq.s32.totalorder %s16, 0
      %p132 = por %p130, %p131
      %p133 = scmp.ne.s32.totalorder %s125, %s127
      %p134 = scmp.eq.s32.totalorder %s21, 3
      %p135 = por %p133, %p134
      %p136 = scmp.ne.s32.totalorder %s127, %s128
      %p137 = scmp.eq.s32.totalorder %s21, 0
      %p138 = por %p136, %p137
      %p139 = scmp.ne.s32.totalorder %s127, %s128
      %p140 = scmp.eq.s32.totalorder %s22, 3
      %p141 = por %p139, %p140
      %p143 = scmp.ne.s32.totalorder %s128, %s142
      %p144 = scmp.eq.s32.totalorder %s22, 0
      %p145 = por %p143, %p144
      %s147 = sadd.s32 %s146, 1
      %p150 = scmp.eq.s32.totalorder %s16, 3
      %p151 = scmp.ne.s32.totalorder %s146, %s148
      %p152 = scmp.eq.s32.totalorder %s16, 0
      %p153 = por %p151, %p152
      %p154 = scmp.ne.s32.totalorder %s146, %s148
      %p155 = scmp.eq.s32.totalorder %s21, 3
      %p156 = por %p154, %p155
      %p157 = scmp.ne.s32.totalorder %s148, %s149
      %p158 = scmp.eq.s32.totalorder %s21, 0
      %p159 = por %p157, %p158
      %p160 = scmp.ne.s32.totalorder %s148, %s149
      %p161 = scmp.eq.s32.totalorder %s22, 3
      %p162 = por %p160, %p161
      %p164 = scmp.ne.s32.totalorder %s149, %s163
      %p165 = scmp.eq.s32.totalorder %s22, 0
      %p166 = por %p164, %p165
      %s168 = sadd.s32 %s167, 1
      %p171 = scmp.eq.s32.totalorder %s16, 3
      %p172 = scmp.ne.s32.totalorder %s167, %s169
      %p173 = scmp.eq.s32.totalorder %s16, 0
      %p174 = por %p172, %p173
      %p175 = scmp.ne.s32.totalorder %s167, %s169
      %p176 = scmp.eq.s32.totalorder %s21, 3
      %p177 = por %p175, %p176
      %p178 = scmp.ne.s32.totalorder %s169, %s170
      %p179 = scmp.eq.s32.totalorder %s21, 0
      %p180 = por %p178, %p179
      %p181 = scmp.ne.s32.totalorder %s169, %s170
      %p182 = scmp.eq.s32.totalorder %s22, 3
      %p183 = por %p181, %p182
      %p185 = scmp.ne.s32.totalorder %s170, %s184
      %p186 = scmp.eq.s32.totalorder %s22, 0
      %p187 = por %p185, %p186
      %s188 = ssub.s32 %s23, %s35
      %s189 = ssub.s32 %s24, %s31
      %s190 = sor.u32 %s188, %s189
      %p191 = scmp.eq.s32.totalorder %s190, 0
      %s193 = sadd.s32 %s192, 1
      %s194 = scalar_select %p191, %s192, %s193
      %p197 = pneg %p191
      %p198 = scmp.eq.s32.totalorder %s16, 3
      %p199 = por %p197, %p198
      %p200 = scmp.ne.s32.totalorder %s192, %s195
      %p201 = scmp.eq.s32.totalorder %s16, 0
      %p202 = por %p200, %p201
      %p203 = scmp.ne.s32.totalorder %s192, %s195
      %p204 = scmp.eq.s32.totalorder %s21, 3
      %p205 = por %p203, %p204
      %p206 = scmp.ne.s32.totalorder %s195, %s196
      %p207 = scmp.eq.s32.totalorder %s21, 0
      %p208 = por %p206, %p207
      %p209 = scmp.ne.s32.totalorder %s195, %s196
      %p210 = scmp.eq.s32.totalorder %s22, 3
      %p211 = por %p209, %p210
      %p213 = scmp.ne.s32.totalorder %s196, %s212
      %p214 = scmp.eq.s32.totalorder %s22, 0
      %p215 = por %p213, %p214
      %p216 = scmp.le.s32.totalorder 1, %s16
      %p217 = scmp.lt.s32.totalorder %s16, 5
      %p218 = pnand %p216, %p217
      %p219 = pneg %p218
      // Predicated region
      $region9: #{tpu_custom_call.1} parent=5 // pred_check
        _
      $region10: #{tpu_custom_call.1} parent=5 // pred_check_branch
        %221 = sbr.rel (%p218) target = $region12
      $region11: #{tpu_custom_call.1} parent=5 // pred_region
        %s222 = ssub.s32 %s16, 1
        // Predicated region
        $region13: #{tpu_custom_call.1} parent=11 // pred_check
          %p223 = pneg %p75
        $region14: #{tpu_custom_call.1} parent=11 // pred_check_branch
          %225 = sbr.rel (%p223) target = $region16
        $region15: #{tpu_custom_call.1} parent=11 // pred_region
          _
        $region16: #{tpu_custom_call.1} parent=11 // pred_fallthru
          _
        // Predicated region
        $region17: #{tpu_custom_call.1} parent=11 // pred_check
          %p226 = pneg %p96
        $region18: #{tpu_custom_call.1} parent=11 // pred_check_branch
          %228 = sbr.rel (%p226) target = $region20
        $region19: #{tpu_custom_call.1} parent=11 // pred_region
          _
        $region20: #{tpu_custom_call.1} parent=11 // pred_fallthru
          _
        // Predicated region
        $region21: #{tpu_custom_call.1} parent=11 // pred_check
          %p229 = pneg %p117
        $region22: #{tpu_custom_call.1} parent=11 // pred_check_branch
          %231 = sbr.rel (%p229) target = $region24
        $region23: #{tpu_custom_call.1} parent=11 // pred_region
          _
        $region24: #{tpu_custom_call.1} parent=11 // pred_fallthru
          _
        // Predicated region
        $region25: #{tpu_custom_call.1} parent=11 // pred_check
          %p232 = pneg %p138
        $region26: #{tpu_custom_call.1} parent=11 // pred_check_branch
          %234 = sbr.rel (%p232) target = $region28
        $region27: #{tpu_custom_call.1} parent=11 // pred_region
          _
        $region28: #{tpu_custom_call.1} parent=11 // pred_fallthru
          _
        // Predicated region
        $region29: #{tpu_custom_call.1} parent=11 // pred_check
          %p235 = pneg %p159
        $region30: #{tpu_custom_call.1} parent=11 // pred_check_branch
          %237 = sbr.rel (%p235) target = $region32
        $region31: #{tpu_custom_call.1} parent=11 // pred_region
          _
        $region32: #{tpu_custom_call.1} parent=11 // pred_fallthru
          _
        // Predicated region
        $region33: #{tpu_custom_call.1} parent=11 // pred_check
          %p238 = pneg %p180
        $region34: #{tpu_custom_call.1} parent=11 // pred_check_branch
          %240 = sbr.rel (%p238) target = $region36
        $region35: #{tpu_custom_call.1} parent=11 // pred_region
          _
        $region36: #{tpu_custom_call.1} parent=11 // pred_fallthru
          _
      $region12: #{tpu_custom_call.1} parent=5 // pred_fallthru
        _
      %p241 = scmp.lt.s32.totalorder %s16, 4
      // Predicated region
      $region37: #{tpu_custom_call.1} parent=5 // pred_check
        %p242 = pneg %p241
      $region38: #{tpu_custom_call.1} parent=5 // pred_check_branch
        %244 = sbr.rel (%p242) target = $region40
      $region39: #{tpu_custom_call.1} parent=5 // pred_region
        // Predicated region
        $region41: #{tpu_custom_call.1} parent=39 // pred_check
          %p245 = pneg %p48
        $region42: #{tpu_custom_call.1} parent=39 // pred_check_branch
          %247 = sbr.rel (%p245) target = $region44
        $region43: #{tpu_custom_call.1} parent=39 // pred_region
          %p248 = scmp.lt.s32.totalorder %s23, 1
          %s249 = scalar_select %p248, %s23, 1
          %s250 = smul.addr %s249, 60
          %s251 = smul.addr %s250, 8
          %s252 = scalar_lea.vmem %s0, %s251
        $region44: #{tpu_custom_call.1} parent=39 // pred_fallthru
          _
      $region40: #{tpu_custom_call.1} parent=5 // pred_fallthru
        _
      %p253 = scmp.le.s32.totalorder 1, %s16
      %p254 = scmp.lt.s32.totalorder %s16, 5
      %p255 = pnand %p253, %p254
      %p256 = pneg %p255
      // Predicated region
      $region45: #{tpu_custom_call.1} parent=5 // pred_check
        _
      $region46: #{tpu_custom_call.1} parent=5 // pred_check_branch
        %258 = sbr.rel (%p255) target = $region48
      $region47: #{tpu_custom_call.1} parent=5 // pred_region
        %s259 = ssub.s32 %s16, 1
        %p260 = scmp.lt.s32.totalorder %s25, 1
        %s261 = scalar_select %p260, %s25, 1
        %s262 = smul.addr %s261, 60
        %s263 = smul.addr %s262, 8
        %s264 = scalar_lea.vmem %s0, %s263
        %p265 = pneg %p54
        %p266 = pneg %p51
        %p267 = pneg %p75
        %p268 = pneg %p72
        %p269 = pneg %p96
        %p270 = pneg %p93
        %p271 = pneg %p117
        %p272 = pneg %p114
        %p273 = pneg %p138
        %p274 = pneg %p135
        %p275 = pneg %p159
        %p276 = pneg %p156
        %p277 = pneg %p180
        %p278 = pneg %p177
        %p279 = pneg %p208
        %p280 = pneg %p205
        %s281 = sand.u32 %s195, 1
        %s282 = scalar_lea.sflag [#allocation4], %s281
        %s283 = sand.u32 %s195, 1
        %s284 = smul.addr %s283, 128
        %s285 = scalar_lea.vmem [#allocation3], %s284
        %p286 = scmp.lt.s32.totalorder %s25, 1
        %s287 = scalar_select %p286, %s25, 1
        %s288 = smul.addr %s287, 60
        %s289 = smul.addr %s288, 8
        %s290 = scalar_lea.vmem %s0, %s289
        %s291 = smul.u32 16, %s26
        %s293 = smul.u32 %s26, 8
        %s294 = smul.u32 %s293, 24
        %s295 = scalar_lea.vmem %s290, %s294
        %v296 = vld [vmem:[%s295] sm:$0xff]
        %v297 = vld [vmem:[%s295 + $0x8] sm:$0xff]
        %v298 = vld [vmem:[%s295 + $0x10] sm:$0x3]
        %v299 = vld [vmem:[%s295 + $0x18] sm:$0xff]
        %v300 = vld [vmem:[%s295 + $0x20] sm:$0xff]
        %v301 = vld [vmem:[%s295 + $0x28] sm:$0x3]
        %v302 = vld [vmem:[%s295 + $0x30] sm:$0xff]
        %v303 = vld [vmem:[%s295 + $0x38] sm:$0xff]
        %v304 = vld [vmem:[%s295 + $0x40] sm:$0x3]
        %v305 = vld [vmem:[%s295 + $0x48] sm:$0xff]
        %v306 = vld [vmem:[%s295 + $0x50] sm:$0xff]
        %v307 = vld [vmem:[%s295 + $0x58] sm:$0x3]
        %v308 = vld [vmem:[%s295 + $0x60] sm:$0xff]
        %v309 = vld [vmem:[%s295 + $0x68] sm:$0xff]
        %v310 = vld [vmem:[%s295 + $0x70] sm:$0x3]
        %v311 = vld [vmem:[%s295 + $0x78] sm:$0xff]
        %v312 = vld [vmem:[%s295 + $0x80] sm:$0xff]
        %v313 = vld [vmem:[%s295 + $0x88] sm:$0x3]
        %v314 = vld [vmem:[%s295 + $0x90] sm:$0xff]
        %v315 = vld [vmem:[%s295 + $0x98] sm:$0xff]
        %v316 = vld [vmem:[%s295 + $0xa0] sm:$0x3]
        %v317 = vld [vmem:[%s295 + $0xa8] sm:$0xff]
        %v318 = vld [vmem:[%s295 + $0xb0] sm:$0xff]
        %v319 = vld [vmem:[%s295 + $0xb8] sm:$0x3]
        %v320 = vld [vmem:[%s295 + $0xc0] sm:$0xff]
        %v321 = vld [vmem:[%s295 + $0xc8] sm:$0xff]
        %v322 = vld [vmem:[%s295 + $0xd0] sm:$0x3]
        %v323 = vld [vmem:[%s295 + $0xd8] sm:$0xff]
        %v324 = vld [vmem:[%s295 + $0xe0] sm:$0xff]
        %v325 = vld [vmem:[%s295 + $0xe8] sm:$0x3]
        %v326 = vld [vmem:[%s295 + $0xf0] sm:$0xff]
        %v327 = vld [vmem:[%s295 + $0xf8] sm:$0xff]
        %v328 = vld [vmem:[%s295 + $0x100] sm:$0x3]
        %v329 = vld [vmem:[%s295 + $0x108] sm:$0xff]
        %v330 = vld [vmem:[%s295 + $0x110] sm:$0xff]
        %v331 = vld [vmem:[%s295 + $0x118] sm:$0x3]
        %vm362 = vcmask 1046528
        %v363 = vrot.slane %v296, 1
        %v364 = vrot.slane %v297, 1
        %v365 = vsel %vm362, %v363, %v364
        %v366 = vrot.slane %v298, 1
        %v367 = vsel %vm362, %v364, %v366
        %v368 = vrot.slane %v299, 1
        %v369 = vrot.slane %v300, 1
        %v370 = vsel %vm362, %v368, %v369
        %v371 = vrot.slane %v301, 1
        %v372 = vsel %vm362, %v369, %v371
        %v373 = vrot.slane %v302, 1
        %v374 = vrot.slane %v303, 1
        %v375 = vsel %vm362, %v373, %v374
        %v376 = vrot.slane %v304, 1
        %v377 = vsel %vm362, %v374, %v376
        %v378 = vrot.slane %v305, 1
        %v379 = vrot.slane %v306, 1
        %v380 = vsel %vm362, %v378, %v379
        %v381 = vrot.slane %v307, 1
        %v382 = vsel %vm362, %v379, %v381
        %v383 = vrot.slane %v308, 1
        %v384 = vrot.slane %v309, 1
        %v385 = vsel %vm362, %v383, %v384
        %v386 = vrot.slane %v310, 1
        %v387 = vsel %vm362, %v384, %v386
        %v388 = vrot.slane %v311, 1
        %v389 = vrot.slane %v312, 1
        %v390 = vsel %vm362, %v388, %v389
        %v391 = vrot.slane %v313, 1
        %v392 = vsel %vm362, %v389, %v391
        %v393 = vrot.slane %v314, 1
        %v394 = vrot.slane %v315, 1
        %v395 = vsel %vm362, %v393, %v394
        %v396 = vrot.slane %v316, 1
        %v397 = vsel %vm362, %v394, %v396
        %v398 = vrot.slane %v317, 1
        %v399 = vrot.slane %v318, 1
        %v400 = vsel %vm362, %v398, %v399
        %v401 = vrot.slane %v319, 1
        %v402 = vsel %vm362, %v399, %v401
        %v403 = vrot.slane %v320, 1
        %v404 = vrot.slane %v321, 1
        %v405 = vsel %vm362, %v403, %v404
        %v406 = vrot.slane %v322, 1
        %v407 = vsel %vm362, %v404, %v406
        %v408 = vrot.slane %v323, 1
        %v409 = vrot.slane %v324, 1
        %v410 = vsel %vm362, %v408, %v409
        %v411 = vrot.slane %v325, 1
        %v412 = vsel %vm362, %v409, %v411
        %vm433 = vcmask 1045504
        %v434 = vrot.slane %v296, 2
        %v435 = vrot.slane %v297, 2
        %v436 = vsel %vm433, %v434, %v435
        %v437 = vrot.slane %v298, 2
        %v438 = vsel %vm433, %v435, %v437
        %v439 = vrot.slane %v299, 2
        %v440 = vrot.slane %v300, 2
        %v441 = vsel %vm433, %v439, %v440
        %v442 = vrot.slane %v301, 2
        %v443 = vsel %vm433, %v440, %v442
        %v444 = vrot.slane %v302, 2
        %v445 = vrot.slane %v303, 2
        %v446 = vsel %vm433, %v444, %v445
        %v447 = vrot.slane %v304, 2
        %v448 = vsel %vm433, %v445, %v447
        %v449 = vrot.slane %v305, 2
        %v450 = vrot.slane %v306, 2
        %v451 = vsel %vm433, %v449, %v450
        %v452 = vrot.slane %v307, 2
        %v453 = vsel %vm433, %v450, %v452
        %v454 = vrot.slane %v308, 2
        %v455 = vrot.slane %v309, 2
        %v456 = vsel %vm433, %v454, %v455
        %v457 = vrot.slane %v310, 2
        %v458 = vsel %vm433, %v455, %v457
        %v459 = vrot.slane %v311, 2
        %v460 = vrot.slane %v312, 2
        %v461 = vsel %vm433, %v459, %v460
        %v462 = vrot.slane %v313, 2
        %v463 = vsel %vm433, %v460, %v462
        %v464 = vrot.slane %v314, 2
        %v465 = vrot.slane %v315, 2
        %v466 = vsel %vm433, %v464, %v465
        %v467 = vrot.slane %v316, 2
        %v468 = vsel %vm433, %v465, %v467
        %v469 = vrot.slane %v317, 2
        %v470 = vrot.slane %v318, 2
        %v471 = vsel %vm433, %v469, %v470
        %v472 = vrot.slane %v319, 2
        %v473 = vsel %vm433, %v470, %v472
        %v474 = vrot.slane %v320, 2
        %v475 = vrot.slane %v321, 2
        %v476 = vsel %vm433, %v474, %v475
        %v477 = vrot.slane %v322, 2
        %v478 = vsel %vm433, %v475, %v477
        %v479 = vrot.slane %v323, 2
        %v480 = vrot.slane %v324, 2
        %v481 = vsel %vm433, %v479, %v480
        %v482 = vrot.slane %v325, 2
        %v483 = vsel %vm433, %v480, %v482
        %v504 = vpack.c.bf16 %v297, %v296
        %v505 = vpack.c.bf16 %v367, %v365
        %v506 = vpack.c.bf16 %v438, %v436
        %v507 = vpack.c.bf16 %v300, %v299
        %v508 = vpack.c.bf16 %v372, %v370
        %v509 = vpack.c.bf16 %v443, %v441
        %v510 = vpack.c.bf16 %v303, %v302
        %v511 = vpack.c.bf16 %v377, %v375
        %v512 = vpack.c.bf16 %v448, %v446
        %v513 = vpack.c.bf16 %v306, %v305
        %v514 = vpack.c.bf16 %v382, %v380
        %v515 = vpack.c.bf16 %v453, %v451
        %v516 = vpack.c.bf16 %v309, %v308
        %v517 = vpack.c.bf16 %v387, %v385
        %v518 = vpack.c.bf16 %v458, %v456
        %v519 = vpack.c.bf16 %v312, %v311
        %v520 = vpack.c.bf16 %v392, %v390
        %v521 = vpack.c.bf16 %v463, %v461
        %v522 = vpack.c.bf16 %v315, %v314
        %v523 = vpack.c.bf16 %v397, %v395
        %v524 = vpack.c.bf16 %v468, %v466
        %v525 = vpack.c.bf16 %v318, %v317
        %v526 = vpack.c.bf16 %v402, %v400
        %v527 = vpack.c.bf16 %v473, %v471
        %v528 = vpack.c.bf16 %v321, %v320
        %v529 = vpack.c.bf16 %v407, %v405
        %v530 = vpack.c.bf16 %v478, %v476
        %v531 = vpack.c.bf16 %v324, %v323
        %v532 = vpack.c.bf16 %v412, %v410
        %v533 = vpack.c.bf16 %v483, %v481
        %v534 = vld [vmem:[%s1] sm:$0xf]
        %v535 = vld [vmem:[%s1 + $0x4] sm:$0xf]
        %v536 = vld [vmem:[%s1 + $0x8] sm:$0xf]
        %v537 = vld [vmem:[%s1 + $0xc] sm:$0xf]
        %v538 = vld [vmem:[%s1 + $0x10] sm:$0xf]
        %v539 = vld [vmem:[%s1 + $0x14] sm:$0xf]
        %v540 = vld [vmem:[%s1 + $0x18] sm:$0xf]
        %v541 = vld [vmem:[%s1 + $0x1c] sm:$0xf]
        %v542 = vld [vmem:[%s1 + $0x20] sm:$0xf]
        %v543 = vld [vmem:[%s1 + $0x24] sm:$0xf]
        %v544 = vld [vmem:[%s1 + $0x28] sm:$0xf]
        %v545 = vld [vmem:[%s1 + $0x2c] sm:$0xf]
        %v546 = vld [vmem:[%s1 + $0x30] sm:$0xf]
        %v547 = vld [vmem:[%s1 + $0x34] sm:$0xf]
        %v548 = vld [vmem:[%s1 + $0x38] sm:$0xf]
        %v549 = vld [vmem:[%s1 + $0x3c] sm:$0xf]
        %v550 = vld [vmem:[%s1 + $0x40] sm:$0xf]
        %v551 = vld [vmem:[%s1 + $0x44] sm:$0xf]
        %v552 = vld [vmem:[%s1 + $0x48] sm:$0xf]
        %v553 = vld [vmem:[%s1 + $0x4c] sm:$0xf]
        %v554 = vld [vmem:[%s1 + $0x50] sm:$0xf]
        %v555 = vld [vmem:[%s1 + $0x54] sm:$0xf]
        %v556 = vld [vmem:[%s1 + $0x58] sm:$0xf]
        %v557 = vld [vmem:[%s1 + $0x5c] sm:$0xf]
        %v558 = vld [vmem:[%s1 + $0x60] sm:$0xf]
        %v559 = vld [vmem:[%s1 + $0x64] sm:$0xf]
        %v560 = vld [vmem:[%s1 + $0x68] sm:$0xf]
        %v561 = vld [vmem:[%s1 + $0x6c] sm:$0xf]
        %v562 = vld [vmem:[%s1 + $0x70] sm:$0xf]
        %v563 = vld [vmem:[%s1 + $0x74] sm:$0xf]
        %v564 = vld [vmem:[%s1 + $0x78] sm:$0xf]
        %v565 = vld [vmem:[%s1 + $0x7c] sm:$0xf]
        %v566 = vld [vmem:[%s1 + $0x80] sm:$0xf]
        %v567 = vld [vmem:[%s1 + $0x84] sm:$0xf]
        %v568 = vld [vmem:[%s1 + $0x88] sm:$0xf]
        %v569 = vld [vmem:[%s1 + $0x8c] sm:$0xf]
        %v570 = vld [vmem:[%s1 + $0x90] sm:$0xf]
        %v571 = vld [vmem:[%s1 + $0x94] sm:$0xf]
        %v572 = vld [vmem:[%s1 + $0x98] sm:$0xf]
        %v573 = vld [vmem:[%s1 + $0x9c] sm:$0xf]
        %v574 = vld [vmem:[%s1 + $0xa0] sm:$0xf]
        %v575 = vld [vmem:[%s1 + $0xa4] sm:$0xf]
        %v576 = vld [vmem:[%s1 + $0xa8] sm:$0xf]
        %v577 = vld [vmem:[%s1 + $0xac] sm:$0xf]
        %v578 = vld [vmem:[%s1 + $0xb0] sm:$0xf]
        %v579 = vld [vmem:[%s1 + $0xb4] sm:$0xf]
        %v580 = vld [vmem:[%s1 + $0xb8] sm:$0xf]
        %v581 = vld [vmem:[%s1 + $0xbc] sm:$0xf]
        %v585 = vrot.slane %v326, 1
        %v586 = vrot.slane %v327, 1
        %v587 = vsel %vm362, %v585, %v586
        %v588 = vrot.slane %v328, 1
        %v589 = vsel %vm362, %v586, %v588
        %v592 = vrot.slane %v326, 2
        %v593 = vrot.slane %v327, 2
        %v594 = vsel %vm433, %v592, %v593
        %v595 = vrot.slane %v328, 2
        %v596 = vsel %vm433, %v593, %v595
        %v599 = vpack.c.bf16 %v327, %v326
        %v600 = vpack.c.bf16 %v589, %v587
        %v601 = vpack.c.bf16 %v596, %v594
        %s602 = scalar_lea.vmem %s1, 192
        %v603 = vld [vmem:[%s602] sm:$0xf]
        %v604 = vld [vmem:[%s602 + $0x4] sm:$0xf]
        %v605 = vld [vmem:[%s602 + $0x8] sm:$0xf]
        %v606 = vld [vmem:[%s602 + $0xc] sm:$0xf]
        %v607 = vld [vmem:[%s602 + $0x10] sm:$0xf]
        %v608 = vld [vmem:[%s602 + $0x14] sm:$0xf]
        %v609 = vld [vmem:[%s602 + $0x18] sm:$0xf]
        %v610 = vld [vmem:[%s602 + $0x1c] sm:$0xf]
        %v611 = vld [vmem:[%s602 + $0x20] sm:$0xf]
        %v612 = vld [vmem:[%s602 + $0x24] sm:$0xf]
        %v613 = vld [vmem:[%s602 + $0x28] sm:$0xf]
        %v614 = vld [vmem:[%s602 + $0x2c] sm:$0xf]
        %v615 = vld [vmem:[%s602 + $0x30] sm:$0xf]
        %v616 = vld [vmem:[%s602 + $0x34] sm:$0xf]
        %v617 = vld [vmem:[%s602 + $0x38] sm:$0xf]
        %v618 = vld [vmem:[%s602 + $0x3c] sm:$0xf]
        %v619 = vld [vmem:[%s602 + $0x40] sm:$0xf]
        %v620 = vld [vmem:[%s602 + $0x44] sm:$0xf]
        %v621 = vld [vmem:[%s602 + $0x48] sm:$0xf]
        %v622 = vld [vmem:[%s602 + $0x4c] sm:$0xf]
        %v623 = vld [vmem:[%s602 + $0x50] sm:$0xf]
        %v624 = vld [vmem:[%s602 + $0x54] sm:$0xf]
        %v625 = vld [vmem:[%s602 + $0x58] sm:$0xf]
        %v626 = vld [vmem:[%s602 + $0x5c] sm:$0xf]
        %v627 = vld [vmem:[%s602 + $0x60] sm:$0xf]
        %v628 = vld [vmem:[%s602 + $0x64] sm:$0xf]
        %v629 = vld [vmem:[%s602 + $0x68] sm:$0xf]
        %v630 = vld [vmem:[%s602 + $0x6c] sm:$0xf]
        %v631 = vld [vmem:[%s602 + $0x70] sm:$0xf]
        %v632 = vld [vmem:[%s602 + $0x74] sm:$0xf]
        %v633 = vld [vmem:[%s602 + $0x78] sm:$0xf]
        %v634 = vld [vmem:[%s602 + $0x7c] sm:$0xf]
        %v635 = vld [vmem:[%s602 + $0x80] sm:$0xf]
        %v636 = vld [vmem:[%s602 + $0x84] sm:$0xf]
        %v637 = vld [vmem:[%s602 + $0x88] sm:$0xf]
        %v638 = vld [vmem:[%s602 + $0x8c] sm:$0xf]
        %v639 = vld [vmem:[%s602 + $0x90] sm:$0xf]
        %v640 = vld [vmem:[%s602 + $0x94] sm:$0xf]
        %v641 = vld [vmem:[%s602 + $0x98] sm:$0xf]
        %v642 = vld [vmem:[%s602 + $0x9c] sm:$0xf]
        %v643 = vld [vmem:[%s602 + $0xa0] sm:$0xf]
        %v644 = vld [vmem:[%s602 + $0xa4] sm:$0xf]
        %v645 = vld [vmem:[%s602 + $0xa8] sm:$0xf]
        %v646 = vld [vmem:[%s602 + $0xac] sm:$0xf]
        %v647 = vld [vmem:[%s602 + $0xb0] sm:$0xf]
        %v648 = vld [vmem:[%s602 + $0xb4] sm:$0xf]
        %v649 = vld [vmem:[%s602 + $0xb8] sm:$0xf]
        %v650 = vld [vmem:[%s602 + $0xbc] sm:$0xf]
        %v699 = vunpack.c.l.b16 %v603
        %v700 = vunpack.c.l.b16 %v604
        %v701 = vunpack.c.l.b16 %v605
        %v702 = vunpack.c.l.b16 %v606
        %v703 = vunpack.c.l.b16 %v607
        %v704 = vunpack.c.l.b16 %v608
        %v705 = vunpack.c.l.b16 %v609
        %v706 = vunpack.c.l.b16 %v610
        %v707 = vunpack.c.l.b16 %v611
        %v708 = vunpack.c.l.b16 %v612
        %v709 = vunpack.c.l.b16 %v613
        %v710 = vunpack.c.l.b16 %v614
        %v711 = vunpack.c.l.b16 %v615
        %v712 = vunpack.c.l.b16 %v616
        %v713 = vunpack.c.l.b16 %v617
        %v714 = vunpack.c.l.b16 %v618
        %v715 = vunpack.c.l.b16 %v619
        %v716 = vunpack.c.l.b16 %v620
        %v717 = vunpack.c.l.b16 %v621
        %v718 = vunpack.c.l.b16 %v622
        %v719 = vunpack.c.l.b16 %v623
        %v720 = vunpack.c.l.b16 %v624
        %v721 = vunpack.c.l.b16 %v625
        %v722 = vunpack.c.l.b16 %v626
        %v723 = vunpack.c.l.b16 %v627
        %v724 = vunpack.c.l.b16 %v628
        %v725 = vunpack.c.l.b16 %v629
        %v726 = vunpack.c.l.b16 %v630
        %v727 = vunpack.c.l.b16 %v631
        %v728 = vunpack.c.l.b16 %v632
        %v729 = vunpack.c.l.b16 %v633
        %v730 = vunpack.c.l.b16 %v634
        %v731 = vunpack.c.l.b16 %v635
        %v732 = vunpack.c.l.b16 %v636
        %v733 = vunpack.c.l.b16 %v637
        %v734 = vunpack.c.l.b16 %v638
        %v735 = vunpack.c.l.b16 %v639
        %v736 = vunpack.c.l.b16 %v640
        %v737 = vunpack.c.l.b16 %v641
        %v738 = vunpack.c.l.b16 %v642
        %v739 = vunpack.c.l.b16 %v643
        %v740 = vunpack.c.l.b16 %v644
        %v741 = vunpack.c.l.b16 %v645
        %v742 = vunpack.c.l.b16 %v646
        %v743 = vunpack.c.l.b16 %v647
        %v744 = vunpack.c.l.b16 %v648
        %v745 = vunpack.c.l.b16 %v649
        %v746 = vunpack.c.l.b16 %v650
        %v747 = vpack.c.b16 %v700, %v699
        %v748 = vpack.c.b16 %v702, %v701
        %v749 = vpack.c.b16 %v704, %v703
        %v750 = vpack.c.b16 %v706, %v705
        %v751 = vpack.c.b16 %v708, %v707
        %v752 = vpack.c.b16 %v710, %v709
        %v753 = vpack.c.b16 %v712, %v711
        %v754 = vpack.c.b16 %v714, %v713
        %v755 = vpack.c.b16 %v716, %v715
        %v756 = vpack.c.b16 %v718, %v717
        %v757 = vpack.c.b16 %v720, %v719
        %v758 = vpack.c.b16 %v722, %v721
        %v759 = vpack.c.b16 %v724, %v723
        %v760 = vpack.c.b16 %v726, %v725
        %v761 = vpack.c.b16 %v728, %v727
        %v762 = vpack.c.b16 %v730, %v729
        %v763 = vpack.c.b16 %v732, %v731
        %v764 = vpack.c.b16 %v734, %v733
        %v765 = vpack.c.b16 %v736, %v735
        %v766 = vpack.c.b16 %v738, %v737
        %v767 = vpack.c.b16 %v740, %v739
        %v768 = vpack.c.b16 %v742, %v741
        %v769 = vpack.c.b16 %v744, %v743
        %v770 = vpack.c.b16 %v746, %v745
        %795 = vmatprep.subr.bf16.mxu0 0
        %796 = vmatpush1.bf16.msra.mxu0 %v754
        %797 = vmatprep.subr.bf16.mxu0 0
        %798 = vmatpush1.bf16.msra.mxu0 %v753
        %799 = vmatprep.subr.bf16.mxu0 0
        %800 = vmatpush1.bf16.msra.mxu0 %v752
        %801 = vmatprep.subr.bf16.mxu0 0
        %802 = vmatpush1.bf16.msra.mxu0 %v751
        %803 = vmatprep.subr.bf16.mxu0 0
        %804 = vmatpush1.bf16.msra.mxu0 %v750
        %805 = vmatprep.subr.bf16.mxu0 0
        %806 = vmatpush1.bf16.msra.mxu0 %v749
        %807 = vmatprep.subr.bf16.mxu0 0
        %808 = vmatpush1.bf16.msra.mxu0 %v748
        %809 = vmatprep.subr.bf16.mxu0 0
        %810 = vmatpush1.bf16.msra.mxu0 %v747
        %811 = vmatprep.subr.bf16.mxu0 0
        %812 = vmatpush2.bf16.msra.mxu0 %v762
        %813 = vmatprep.subr.bf16.mxu0 0
        %814 = vmatpush2.bf16.msra.mxu0 %v761
        %815 = vmatprep.subr.bf16.mxu0 0
        %816 = vmatpush2.bf16.msra.mxu0 %v760
        %817 = vmatprep.subr.bf16.mxu0 0
        %818 = vmatpush2.bf16.msra.mxu0 %v759
        %819 = vmatprep.subr.bf16.mxu0 0
        %820 = vmatpush2.bf16.msra.mxu0 %v758
        %821 = vmatprep.subr.bf16.mxu0 0
        %822 = vmatpush2.bf16.msra.mxu0 %v757
        %823 = vmatprep.subr.bf16.mxu0 0
        %824 = vmatpush2.bf16.msra.mxu0 %v756
        %825 = vmatprep.subr.bf16.mxu0 0
        %826 = vmatpush2.bf16.msra.mxu0 %v755
        %827 = vmatprep.mubr.bf16.mxu0 %v508
        %828 = vmatmul.mubr.bf16.gmra.mxu0 %v507
        %v829 = vpop.f32.mrf.mxu0
        %v830 = vadd.f32 0.0, %v829
        %v831 = vpop.f32.mrf.mxu0
        %v832 = vpop.f32.mrf.mxu0
        %v833 = vadd.f32 0.0, %v832
        %v834 = vpop.f32.mrf.mxu0
        %835 = vmatprep.mubr.bf16.mxu0 %v511
        %836 = vmatmul.mubr.bf16.gmra.mxu0 %v510
        %v837 = vpop.f32.mrf.mxu0
        %v838 = vadd.f32 0.0, %v837
        %v839 = vpop.f32.mrf.mxu0
        %v840 = vpop.f32.mrf.mxu0
        %v841 = vadd.f32 0.0, %v840
        %v842 = vpop.f32.mrf.mxu0
        %843 = vmatprep.mubr.bf16.mxu0 %v514
        %844 = vmatmul.mubr.bf16.gmra.mxu0 %v513
        %v845 = vpop.f32.mrf.mxu0
        %v846 = vadd.f32 0.0, %v845
        %v847 = vpop.f32.mrf.mxu0
        %v848 = vpop.f32.mrf.mxu0
        %v849 = vadd.f32 0.0, %v848
        %v850 = vpop.f32.mrf.mxu0
        %851 = vmatprep.mubr.bf16.mxu0 %v517
        %852 = vmatmul.mubr.bf16.gmra.mxu0 %v516
        %v853 = vpop.f32.mrf.mxu0
        %v854 = vadd.f32 0.0, %v853
        %v855 = vpop.f32.mrf.mxu0
        %v856 = vpop.f32.mrf.mxu0
        %v857 = vadd.f32 0.0, %v856
        %v858 = vpop.f32.mrf.mxu0
        %859 = vmatprep.mubr.bf16.mxu0 %v520
        %860 = vmatmul.mubr.bf16.gmra.mxu0 %v519
        %v861 = vpop.f32.mrf.mxu0
        %v862 = vadd.f32 0.0, %v861
        %v863 = vpop.f32.mrf.mxu0
        %v864 = vpop.f32.mrf.mxu0
        %v865 = vadd.f32 0.0, %v864
        %v866 = vpop.f32.mrf.mxu0
        %867 = vmatprep.mubr.bf16.mxu0 %v523
        %868 = vmatmul.mubr.bf16.gmra.mxu0 %v522
        %v869 = vpop.f32.mrf.mxu0
        %v870 = vadd.f32 0.0, %v869
        %v871 = vpop.f32.mrf.mxu0
        %v872 = vpop.f32.mrf.mxu0
        %v873 = vadd.f32 0.0, %v872
        %v874 = vpop.f32.mrf.mxu0
        %875 = vmatprep.mubr.bf16.mxu0 %v526
        %876 = vmatmul.mubr.bf16.gmra.mxu0 %v525
        %v877 = vpop.f32.mrf.mxu0
        %v878 = vadd.f32 0.0, %v877
        %v879 = vpop.f32.mrf.mxu0
        %v880 = vpop.f32.mrf.mxu0
        %v881 = vadd.f32 0.0, %v880
        %v882 = vpop.f32.mrf.mxu0
        %883 = vmatprep.mubr.bf16.mxu0 %v529
        %884 = vmatmul.mubr.bf16.gmra.mxu0 %v528
        %v885 = vpop.f32.mrf.mxu0
        %v886 = vadd.f32 0.0, %v885
        %v887 = vpop.f32.mrf.mxu0
        %v888 = vpop.f32.mrf.mxu0
        %v889 = vadd.f32 0.0, %v888
        %v890 = vpop.f32.mrf.mxu0
        %891 = vmatprep.mubr.bf16.mxu0 %v532
        %892 = vmatmul.mubr.bf16.gmra.mxu0 %v531
        %v893 = vpop.f32.mrf.mxu0
        %v894 = vadd.f32 0.0, %v893
        %v895 = vpop.f32.mrf.mxu0
        %v896 = vpop.f32.mrf.mxu0
        %v897 = vadd.f32 0.0, %v896
        %v898 = vpop.f32.mrf.mxu0
        %899 = vmatprep.mubr.bf16.mxu0 %v600
        %900 = vmatmul.mubr.bf16.gmra.mxu0 %v599
        %v901 = vpop.f32.mrf.mxu0
        %v902 = vadd.f32 0.0, %v901
        %v903 = vpop.f32.mrf.mxu0
        %v904 = vpop.f32.mrf.mxu0
        %v905 = vadd.f32 0.0, %v904
        %v906 = vpop.f32.mrf.mxu0
        %907 = vdwg.mxu0
        %908 = vmatprep.subr.bf16.mxu0 0
        %909 = vmatpush1.bf16.msra.mxu0 %v770
        %910 = vmatprep.subr.bf16.mxu0 0
        %911 = vmatpush1.bf16.msra.mxu0 %v769
        %912 = vmatprep.subr.bf16.mxu0 0
        %913 = vmatpush1.bf16.msra.mxu0 %v768
        %914 = vmatprep.subr.bf16.mxu0 0
        %915 = vmatpush1.bf16.msra.mxu0 %v767
        %916 = vmatprep.subr.bf16.mxu0 0
        %917 = vmatpush1.bf16.msra.mxu0 %v766
        %918 = vmatprep.subr.bf16.mxu0 0
        %919 = vmatpush1.bf16.msra.mxu0 %v765
        %920 = vmatprep.subr.bf16.mxu0 0
        %921 = vmatpush1.bf16.msra.mxu0 %v764
        %922 = vmatprep.subr.bf16.mxu0 0
        %923 = vmatpush1.bf16.msra.mxu0 %v763
        %924 = vmatprep.subr.bf16.mxu0 0
        %925 = vmatpush2.bf16.msra.mxu0 0
        %926 = vmatprep.subr.bf16.mxu0 0
        %927 = vmatpush2.bf16.msra.mxu0 0
        %928 = vmatprep.subr.bf16.mxu0 0
        %929 = vmatpush2.bf16.msra.mxu0 0
        %930 = vmatprep.subr.bf16.mxu0 0
        %931 = vmatpush2.bf16.msra.mxu0 0
        %932 = vmatprep.subr.bf16.mxu0 0
        %933 = vmatpush2.bf16.msra.mxu0 0
        %934 = vmatprep.subr.bf16.mxu0 0
        %935 = vmatpush2.bf16.msra.mxu0 0
        %936 = vmatprep.subr.bf16.mxu0 0
        %937 = vmatpush2.bf16.msra.mxu0 0
        %938 = vmatprep.subr.bf16.mxu0 0
        %939 = vmatpush2.bf16.msra.mxu0 0
        %940 = vmatprep.mubr.bf16.mxu0 0
        %941 = vmatmul.mubr.bf16.gmra.mxu0 %v509
        %v942 = vpop.f32.mrf.mxu0
        %v943 = vadd.f32 %v830, %v942
        %v944 = vpop.f32.mrf.mxu0
        %v945 = vpop.f32.mrf.mxu0
        %v946 = vadd.f32 %v833, %v945
        %v947 = vpop.f32.mrf.mxu0
        %948 = vmatprep.mubr.bf16.mxu0 0
        %949 = vmatmul.mubr.bf16.gmra.mxu0 %v512
        %v950 = vpop.f32.mrf.mxu0
        %v951 = vadd.f32 %v838, %v950
        %v952 = vpop.f32.mrf.mxu0
        %v953 = vpop.f32.mrf.mxu0
        %v954 = vadd.f32 %v841, %v953
        %v955 = vpop.f32.mrf.mxu0
        %956 = vmatprep.mubr.bf16.mxu0 0
        %957 = vmatmul.mubr.bf16.gmra.mxu0 %v515
        %v958 = vpop.f32.mrf.mxu0
        %v959 = vadd.f32 %v846, %v958
        %v960 = vpop.f32.mrf.mxu0
        %v961 = vpop.f32.mrf.mxu0
        %v962 = vadd.f32 %v849, %v961
        %v963 = vpop.f32.mrf.mxu0
        %964 = vmatprep.mubr.bf16.mxu0 0
        %965 = vmatmul.mubr.bf16.gmra.mxu0 %v518
        %v966 = vpop.f32.mrf.mxu0
        %v967 = vadd.f32 %v854, %v966
        %v968 = vpop.f32.mrf.mxu0
        %v969 = vpop.f32.mrf.mxu0
        %v970 = vadd.f32 %v857, %v969
        %v971 = vpop.f32.mrf.mxu0
        %972 = vmatprep.mubr.bf16.mxu0 0
        %973 = vmatmul.mubr.bf16.gmra.mxu0 %v521
        %v974 = vpop.f32.mrf.mxu0
        %v975 = vadd.f32 %v862, %v974
        %v976 = vpop.f32.mrf.mxu0
        %v977 = vpop.f32.mrf.mxu0
        %v978 = vadd.f32 %v865, %v977
        %v979 = vpop.f32.mrf.mxu0
        %980 = vmatprep.mubr.bf16.mxu0 0
        %981 = vmatmul.mubr.bf16.gmra.mxu0 %v524
        %v982 = vpop.f32.mrf.mxu0
        %v983 = vadd.f32 %v870, %v982
        %v984 = vpop.f32.mrf.mxu0
        %v985 = vpop.f32.mrf.mxu0
        %v986 = vadd.f32 %v873, %v985
        %v987 = vpop.f32.mrf.mxu0
        %988 = vmatprep.mubr.bf16.mxu0 0
        %989 = vmatmul.mubr.bf16.gmra.mxu0 %v527
        %v990 = vpop.f32.mrf.mxu0
        %v991 = vadd.f32 %v878, %v990
        %v992 = vpop.f32.mrf.mxu0
        %v993 = vpop.f32.mrf.mxu0
        %v994 = vadd.f32 %v881, %v993
        %v995 = vpop.f32.mrf.mxu0
        %996 = vmatprep.mubr.bf16.mxu0 0
        %997 = vmatmul.mubr.bf16.gmra.mxu0 %v530
        %v998 = vpop.f32.mrf.mxu0
        %v999 = vadd.f32 %v886, %v998
        %v1000 = vpop.f32.mrf.mxu0
        %v1001 = vpop.f32.mrf.mxu0
        %v1002 = vadd.f32 %v889, %v1001
        %v1003 = vpop.f32.mrf.mxu0
        %1004 = vmatprep.mubr.bf16.mxu0 0
        %1005 = vmatmul.mubr.bf16.gmra.mxu0 %v533
        %v1006 = vpop.f32.mrf.mxu0
        %v1007 = vadd.f32 %v894, %v1006
        %v1008 = vpop.f32.mrf.mxu0
        %v1009 = vpop.f32.mrf.mxu0
        %v1010 = vadd.f32 %v897, %v1009
        %v1011 = vpop.f32.mrf.mxu0
        %1012 = vmatprep.mubr.bf16.mxu0 0
        %1013 = vmatmul.mubr.bf16.gmra.mxu0 %v601
        %v1014 = vpop.f32.mrf.mxu0
        %v1015 = vadd.f32 %v902, %v1014
        %v1016 = vpop.f32.mrf.mxu0
        %v1017 = vpop.f32.mrf.mxu0
        %v1018 = vadd.f32 %v905, %v1017
        %v1019 = vpop.f32.mrf.mxu0
        %1020 = vdwg.mxu0
        %v1069 = vunpack.c.l.b16 %v534
        %v1070 = vunpack.c.l.b16 %v535
        %v1071 = vunpack.c.l.b16 %v536
        %v1072 = vunpack.c.l.b16 %v537
        %v1073 = vunpack.c.l.b16 %v538
        %v1074 = vunpack.c.l.b16 %v539
        %v1075 = vunpack.c.l.b16 %v540
        %v1076 = vunpack.c.l.b16 %v541
        %v1077 = vunpack.c.l.b16 %v542
        %v1078 = vunpack.c.l.b16 %v543
        %v1079 = vunpack.c.l.b16 %v544
        %v1080 = vunpack.c.l.b16 %v545
        %v1081 = vunpack.c.l.b16 %v546
        %v1082 = vunpack.c.l.b16 %v547
        %v1083 = vunpack.c.l.b16 %v548
        %v1084 = vunpack.c.l.b16 %v549
        %v1085 = vunpack.c.l.b16 %v550
        %v1086 = vunpack.c.l.b16 %v551
        %v1087 = vunpack.c.l.b16 %v552
        %v1088 = vunpack.c.l.b16 %v553
        %v1089 = vunpack.c.l.b16 %v554
        %v1090 = vunpack.c.l.b16 %v555
        %v1091 = vunpack.c.l.b16 %v556
        %v1092 = vunpack.c.l.b16 %v557
        %v1093 = vunpack.c.l.b16 %v558
        %v1094 = vunpack.c.l.b16 %v559
        %v1095 = vunpack.c.l.b16 %v560
        %v1096 = vunpack.c.l.b16 %v561
        %v1097 = vunpack.c.l.b16 %v562
        %v1098 = vunpack.c.l.b16 %v563
        %v1099 = vunpack.c.l.b16 %v564
        %v1100 = vunpack.c.l.b16 %v565
        %v1101 = vunpack.c.l.b16 %v566
        %v1102 = vunpack.c.l.b16 %v567
        %v1103 = vunpack.c.l.b16 %v568
        %v1104 = vunpack.c.l.b16 %v569
        %v1105 = vunpack.c.l.b16 %v570
        %v1106 = vunpack.c.l.b16 %v571
        %v1107 = vunpack.c.l.b16 %v572
        %v1108 = vunpack.c.l.b16 %v573
        %v1109 = vunpack.c.l.b16 %v574
        %v1110 = vunpack.c.l.b16 %v575
        %v1111 = vunpack.c.l.b16 %v576
        %v1112 = vunpack.c.l.b16 %v577
        %v1113 = vunpack.c.l.b16 %v578
        %v1114 = vunpack.c.l.b16 %v579
        %v1115 = vunpack.c.l.b16 %v580
        %v1116 = vunpack.c.l.b16 %v581
        %v1117 = vpack.c.b16 %v1070, %v1069
        %v1118 = vpack.c.b16 %v1072, %v1071
        %v1119 = vpack.c.b16 %v1074, %v1073
        %v1120 = vpack.c.b16 %v1076, %v1075
        %v1121 = vpack.c.b16 %v1078, %v1077
        %v1122 = vpack.c.b16 %v1080, %v1079
        %v1123 = vpack.c.b16 %v1082, %v1081
        %v1124 = vpack.c.b16 %v1084, %v1083
        %v1125 = vpack.c.b16 %v1086, %v1085
        %v1126 = vpack.c.b16 %v1088, %v1087
        %v1127 = vpack.c.b16 %v1090, %v1089
        %v1128 = vpack.c.b16 %v1092, %v1091
        %v1129 = vpack.c.b16 %v1094, %v1093
        %v1130 = vpack.c.b16 %v1096, %v1095
        %v1131 = vpack.c.b16 %v1098, %v1097
        %v1132 = vpack.c.b16 %v1100, %v1099
        %v1133 = vpack.c.b16 %v1102, %v1101
        %v1134 = vpack.c.b16 %v1104, %v1103
        %v1135 = vpack.c.b16 %v1106, %v1105
        %v1136 = vpack.c.b16 %v1108, %v1107
        %v1137 = vpack.c.b16 %v1110, %v1109
        %v1138 = vpack.c.b16 %v1112, %v1111
        %v1139 = vpack.c.b16 %v1114, %v1113
        %v1140 = vpack.c.b16 %v1116, %v1115
        %1165 = vmatprep.subr.bf16.mxu0 0
        %1166 = vmatpush1.bf16.msra.mxu0 %v1124
        %1167 = vmatprep.subr.bf16.mxu0 0
        %1168 = vmatpush1.bf16.msra.mxu0 %v1123
        %1169 = vmatprep.subr.bf16.mxu0 0
        %1170 = vmatpush1.bf16.msra.mxu0 %v1122
        %1171 = vmatprep.subr.bf16.mxu0 0
        %1172 = vmatpush1.bf16.msra.mxu0 %v1121
        %1173 = vmatprep.subr.bf16.mxu0 0
        %1174 = vmatpush1.bf16.msra.mxu0 %v1120
        %1175 = vmatprep.subr.bf16.mxu0 0
        %1176 = vmatpush1.bf16.msra.mxu0 %v1119
        %1177 = vmatprep.subr.bf16.mxu0 0
        %1178 = vmatpush1.bf16.msra.mxu0 %v1118
        %1179 = vmatprep.subr.bf16.mxu0 0
        %1180 = vmatpush1.bf16.msra.mxu0 %v1117
        %1181 = vmatprep.subr.bf16.mxu0 0
        %1182 = vmatpush2.bf16.msra.mxu0 %v1132
        %1183 = vmatprep.subr.bf16.mxu0 0
        %1184 = vmatpush2.bf16.msra.mxu0 %v1131
        %1185 = vmatprep.subr.bf16.mxu0 0
        %1186 = vmatpush2.bf16.msra.mxu0 %v1130
        %1187 = vmatprep.subr.bf16.mxu0 0
        %1188 = vmatpush2.bf16.msra.mxu0 %v1129
        %1189 = vmatprep.subr.bf16.mxu0 0
        %1190 = vmatpush2.bf16.msra.mxu0 %v1128
        %1191 = vmatprep.subr.bf16.mxu0 0
        %1192 = vmatpush2.bf16.msra.mxu0 %v1127
        %1193 = vmatprep.subr.bf16.mxu0 0
        %1194 = vmatpush2.bf16.msra.mxu0 %v1126
        %1195 = vmatprep.subr.bf16.mxu0 0
        %1196 = vmatpush2.bf16.msra.mxu0 %v1125
        %1197 = vmatprep.mubr.bf16.mxu0 %v505
        %1198 = vmatmul.mubr.bf16.gmra.mxu0 %v504
        %v1199 = vpop.f32.mrf.mxu0
        %v1200 = vadd.f32 %v943, %v1199
        %v1201 = vpop.f32.mrf.mxu0
        %v1202 = vpop.f32.mrf.mxu0
        %v1203 = vadd.f32 %v946, %v1202
        %v1204 = vpop.f32.mrf.mxu0
        %1205 = vmatprep.mubr.bf16.mxu0 %v508
        %1206 = vmatmul.mubr.bf16.gmra.mxu0 %v507
        %v1207 = vpop.f32.mrf.mxu0
        %v1208 = vadd.f32 %v951, %v1207
        %v1209 = vpop.f32.mrf.mxu0
        %v1210 = vpop.f32.mrf.mxu0
        %v1211 = vadd.f32 %v954, %v1210
        %v1212 = vpop.f32.mrf.mxu0
        %1213 = vmatprep.mubr.bf16.mxu0 %v511
        %1214 = vmatmul.mubr.bf16.gmra.mxu0 %v510
        %v1215 = vpop.f32.mrf.mxu0
        %v1216 = vadd.f32 %v959, %v1215
        %v1217 = vpop.f32.mrf.mxu0
        %v1218 = vpop.f32.mrf.mxu0
        %v1219 = vadd.f32 %v962, %v1218
        %v1220 = vpop.f32.mrf.mxu0
        %1221 = vmatprep.mubr.bf16.mxu0 %v514
        %1222 = vmatmul.mubr.bf16.gmra.mxu0 %v513
        %v1223 = vpop.f32.mrf.mxu0
        %v1224 = vadd.f32 %v967, %v1223
        %v1225 = vpop.f32.mrf.mxu0
        %v1226 = vpop.f32.mrf.mxu0
        %v1227 = vadd.f32 %v970, %v1226
        %v1228 = vpop.f32.mrf.mxu0
        %1229 = vmatprep.mubr.bf16.mxu0 %v517
        %1230 = vmatmul.mubr.bf16.gmra.mxu0 %v516
        %v1231 = vpop.f32.mrf.mxu0
        %v1232 = vadd.f32 %v975, %v1231
        %v1233 = vpop.f32.mrf.mxu0
        %v1234 = vpop.f32.mrf.mxu0
        %v1235 = vadd.f32 %v978, %v1234
        %v1236 = vpop.f32.mrf.mxu0
        %1237 = vmatprep.mubr.bf16.mxu0 %v520
        %1238 = vmatmul.mubr.bf16.gmra.mxu0 %v519
        %v1239 = vpop.f32.mrf.mxu0
        %v1240 = vadd.f32 %v983, %v1239
        %v1241 = vpop.f32.mrf.mxu0
        %v1242 = vpop.f32.mrf.mxu0
        %v1243 = vadd.f32 %v986, %v1242
        %v1244 = vpop.f32.mrf.mxu0
        %1245 = vmatprep.mubr.bf16.mxu0 %v523
        %1246 = vmatmul.mubr.bf16.gmra.mxu0 %v522
        %v1247 = vpop.f32.mrf.mxu0
        %v1248 = vadd.f32 %v991, %v1247
        %v1249 = vpop.f32.mrf.mxu0
        %v1250 = vpop.f32.mrf.mxu0
        %v1251 = vadd.f32 %v994, %v1250
        %v1252 = vpop.f32.mrf.mxu0
        %1253 = vmatprep.mubr.bf16.mxu0 %v526
        %1254 = vmatmul.mubr.bf16.gmra.mxu0 %v525
        %v1255 = vpop.f32.mrf.mxu0
        %v1256 = vadd.f32 %v999, %v1255
        %v1257 = vpop.f32.mrf.mxu0
        %v1258 = vpop.f32.mrf.mxu0
        %v1259 = vadd.f32 %v1002, %v1258
        %v1260 = vpop.f32.mrf.mxu0
        %1261 = vmatprep.mubr.bf16.mxu0 %v529
        %1262 = vmatmul.mubr.bf16.gmra.mxu0 %v528
        %v1263 = vpop.f32.mrf.mxu0
        %v1264 = vadd.f32 %v1007, %v1263
        %v1265 = vpop.f32.mrf.mxu0
        %v1266 = vpop.f32.mrf.mxu0
        %v1267 = vadd.f32 %v1010, %v1266
        %v1268 = vpop.f32.mrf.mxu0
        %1269 = vmatprep.mubr.bf16.mxu0 %v532
        %1270 = vmatmul.mubr.bf16.gmra.mxu0 %v531
        %v1271 = vpop.f32.mrf.mxu0
        %v1272 = vadd.f32 %v1015, %v1271
        %v1273 = vpop.f32.mrf.mxu0
        %v1274 = vpop.f32.mrf.mxu0
        %v1275 = vadd.f32 %v1018, %v1274
        %v1276 = vpop.f32.mrf.mxu0
        %1277 = vdwg.mxu0
        %1278 = vmatprep.subr.bf16.mxu0 0
        %1279 = vmatpush1.bf16.msra.mxu0 %v1140
        %1280 = vmatprep.subr.bf16.mxu0 0
        %1281 = vmatpush1.bf16.msra.mxu0 %v1139
        %1282 = vmatprep.subr.bf16.mxu0 0
        %1283 = vmatpush1.bf16.msra.mxu0 %v1138
        %1284 = vmatprep.subr.bf16.mxu0 0
        %1285 = vmatpush1.bf16.msra.mxu0 %v1137
        %1286 = vmatprep.subr.bf16.mxu0 0
        %1287 = vmatpush1.bf16.msra.mxu0 %v1136
        %1288 = vmatprep.subr.bf16.mxu0 0
        %1289 = vmatpush1.bf16.msra.mxu0 %v1135
        %1290 = vmatprep.subr.bf16.mxu0 0
        %1291 = vmatpush1.bf16.msra.mxu0 %v1134
        %1292 = vmatprep.subr.bf16.mxu0 0
        %1293 = vmatpush1.bf16.msra.mxu0 %v1133
        %1294 = vmatprep.subr.bf16.mxu0 0
        %1295 = vmatpush2.bf16.msra.mxu0 0
        %1296 = vmatprep.subr.bf16.mxu0 0
        %1297 = vmatpush2.bf16.msra.mxu0 0
        %1298 = vmatprep.subr.bf16.mxu0 0
        %1299 = vmatpush2.bf16.msra.mxu0 0
        %1300 = vmatprep.subr.bf16.mxu0 0
        %1301 = vmatpush2.bf16.msra.mxu0 0
        %1302 = vmatprep.subr.bf16.mxu0 0
        %1303 = vmatpush2.bf16.msra.mxu0 0
        %1304 = vmatprep.subr.bf16.mxu0 0
        %1305 = vmatpush2.bf16.msra.mxu0 0
        %1306 = vmatprep.subr.bf16.mxu0 0
        %1307 = vmatpush2.bf16.msra.mxu0 0
        %1308 = vmatprep.subr.bf16.mxu0 0
        %1309 = vmatpush2.bf16.msra.mxu0 0
        %1310 = vmatprep.mubr.bf16.mxu0 0
        %1311 = vmatmul.mubr.bf16.gmra.mxu0 %v506
        %v1312 = vpop.f32.mrf.mxu0
        %v1313 = vadd.f32 %v1200, %v1312
        %v1314 = vpop.f32.mrf.mxu0
        %v1315 = vpop.f32.mrf.mxu0
        %v1316 = vadd.f32 %v1203, %v1315
        %v1317 = vpop.f32.mrf.mxu0
        %1318 = vmatprep.mubr.bf16.mxu0 0
        %1319 = vmatmul.mubr.bf16.gmra.mxu0 %v509
        %v1320 = vpop.f32.mrf.mxu0
        %v1321 = vadd.f32 %v1208, %v1320
        %v1322 = vpop.f32.mrf.mxu0
        %v1323 = vpop.f32.mrf.mxu0
        %v1324 = vadd.f32 %v1211, %v1323
        %v1325 = vpop.f32.mrf.mxu0
        %1326 = vmatprep.mubr.bf16.mxu0 0
        %1327 = vmatmul.mubr.bf16.gmra.mxu0 %v512
        %v1328 = vpop.f32.mrf.mxu0
        %v1329 = vadd.f32 %v1216, %v1328
        %v1330 = vpop.f32.mrf.mxu0
        %v1331 = vpop.f32.mrf.mxu0
        %v1332 = vadd.f32 %v1219, %v1331
        %v1333 = vpop.f32.mrf.mxu0
        %1334 = vmatprep.mubr.bf16.mxu0 0
        %1335 = vmatmul.mubr.bf16.gmra.mxu0 %v515
        %v1336 = vpop.f32.mrf.mxu0
        %v1337 = vadd.f32 %v1224, %v1336
        %v1338 = vpop.f32.mrf.mxu0
        %v1339 = vpop.f32.mrf.mxu0
        %v1340 = vadd.f32 %v1227, %v1339
        %v1341 = vpop.f32.mrf.mxu0
        %1342 = vmatprep.mubr.bf16.mxu0 0
        %1343 = vmatmul.mubr.bf16.gmra.mxu0 %v518
        %v1344 = vpop.f32.mrf.mxu0
        %v1345 = vadd.f32 %v1232, %v1344
        %v1346 = vpop.f32.mrf.mxu0
        %v1347 = vpop.f32.mrf.mxu0
        %v1348 = vadd.f32 %v1235, %v1347
        %v1349 = vpop.f32.mrf.mxu0
        %1350 = vmatprep.mubr.bf16.mxu0 0
        %1351 = vmatmul.mubr.bf16.gmra.mxu0 %v521
        %v1352 = vpop.f32.mrf.mxu0
        %v1353 = vadd.f32 %v1240, %v1352
        %v1354 = vpop.f32.mrf.mxu0
        %v1355 = vpop.f32.mrf.mxu0
        %v1356 = vadd.f32 %v1243, %v1355
        %v1357 = vpop.f32.mrf.mxu0
        %1358 = vmatprep.mubr.bf16.mxu0 0
        %1359 = vmatmul.mubr.bf16.gmra.mxu0 %v524
        %v1360 = vpop.f32.mrf.mxu0
        %v1361 = vadd.f32 %v1248, %v1360
        %v1362 = vpop.f32.mrf.mxu0
        %v1363 = vpop.f32.mrf.mxu0
        %v1364 = vadd.f32 %v1251, %v1363
        %v1365 = vpop.f32.mrf.mxu0
        %1366 = vmatprep.mubr.bf16.mxu0 0
        %1367 = vmatmul.mubr.bf16.gmra.mxu0 %v527
        %v1368 = vpop.f32.mrf.mxu0
        %v1369 = vadd.f32 %v1256, %v1368
        %v1370 = vpop.f32.mrf.mxu0
        %v1371 = vpop.f32.mrf.mxu0
        %v1372 = vadd.f32 %v1259, %v1371
        %v1373 = vpop.f32.mrf.mxu0
        %1374 = vmatprep.mubr.bf16.mxu0 0
        %1375 = vmatmul.mubr.bf16.gmra.mxu0 %v530
        %v1376 = vpop.f32.mrf.mxu0
        %v1377 = vadd.f32 %v1264, %v1376
        %v1378 = vpop.f32.mrf.mxu0
        %v1379 = vpop.f32.mrf.mxu0
        %v1380 = vadd.f32 %v1267, %v1379
        %v1381 = vpop.f32.mrf.mxu0
        %1382 = vmatprep.mubr.bf16.mxu0 0
        %1383 = vmatmul.mubr.bf16.gmra.mxu0 %v533
        %v1384 = vpop.f32.mrf.mxu0
        %v1385 = vadd.f32 %v1272, %v1384
        %v1386 = vpop.f32.mrf.mxu0
        %v1387 = vpop.f32.mrf.mxu0
        %v1388 = vadd.f32 %v1275, %v1387
        %v1389 = vpop.f32.mrf.mxu0
        %1390 = vdwg.mxu0
        %v1394 = vrot.slane %v329, 1
        %v1395 = vrot.slane %v330, 1
        %v1396 = vsel %vm362, %v1394, %v1395
        %v1397 = vrot.slane %v331, 1
        %v1398 = vsel %vm362, %v1395, %v1397
        %v1401 = vrot.slane %v329, 2
        %v1402 = vrot.slane %v330, 2
        %v1403 = vsel %vm433, %v1401, %v1402
        %v1404 = vrot.slane %v331, 2
        %v1405 = vsel %vm433, %v1402, %v1404
        %v1408 = vpack.c.bf16 %v330, %v329
        %v1409 = vpack.c.bf16 %v1398, %v1396
        %v1410 = vpack.c.bf16 %v1405, %v1403
        %s1411 = scalar_lea.vmem %s1, 384
        %v1412 = vld [vmem:[%s1411] sm:$0xf]
        %v1413 = vld [vmem:[%s1411 + $0x4] sm:$0xf]
        %v1414 = vld [vmem:[%s1411 + $0x8] sm:$0xf]
        %v1415 = vld [vmem:[%s1411 + $0xc] sm:$0xf]
        %v1416 = vld [vmem:[%s1411 + $0x10] sm:$0xf]
        %v1417 = vld [vmem:[%s1411 + $0x14] sm:$0xf]
        %v1418 = vld [vmem:[%s1411 + $0x18] sm:$0xf]
        %v1419 = vld [vmem:[%s1411 + $0x1c] sm:$0xf]
        %v1420 = vld [vmem:[%s1411 + $0x20] sm:$0xf]
        %v1421 = vld [vmem:[%s1411 + $0x24] sm:$0xf]
        %v1422 = vld [vmem:[%s1411 + $0x28] sm:$0xf]
        %v1423 = vld [vmem:[%s1411 + $0x2c] sm:$0xf]
        %v1424 = vld [vmem:[%s1411 + $0x30] sm:$0xf]
        %v1425 = vld [vmem:[%s1411 + $0x34] sm:$0xf]
        %v1426 = vld [vmem:[%s1411 + $0x38] sm:$0xf]
        %v1427 = vld [vmem:[%s1411 + $0x3c] sm:$0xf]
        %v1428 = vld [vmem:[%s1411 + $0x40] sm:$0xf]
        %v1429 = vld [vmem:[%s1411 + $0x44] sm:$0xf]
        %v1430 = vld [vmem:[%s1411 + $0x48] sm:$0xf]
        %v1431 = vld [vmem:[%s1411 + $0x4c] sm:$0xf]
        %v1432 = vld [vmem:[%s1411 + $0x50] sm:$0xf]
        %v1433 = vld [vmem:[%s1411 + $0x54] sm:$0xf]
        %v1434 = vld [vmem:[%s1411 + $0x58] sm:$0xf]
        %v1435 = vld [vmem:[%s1411 + $0x5c] sm:$0xf]
        %v1436 = vld [vmem:[%s1411 + $0x60] sm:$0xf]
        %v1437 = vld [vmem:[%s1411 + $0x64] sm:$0xf]
        %v1438 = vld [vmem:[%s1411 + $0x68] sm:$0xf]
        %v1439 = vld [vmem:[%s1411 + $0x6c] sm:$0xf]
        %v1440 = vld [vmem:[%s1411 + $0x70] sm:$0xf]
        %v1441 = vld [vmem:[%s1411 + $0x74] sm:$0xf]
        %v1442 = vld [vmem:[%s1411 + $0x78] sm:$0xf]
        %v1443 = vld [vmem:[%s1411 + $0x7c] sm:$0xf]
        %v1444 = vld [vmem:[%s1411 + $0x80] sm:$0xf]
        %v1445 = vld [vmem:[%s1411 + $0x84] sm:$0xf]
        %v1446 = vld [vmem:[%s1411 + $0x88] sm:$0xf]
        %v1447 = vld [vmem:[%s1411 + $0x8c] sm:$0xf]
        %v1448 = vld [vmem:[%s1411 + $0x90] sm:$0xf]
        %v1449 = vld [vmem:[%s1411 + $0x94] sm:$0xf]
        %v1450 = vld [vmem:[%s1411 + $0x98] sm:$0xf]
        %v1451 = vld [vmem:[%s1411 + $0x9c] sm:$0xf]
        %v1452 = vld [vmem:[%s1411 + $0xa0] sm:$0xf]
        %v1453 = vld [vmem:[%s1411 + $0xa4] sm:$0xf]
        %v1454 = vld [vmem:[%s1411 + $0xa8] sm:$0xf]
        %v1455 = vld [vmem:[%s1411 + $0xac] sm:$0xf]
        %v1456 = vld [vmem:[%s1411 + $0xb0] sm:$0xf]
        %v1457 = vld [vmem:[%s1411 + $0xb4] sm:$0xf]
        %v1458 = vld [vmem:[%s1411 + $0xb8] sm:$0xf]
        %v1459 = vld [vmem:[%s1411 + $0xbc] sm:$0xf]
        %v1508 = vunpack.c.l.b16 %v1412
        %v1509 = vunpack.c.l.b16 %v1413
        %v1510 = vunpack.c.l.b16 %v1414
        %v1511 = vunpack.c.l.b16 %v1415
        %v1512 = vunpack.c.l.b16 %v1416
        %v1513 = vunpack.c.l.b16 %v1417
        %v1514 = vunpack.c.l.b16 %v1418
        %v1515 = vunpack.c.l.b16 %v1419
        %v1516 = vunpack.c.l.b16 %v1420
        %v1517 = vunpack.c.l.b16 %v1421
        %v1518 = vunpack.c.l.b16 %v1422
        %v1519 = vunpack.c.l.b16 %v1423
        %v1520 = vunpack.c.l.b16 %v1424
        %v1521 = vunpack.c.l.b16 %v1425
        %v1522 = vunpack.c.l.b16 %v1426
        %v1523 = vunpack.c.l.b16 %v1427
        %v1524 = vunpack.c.l.b16 %v1428
        %v1525 = vunpack.c.l.b16 %v1429
        %v1526 = vunpack.c.l.b16 %v1430
        %v1527 = vunpack.c.l.b16 %v1431
        %v1528 = vunpack.c.l.b16 %v1432
        %v1529 = vunpack.c.l.b16 %v1433
        %v1530 = vunpack.c.l.b16 %v1434
        %v1531 = vunpack.c.l.b16 %v1435
        %v1532 = vunpack.c.l.b16 %v1436
        %v1533 = vunpack.c.l.b16 %v1437
        %v1534 = vunpack.c.l.b16 %v1438
        %v1535 = vunpack.c.l.b16 %v1439
        %v1536 = vunpack.c.l.b16 %v1440
        %v1537 = vunpack.c.l.b16 %v1441
        %v1538 = vunpack.c.l.b16 %v1442
        %v1539 = vunpack.c.l.b16 %v1443
        %v1540 = vunpack.c.l.b16 %v1444
        %v1541 = vunpack.c.l.b16 %v1445
        %v1542 = vunpack.c.l.b16 %v1446
        %v1543 = vunpack.c.l.b16 %v1447
        %v1544 = vunpack.c.l.b16 %v1448
        %v1545 = vunpack.c.l.b16 %v1449
        %v1546 = vunpack.c.l.b16 %v1450
        %v1547 = vunpack.c.l.b16 %v1451
        %v1548 = vunpack.c.l.b16 %v1452
        %v1549 = vunpack.c.l.b16 %v1453
        %v1550 = vunpack.c.l.b16 %v1454
        %v1551 = vunpack.c.l.b16 %v1455
        %v1552 = vunpack.c.l.b16 %v1456
        %v1553 = vunpack.c.l.b16 %v1457
        %v1554 = vunpack.c.l.b16 %v1458
        %v1555 = vunpack.c.l.b16 %v1459
        %v1556 = vpack.c.b16 %v1509, %v1508
        %v1557 = vpack.c.b16 %v1511, %v1510
        %v1558 = vpack.c.b16 %v1513, %v1512
        %v1559 = vpack.c.b16 %v1515, %v1514
        %v1560 = vpack.c.b16 %v1517, %v1516
        %v1561 = vpack.c.b16 %v1519, %v1518
        %v1562 = vpack.c.b16 %v1521, %v1520
        %v1563 = vpack.c.b16 %v1523, %v1522
        %v1564 = vpack.c.b16 %v1525, %v1524
        %v1565 = vpack.c.b16 %v1527, %v1526
        %v1566 = vpack.c.b16 %v1529, %v1528
        %v1567 = vpack.c.b16 %v1531, %v1530
        %v1568 = vpack.c.b16 %v1533, %v1532
        %v1569 = vpack.c.b16 %v1535, %v1534
        %v1570 = vpack.c.b16 %v1537, %v1536
        %v1571 = vpack.c.b16 %v1539, %v1538
        %v1572 = vpack.c.b16 %v1541, %v1540
        %v1573 = vpack.c.b16 %v1543, %v1542
        %v1574 = vpack.c.b16 %v1545, %v1544
        %v1575 = vpack.c.b16 %v1547, %v1546
        %v1576 = vpack.c.b16 %v1549, %v1548
        %v1577 = vpack.c.b16 %v1551, %v1550
        %v1578 = vpack.c.b16 %v1553, %v1552
        %v1579 = vpack.c.b16 %v1555, %v1554
        %1604 = vmatprep.subr.bf16.mxu0 0
        %1605 = vmatpush1.bf16.msra.mxu0 %v1563
        %1606 = vmatprep.subr.bf16.mxu0 0
        %1607 = vmatpush1.bf16.msra.mxu0 %v1562
        %1608 = vmatprep.subr.bf16.mxu0 0
        %1609 = vmatpush1.bf16.msra.mxu0 %v1561
        %1610 = vmatprep.subr.bf16.mxu0 0
        %1611 = vmatpush1.bf16.msra.mxu0 %v1560
        %1612 = vmatprep.subr.bf16.mxu0 0
        %1613 = vmatpush1.bf16.msra.mxu0 %v1559
        %1614 = vmatprep.subr.bf16.mxu0 0
        %1615 = vmatpush1.bf16.msra.mxu0 %v1558
        %1616 = vmatprep.subr.bf16.mxu0 0
        %1617 = vmatpush1.bf16.msra.mxu0 %v1557
        %1618 = vmatprep.subr.bf16.mxu0 0
        %1619 = vmatpush1.bf16.msra.mxu0 %v1556
        %1620 = vmatprep.subr.bf16.mxu0 0
        %1621 = vmatpush2.bf16.msra.mxu0 %v1571
        %1622 = vmatprep.subr.bf16.mxu0 0
        %1623 = vmatpush2.bf16.msra.mxu0 %v1570
        %1624 = vmatprep.subr.bf16.mxu0 0
        %1625 = vmatpush2.bf16.msra.mxu0 %v1569
        %1626 = vmatprep.subr.bf16.mxu0 0
        %1627 = vmatpush2.bf16.msra.mxu0 %v1568
        %1628 = vmatprep.subr.bf16.mxu0 0
        %1629 = vmatpush2.bf16.msra.mxu0 %v1567
        %1630 = vmatprep.subr.bf16.mxu0 0
        %1631 = vmatpush2.bf16.msra.mxu0 %v1566
        %1632 = vmatprep.subr.bf16.mxu0 0
        %1633 = vmatpush2.bf16.msra.mxu0 %v1565
        %1634 = vmatprep.subr.bf16.mxu0 0
        %1635 = vmatpush2.bf16.msra.mxu0 %v1564
        %1636 = vmatprep.mubr.bf16.mxu0 %v511
        %1637 = vmatmul.mubr.bf16.gmra.mxu0 %v510
        %v1638 = vpop.f32.mrf.mxu0
        %v1639 = vadd.f32 0.0, %v1638
        %v1640 = vpop.f32.mrf.mxu0
        %v1641 = vpop.f32.mrf.mxu0
        %v1642 = vadd.f32 0.0, %v1641
        %v1643 = vpop.f32.mrf.mxu0
        %1644 = vmatprep.mubr.bf16.mxu0 %v514
        %1645 = vmatmul.mubr.bf16.gmra.mxu0 %v513
        %v1646 = vpop.f32.mrf.mxu0
        %v1647 = vadd.f32 0.0, %v1646
        %v1648 = vpop.f32.mrf.mxu0
        %v1649 = vpop.f32.mrf.mxu0
        %v1650 = vadd.f32 0.0, %v1649
        %v1651 = vpop.f32.mrf.mxu0
        %1652 = vmatprep.mubr.bf16.mxu0 %v517
        %1653 = vmatmul.mubr.bf16.gmra.mxu0 %v516
        %v1654 = vpop.f32.mrf.mxu0
        %v1655 = vadd.f32 0.0, %v1654
        %v1656 = vpop.f32.mrf.mxu0
        %v1657 = vpop.f32.mrf.mxu0
        %v1658 = vadd.f32 0.0, %v1657
        %v1659 = vpop.f32.mrf.mxu0
        %1660 = vmatprep.mubr.bf16.mxu0 %v520
        %1661 = vmatmul.mubr.bf16.gmra.mxu0 %v519
        %v1662 = vpop.f32.mrf.mxu0
        %v1663 = vadd.f32 0.0, %v1662
        %v1664 = vpop.f32.mrf.mxu0
        %v1665 = vpop.f32.mrf.mxu0
        %v1666 = vadd.f32 0.0, %v1665
        %v1667 = vpop.f32.mrf.mxu0
        %1668 = vmatprep.mubr.bf16.mxu0 %v523
        %1669 = vmatmul.mubr.bf16.gmra.mxu0 %v522
        %v1670 = vpop.f32.mrf.mxu0
        %v1671 = vadd.f32 0.0, %v1670
        %v1672 = vpop.f32.mrf.mxu0
        %v1673 = vpop.f32.mrf.mxu0
        %v1674 = vadd.f32 0.0, %v1673
        %v1675 = vpop.f32.mrf.mxu0
        %1676 = vmatprep.mubr.bf16.mxu0 %v526
        %1677 = vmatmul.mubr.bf16.gmra.mxu0 %v525
        %v1678 = vpop.f32.mrf.mxu0
        %v1679 = vadd.f32 0.0, %v1678
        %v1680 = vpop.f32.mrf.mxu0
        %v1681 = vpop.f32.mrf.mxu0
        %v1682 = vadd.f32 0.0, %v1681
        %v1683 = vpop.f32.mrf.mxu0
        %1684 = vmatprep.mubr.bf16.mxu0 %v529
        %1685 = vmatmul.mubr.bf16.gmra.mxu0 %v528
        %v1686 = vpop.f32.mrf.mxu0
        %v1687 = vadd.f32 0.0, %v1686
        %v1688 = vpop.f32.mrf.mxu0
        %v1689 = vpop.f32.mrf.mxu0
        %v1690 = vadd.f32 0.0, %v1689
        %v1691 = vpop.f32.mrf.mxu0
        %1692 = vmatprep.mubr.bf16.mxu0 %v532
        %1693 = vmatmul.mubr.bf16.gmra.mxu0 %v531
        %v1694 = vpop.f32.mrf.mxu0
        %v1695 = vadd.f32 0.0, %v1694
        %v1696 = vpop.f32.mrf.mxu0
        %v1697 = vpop.f32.mrf.mxu0
        %v1698 = vadd.f32 0.0, %v1697
        %v1699 = vpop.f32.mrf.mxu0
        %1700 = vmatprep.mubr.bf16.mxu0 %v600
        %1701 = vmatmul.mubr.bf16.gmra.mxu0 %v599
        %v1702 = vpop.f32.mrf.mxu0
        %v1703 = vadd.f32 0.0, %v1702
        %v1704 = vpop.f32.mrf.mxu0
        %v1705 = vpop.f32.mrf.mxu0
        %v1706 = vadd.f32 0.0, %v1705
        %v1707 = vpop.f32.mrf.mxu0
        %1708 = vmatprep.mubr.bf16.mxu0 %v1409
        %1709 = vmatmul.mubr.bf16.gmra.mxu0 %v1408
        %v1710 = vpop.f32.mrf.mxu0
        %v1711 = vadd.f32 0.0, %v1710
        %v1712 = vpop.f32.mrf.mxu0
        %v1713 = vpop.f32.mrf.mxu0
        %v1714 = vadd.f32 0.0, %v1713
        %v1715 = vpop.f32.mrf.mxu0
        %1716 = vdwg.mxu0
        %1717 = vmatprep.subr.bf16.mxu0 0
        %1718 = vmatpush1.bf16.msra.mxu0 %v1579
        %1719 = vmatprep.subr.bf16.mxu0 0
        %1720 = vmatpush1.bf16.msra.mxu0 %v1578
        %1721 = vmatprep.subr.bf16.mxu0 0
        %1722 = vmatpush1.bf16.msra.mxu0 %v1577
        %1723 = vmatprep.subr.bf16.mxu0 0
        %1724 = vmatpush1.bf16.msra.mxu0 %v1576
        %1725 = vmatprep.subr.bf16.mxu0 0
        %1726 = vmatpush1.bf16.msra.mxu0 %v1575
        %1727 = vmatprep.subr.bf16.mxu0 0
        %1728 = vmatpush1.bf16.msra.mxu0 %v1574
        %1729 = vmatprep.subr.bf16.mxu0 0
        %1730 = vmatpush1.bf16.msra.mxu0 %v1573
        %1731 = vmatprep.subr.bf16.mxu0 0
        %1732 = vmatpush1.bf16.msra.mxu0 %v1572
        %1733 = vmatprep.subr.bf16.mxu0 0
        %1734 = vmatpush2.bf16.msra.mxu0 0
        %1735 = vmatprep.subr.bf16.mxu0 0
        %1736 = vmatpush2.bf16.msra.mxu0 0
        %1737 = vmatprep.subr.bf16.mxu0 0
        %1738 = vmatpush2.bf16.msra.mxu0 0
        %1739 = vmatprep.subr.bf16.mxu0 0
        %1740 = vmatpush2.bf16.msra.mxu0 0
        %1741 = vmatprep.subr.bf16.mxu0 0
        %1742 = vmatpush2.bf16.msra.mxu0 0
        %1743 = vmatprep.subr.bf16.mxu0 0
        %1744 = vmatpush2.bf16.msra.mxu0 0
        %1745 = vmatprep.subr.bf16.mxu0 0
        %1746 = vmatpush2.bf16.msra.mxu0 0
        %1747 = vmatprep.subr.bf16.mxu0 0
        %1748 = vmatpush2.bf16.msra.mxu0 0
        %1749 = vmatprep.mubr.bf16.mxu0 0
        %1750 = vmatmul.mubr.bf16.gmra.mxu0 %v512
        %v1751 = vpop.f32.mrf.mxu0
        %v1752 = vadd.f32 %v1639, %v1751
        %v1753 = vpop.f32.mrf.mxu0
        %v1754 = vpop.f32.mrf.mxu0
        %v1755 = vadd.f32 %v1642, %v1754
        %v1756 = vpop.f32.mrf.mxu0
        %1757 = vmatprep.mubr.bf16.mxu0 0
        %1758 = vmatmul.mubr.bf16.gmra.mxu0 %v515
        %v1759 = vpop.f32.mrf.mxu0
        %v1760 = vadd.f32 %v1647, %v1759
        %v1761 = vpop.f32.mrf.mxu0
        %v1762 = vpop.f32.mrf.mxu0
        %v1763 = vadd.f32 %v1650, %v1762
        %v1764 = vpop.f32.mrf.mxu0
        %1765 = vmatprep.mubr.bf16.mxu0 0
        %1766 = vmatmul.mubr.bf16.gmra.mxu0 %v518
        %v1767 = vpop.f32.mrf.mxu0
        %v1768 = vadd.f32 %v1655, %v1767
        %v1769 = vpop.f32.mrf.mxu0
        %v1770 = vpop.f32.mrf.mxu0
        %v1771 = vadd.f32 %v1658, %v1770
        %v1772 = vpop.f32.mrf.mxu0
        %1773 = vmatprep.mubr.bf16.mxu0 0
        %1774 = vmatmul.mubr.bf16.gmra.mxu0 %v521
        %v1775 = vpop.f32.mrf.mxu0
        %v1776 = vadd.f32 %v1663, %v1775
        %v1777 = vpop.f32.mrf.mxu0
        %v1778 = vpop.f32.mrf.mxu0
        %v1779 = vadd.f32 %v1666, %v1778
        %v1780 = vpop.f32.mrf.mxu0
        %1781 = vmatprep.mubr.bf16.mxu0 0
        %1782 = vmatmul.mubr.bf16.gmra.mxu0 %v524
        %v1783 = vpop.f32.mrf.mxu0
        %v1784 = vadd.f32 %v1671, %v1783
        %v1785 = vpop.f32.mrf.mxu0
        %v1786 = vpop.f32.mrf.mxu0
        %v1787 = vadd.f32 %v1674, %v1786
        %v1788 = vpop.f32.mrf.mxu0
        %1789 = vmatprep.mubr.bf16.mxu0 0
        %1790 = vmatmul.mubr.bf16.gmra.mxu0 %v527
        %v1791 = vpop.f32.mrf.mxu0
        %v1792 = vadd.f32 %v1679, %v1791
        %v1793 = vpop.f32.mrf.mxu0
        %v1794 = vpop.f32.mrf.mxu0
        %v1795 = vadd.f32 %v1682, %v1794
        %v1796 = vpop.f32.mrf.mxu0
        %1797 = vmatprep.mubr.bf16.mxu0 0
        %1798 = vmatmul.mubr.bf16.gmra.mxu0 %v530
        %v1799 = vpop.f32.mrf.mxu0
        %v1800 = vadd.f32 %v1687, %v1799
        %v1801 = vpop.f32.mrf.mxu0
        %v1802 = vpop.f32.mrf.mxu0
        %v1803 = vadd.f32 %v1690, %v1802
        %v1804 = vpop.f32.mrf.mxu0
        %1805 = vmatprep.mubr.bf16.mxu0 0
        %1806 = vmatmul.mubr.bf16.gmra.mxu0 %v533
        %v1807 = vpop.f32.mrf.mxu0
        %v1808 = vadd.f32 %v1695, %v1807
        %v1809 = vpop.f32.mrf.mxu0
        %v1810 = vpop.f32.mrf.mxu0
        %v1811 = vadd.f32 %v1698, %v1810
        %v1812 = vpop.f32.mrf.mxu0
        %1813 = vmatprep.mubr.bf16.mxu0 0
        %1814 = vmatmul.mubr.bf16.gmra.mxu0 %v601
        %v1815 = vpop.f32.mrf.mxu0
        %v1816 = vadd.f32 %v1703, %v1815
        %v1817 = vpop.f32.mrf.mxu0
        %v1818 = vpop.f32.mrf.mxu0
        %v1819 = vadd.f32 %v1706, %v1818
        %v1820 = vpop.f32.mrf.mxu0
        %1821 = vmatprep.mubr.bf16.mxu0 0
        %1822 = vmatmul.mubr.bf16.gmra.mxu0 %v1410
        %v1823 = vpop.f32.mrf.mxu0
        %v1824 = vadd.f32 %v1711, %v1823
        %v1825 = vpop.f32.mrf.mxu0
        %v1826 = vpop.f32.mrf.mxu0
        %v1827 = vadd.f32 %v1714, %v1826
        %v1828 = vpop.f32.mrf.mxu0
        %1829 = vdwg.mxu0
        %v1830 = vadd.f32 %v1313, %v1752
        %v1831 = vadd.f32 %v1316, %v1755
        %v1832 = vadd.f32 %v1321, %v1760
        %v1833 = vadd.f32 %v1324, %v1763
        %v1834 = vadd.f32 %v1329, %v1768
        %v1835 = vadd.f32 %v1332, %v1771
        %v1836 = vadd.f32 %v1337, %v1776
        %v1837 = vadd.f32 %v1340, %v1779
        %v1838 = vadd.f32 %v1345, %v1784
        %v1839 = vadd.f32 %v1348, %v1787
        %v1840 = vadd.f32 %v1353, %v1792
        %v1841 = vadd.f32 %v1356, %v1795
        %v1842 = vadd.f32 %v1361, %v1800
        %v1843 = vadd.f32 %v1364, %v1803
        %v1844 = vadd.f32 %v1369, %v1808
        %v1845 = vadd.f32 %v1372, %v1811
        %v1846 = vadd.f32 %v1377, %v1816
        %v1847 = vadd.f32 %v1380, %v1819
        %v1848 = vadd.f32 %v1385, %v1824
        %v1849 = vadd.f32 %v1388, %v1827
        %v1850 = vld [vmem:[%s2] sm:$0x1]
        %v1852 = vlaneseq
        %v1853 = vshrl.u32 %v1852, 7
        %v1854 = vsub.s32 0, %v1853
        %v1855 = vrot.slane %v1850, %v1854
        %v1857 = vadd.f32 %v1830, %v1855
        %v1858 = vadd.f32 %v1831, %v1855
        %v1859 = vadd.f32 %v1832, %v1855
        %v1860 = vadd.f32 %v1833, %v1855
        %v1861 = vadd.f32 %v1834, %v1855
        %v1862 = vadd.f32 %v1835, %v1855
        %v1863 = vadd.f32 %v1836, %v1855
        %v1864 = vadd.f32 %v1837, %v1855
        %v1865 = vadd.f32 %v1838, %v1855
        %v1866 = vadd.f32 %v1839, %v1855
        %v1867 = vadd.f32 %v1840, %v1855
        %v1868 = vadd.f32 %v1841, %v1855
        %v1869 = vadd.f32 %v1842, %v1855
        %v1870 = vadd.f32 %v1843, %v1855
        %v1871 = vadd.f32 %v1844, %v1855
        %v1872 = vadd.f32 %v1845, %v1855
        %v1873 = vadd.f32 %v1846, %v1855
        %v1874 = vadd.f32 %v1847, %v1855
        %v1875 = vadd.f32 %v1848, %v1855
        %v1876 = vadd.f32 %v1849, %v1855
        %v1877 = vmax.f32 %v1857, 0.0
        %v1878 = vmax.f32 %v1858, 0.0
        %v1879 = vmax.f32 %v1859, 0.0
        %v1880 = vmax.f32 %v1860, 0.0
        %v1881 = vmax.f32 %v1861, 0.0
        %v1882 = vmax.f32 %v1862, 0.0
        %v1883 = vmax.f32 %v1863, 0.0
        %v1884 = vmax.f32 %v1864, 0.0
        %v1885 = vmax.f32 %v1865, 0.0
        %v1886 = vmax.f32 %v1866, 0.0
        %v1887 = vmax.f32 %v1867, 0.0
        %v1888 = vmax.f32 %v1868, 0.0
        %v1889 = vmax.f32 %v1869, 0.0
        %v1890 = vmax.f32 %v1870, 0.0
        %v1891 = vmax.f32 %v1871, 0.0
        %v1892 = vmax.f32 %v1872, 0.0
        %v1893 = vmax.f32 %v1873, 0.0
        %v1894 = vmax.f32 %v1874, 0.0
        %v1895 = vmax.f32 %v1875, 0.0
        %v1896 = vmax.f32 %v1876, 0.0
        %v1897 = vld [vmem:[%s5] sm:$0xf]
        %v1898 = vld [vmem:[%s5 + $0x4] sm:$0xf]
        %v1899 = vld [vmem:[%s5 + $0x8] sm:$0xf]
        %v1900 = vld [vmem:[%s5 + $0xc] sm:$0xf]
        %v1901 = vld [vmem:[%s5 + $0x10] sm:$0xf]
        %v1902 = vld [vmem:[%s5 + $0x14] sm:$0xf]
        %v1903 = vld [vmem:[%s5 + $0x18] sm:$0xf]
        %v1904 = vld [vmem:[%s5 + $0x1c] sm:$0xf]
        %v1905 = vld [vmem:[%s5 + $0x20] sm:$0xf]
        %v1906 = vld [vmem:[%s5 + $0x24] sm:$0xf]
        %v1907 = vld [vmem:[%s5 + $0x28] sm:$0xf]
        %v1908 = vld [vmem:[%s5 + $0x2c] sm:$0xf]
        %v1909 = vld [vmem:[%s5 + $0x30] sm:$0xf]
        %v1910 = vld [vmem:[%s5 + $0x34] sm:$0xf]
        %v1911 = vld [vmem:[%s5 + $0x38] sm:$0xf]
        %v1912 = vld [vmem:[%s5 + $0x3c] sm:$0xf]
        %v1913 = vld [vmem:[%s6] sm:$0x1]
        %v1915 = vlaneseq
        %v1916 = vshrl.u32 %v1915, 7
        %v1917 = vsub.s32 0, %v1916
        %v1918 = vrot.slane %v1913, %v1917
        %v1936 = vunpack.c.l.b16 %v1897
        %v1937 = vunpack.c.l.b16 %v1898
        %v1938 = vunpack.c.l.b16 %v1899
        %v1939 = vunpack.c.l.b16 %v1900
        %v1940 = vunpack.c.l.b16 %v1901
        %v1941 = vunpack.c.l.b16 %v1902
        %v1942 = vunpack.c.l.b16 %v1903
        %v1943 = vunpack.c.l.b16 %v1904
        %v1944 = vunpack.c.l.b16 %v1905
        %v1945 = vunpack.c.l.b16 %v1906
        %v1946 = vunpack.c.l.b16 %v1907
        %v1947 = vunpack.c.l.b16 %v1908
        %v1948 = vunpack.c.l.b16 %v1909
        %v1949 = vunpack.c.l.b16 %v1910
        %v1950 = vunpack.c.l.b16 %v1911
        %v1951 = vunpack.c.l.b16 %v1912
        %v1952 = vpack.c.b16 %v1937, %v1936
        %v1953 = vpack.c.b16 %v1939, %v1938
        %v1954 = vpack.c.b16 %v1941, %v1940
        %v1955 = vpack.c.b16 %v1943, %v1942
        %v1956 = vpack.c.b16 %v1945, %v1944
        %v1957 = vpack.c.b16 %v1947, %v1946
        %v1958 = vpack.c.b16 %v1949, %v1948
        %v1959 = vpack.c.b16 %v1951, %v1950
        %1968 = vmatprep.subr.bf16.mxu0 0
        %1969 = vmatpush1.bf16.msra.mxu0 %v1959
        %1970 = vmatprep.subr.bf16.mxu0 0
        %1971 = vmatpush1.bf16.msra.mxu0 %v1958
        %1972 = vmatprep.subr.bf16.mxu0 0
        %1973 = vmatpush1.bf16.msra.mxu0 %v1957
        %1974 = vmatprep.subr.bf16.mxu0 0
        %1975 = vmatpush1.bf16.msra.mxu0 %v1956
        %1976 = vmatprep.subr.bf16.mxu0 0
        %1977 = vmatpush1.bf16.msra.mxu0 %v1955
        %1978 = vmatprep.subr.bf16.mxu0 0
        %1979 = vmatpush1.bf16.msra.mxu0 %v1954
        %1980 = vmatprep.subr.bf16.mxu0 0
        %1981 = vmatpush1.bf16.msra.mxu0 %v1953
        %1982 = vmatprep.subr.bf16.mxu0 0
        %1983 = vmatpush1.bf16.msra.mxu0 %v1952
        %1984 = vmatprep.subr.bf16.mxu0 0
        %1985 = vmatpush2.bf16.msra.mxu0 0
        %1986 = vmatprep.subr.bf16.mxu0 0
        %1987 = vmatpush2.bf16.msra.mxu0 0
        %1988 = vmatprep.subr.bf16.mxu0 0
        %1989 = vmatpush2.bf16.msra.mxu0 0
        %1990 = vmatprep.subr.bf16.mxu0 0
        %1991 = vmatpush2.bf16.msra.mxu0 0
        %1992 = vmatprep.subr.bf16.mxu0 0
        %1993 = vmatpush2.bf16.msra.mxu0 0
        %1994 = vmatprep.subr.bf16.mxu0 0
        %1995 = vmatpush2.bf16.msra.mxu0 0
        %1996 = vmatprep.subr.bf16.mxu0 0
        %1997 = vmatpush2.bf16.msra.mxu0 0
        %1998 = vmatprep.subr.bf16.mxu0 0
        %1999 = vmatpush2.bf16.msra.mxu0 0
        %2000 = vmatprep.mubr.bf16.mxu0 0
        %2001 = vmatmul.mubr.bf16.gmra.mxu0 %v511
        %v2002 = vpop.f32.mrf.mxu0
        %v2003 = vadd.f32 %v1918, %v2002
        %v2004 = vpop.f32.mrf.mxu0
        %v2005 = vpop.f32.mrf.mxu0
        %v2006 = vadd.f32 %v1918, %v2005
        %v2007 = vpop.f32.mrf.mxu0
        %2008 = vmatprep.mubr.bf16.mxu0 0
        %2009 = vmatmul.mubr.bf16.gmra.mxu0 %v514
        %v2010 = vpop.f32.mrf.mxu0
        %v2011 = vadd.f32 %v1918, %v2010
        %v2012 = vpop.f32.mrf.mxu0
        %v2013 = vpop.f32.mrf.mxu0
        %v2014 = vadd.f32 %v1918, %v2013
        %v2015 = vpop.f32.mrf.mxu0
        %2016 = vmatprep.mubr.bf16.mxu0 0
        %2017 = vmatmul.mubr.bf16.gmra.mxu0 %v517
        %v2018 = vpop.f32.mrf.mxu0
        %v2019 = vadd.f32 %v1918, %v2018
        %v2020 = vpop.f32.mrf.mxu0
        %v2021 = vpop.f32.mrf.mxu0
        %v2022 = vadd.f32 %v1918, %v2021
        %v2023 = vpop.f32.mrf.mxu0
        %2024 = vmatprep.mubr.bf16.mxu0 0
        %2025 = vmatmul.mubr.bf16.gmra.mxu0 %v520
        %v2026 = vpop.f32.mrf.mxu0
        %v2027 = vadd.f32 %v1918, %v2026
        %v2028 = vpop.f32.mrf.mxu0
        %v2029 = vpop.f32.mrf.mxu0
        %v2030 = vadd.f32 %v1918, %v2029
        %v2031 = vpop.f32.mrf.mxu0
        %2032 = vmatprep.mubr.bf16.mxu0 0
        %2033 = vmatmul.mubr.bf16.gmra.mxu0 %v523
        %v2034 = vpop.f32.mrf.mxu0
        %v2035 = vadd.f32 %v1918, %v2034
        %v2036 = vpop.f32.mrf.mxu0
        %v2037 = vpop.f32.mrf.mxu0
        %v2038 = vadd.f32 %v1918, %v2037
        %v2039 = vpop.f32.mrf.mxu0
        %2040 = vmatprep.mubr.bf16.mxu0 0
        %2041 = vmatmul.mubr.bf16.gmra.mxu0 %v526
        %v2042 = vpop.f32.mrf.mxu0
        %v2043 = vadd.f32 %v1918, %v2042
        %v2044 = vpop.f32.mrf.mxu0
        %v2045 = vpop.f32.mrf.mxu0
        %v2046 = vadd.f32 %v1918, %v2045
        %v2047 = vpop.f32.mrf.mxu0
        %2048 = vmatprep.mubr.bf16.mxu0 0
        %2049 = vmatmul.mubr.bf16.gmra.mxu0 %v529
        %v2050 = vpop.f32.mrf.mxu0
        %v2051 = vadd.f32 %v1918, %v2050
        %v2052 = vpop.f32.mrf.mxu0
        %v2053 = vpop.f32.mrf.mxu0
        %v2054 = vadd.f32 %v1918, %v2053
        %v2055 = vpop.f32.mrf.mxu0
        %2056 = vmatprep.mubr.bf16.mxu0 0
        %2057 = vmatmul.mubr.bf16.gmra.mxu0 %v532
        %v2058 = vpop.f32.mrf.mxu0
        %v2059 = vadd.f32 %v1918, %v2058
        %v2060 = vpop.f32.mrf.mxu0
        %v2061 = vpop.f32.mrf.mxu0
        %v2062 = vadd.f32 %v1918, %v2061
        %v2063 = vpop.f32.mrf.mxu0
        %2064 = vdwg.mxu0
        %2065 = vst [vmem:[#allocation2] sm:$0x1] 0.0
        %2066 = vst [vmem:[#allocation2 + $0x18] sm:$0x1] 0.0
        %2067 = vst [vmem:[#allocation2 + $0x30] sm:$0x1] 0.0
        %2068 = vst [vmem:[#allocation2 + $0x48] sm:$0x1] 0.0
        %2069 = vst [vmem:[#allocation2 + $0x60] sm:$0x1] 0.0
        %2070 = vst [vmem:[#allocation2 + $0x78] sm:$0x1] 0.0
        %2071 = vst [vmem:[#allocation2 + $0x90] sm:$0x1] 0.0
        %2072 = vst [vmem:[#allocation2 + $0xa8] sm:$0x1] 0.0
        %2073 = vst [vmem:[#allocation2 + $0xc0] sm:$0x1] 0.0
        %2074 = vst [vmem:[#allocation2 + $0xd8] sm:$0x1] 0.0
        %2075 = vst [vmem:[#allocation2 + $0x11] sm:$0x1] 0.0
        %2076 = vst [vmem:[#allocation2 + $0x29] sm:$0x1] 0.0
        %2077 = vst [vmem:[#allocation2 + $0x41] sm:$0x1] 0.0
        %2078 = vst [vmem:[#allocation2 + $0x59] sm:$0x1] 0.0
        %2079 = vst [vmem:[#allocation2 + $0x71] sm:$0x1] 0.0
        %2080 = vst [vmem:[#allocation2 + $0x89] sm:$0x1] 0.0
        %2081 = vst [vmem:[#allocation2 + $0xa1] sm:$0x1] 0.0
        %2082 = vst [vmem:[#allocation2 + $0xb9] sm:$0x1] 0.0
        %2083 = vst [vmem:[#allocation2 + $0xd1] sm:$0x1] 0.0
        %2084 = vst [vmem:[#allocation2 + $0xe9] sm:$0x1] 0.0
        %2085 = vst [vmem:[#allocation2 + $0x1] sm:$0xff] %v1877
        %2086 = vst [vmem:[#allocation2 + $0x9] sm:$0xff] %v1878
        %2087 = vst [vmem:[#allocation2 + $0x19] sm:$0xff] %v1879
        %2088 = vst [vmem:[#allocation2 + $0x21] sm:$0xff] %v1880
        %2089 = vst [vmem:[#allocation2 + $0x31] sm:$0xff] %v1881
        %2090 = vst [vmem:[#allocation2 + $0x39] sm:$0xff] %v1882
        %2091 = vst [vmem:[#allocation2 + $0x49] sm:$0xff] %v1883
        %2092 = vst [vmem:[#allocation2 + $0x51] sm:$0xff] %v1884
        %2093 = vst [vmem:[#allocation2 + $0x61] sm:$0xff] %v1885
        %2094 = vst [vmem:[#allocation2 + $0x69] sm:$0xff] %v1886
        %2095 = vst [vmem:[#allocation2 + $0x79] sm:$0xff] %v1887
        %2096 = vst [vmem:[#allocation2 + $0x81] sm:$0xff] %v1888
        %2097 = vst [vmem:[#allocation2 + $0x91] sm:$0xff] %v1889
        %2098 = vst [vmem:[#allocation2 + $0x99] sm:$0xff] %v1890
        %2099 = vst [vmem:[#allocation2 + $0xa9] sm:$0xff] %v1891
        %2100 = vst [vmem:[#allocation2 + $0xb1] sm:$0xff] %v1892
        %2101 = vst [vmem:[#allocation2 + $0xc1] sm:$0xff] %v1893
        %2102 = vst [vmem:[#allocation2 + $0xc9] sm:$0xff] %v1894
        %2103 = vst [vmem:[#allocation2 + $0xd9] sm:$0xff] %v1895
        %2104 = vst [vmem:[#allocation2 + $0xe1] sm:$0xff] %v1896
        %p2105 = scmp.eq.s32.totalorder %s26, 0
        // Predicated region
        $region49: #{tpu_custom_call.1} parent=47 // pred_check
          %p2106 = pneg %p2105
        $region50: #{tpu_custom_call.1} parent=47 // pred_check_branch
          %2108 = sbr.rel (%p2106) target = $region52
        $region51: #{tpu_custom_call.1} parent=47 // pred_region
          %2109 = vst [vmem:[#allocation2] sm:$0xff] 0.0
          %2110 = vst [vmem:[#allocation2 + $0x8] sm:$0xff] 0.0
          %2111 = vst [vmem:[#allocation2 + $0x10] sm:$0x3] 0.0
        $region52: #{tpu_custom_call.1} parent=47 // pred_fallthru
          _
        %p2112 = scmp.eq.s32.totalorder %s26, 1
        // Predicated region
        $region53: #{tpu_custom_call.1} parent=47 // pred_check
          %p2113 = pneg %p2112
        $region54: #{tpu_custom_call.1} parent=47 // pred_check_branch
          %2115 = sbr.rel (%p2113) target = $region56
        $region55: #{tpu_custom_call.1} parent=47 // pred_region
          %s2116 = scalar_lea.vmem [#allocation2], 216
          %2117 = vst [vmem:[%s2116] sm:$0xff] 0.0
          %2118 = vst [vmem:[%s2116 + $0x8] sm:$0xff] 0.0
          %2119 = vst [vmem:[%s2116 + $0x10] sm:$0x3] 0.0
        $region56: #{tpu_custom_call.1} parent=47 // pred_fallthru
          _
        %v2120 = vld [vmem:[#allocation2] sm:$0xff]
        %v2121 = vld [vmem:[#allocation2 + $0x8] sm:$0xff]
        %v2122 = vld [vmem:[#allocation2 + $0x10] sm:$0x3]
        %v2123 = vld [vmem:[#allocation2 + $0x18] sm:$0xff]
        %v2124 = vld [vmem:[#allocation2 + $0x20] sm:$0xff]
        %v2125 = vld [vmem:[#allocation2 + $0x28] sm:$0x3]
        %v2126 = vld [vmem:[#allocation2 + $0x30] sm:$0xff]
        %v2127 = vld [vmem:[#allocation2 + $0x38] sm:$0xff]
        %v2128 = vld [vmem:[#allocation2 + $0x40] sm:$0x3]
        %v2129 = vld [vmem:[#allocation2 + $0x48] sm:$0xff]
        %v2130 = vld [vmem:[#allocation2 + $0x50] sm:$0xff]
        %v2131 = vld [vmem:[#allocation2 + $0x58] sm:$0x3]
        %v2132 = vld [vmem:[#allocation2 + $0x60] sm:$0xff]
        %v2133 = vld [vmem:[#allocation2 + $0x68] sm:$0xff]
        %v2134 = vld [vmem:[#allocation2 + $0x70] sm:$0x3]
        %v2135 = vld [vmem:[#allocation2 + $0x78] sm:$0xff]
        %v2136 = vld [vmem:[#allocation2 + $0x80] sm:$0xff]
        %v2137 = vld [vmem:[#allocation2 + $0x88] sm:$0x3]
        %v2138 = vld [vmem:[#allocation2 + $0x90] sm:$0xff]
        %v2139 = vld [vmem:[#allocation2 + $0x98] sm:$0xff]
        %v2140 = vld [vmem:[#allocation2 + $0xa0] sm:$0x3]
        %v2141 = vld [vmem:[#allocation2 + $0xa8] sm:$0xff]
        %v2142 = vld [vmem:[#allocation2 + $0xb0] sm:$0xff]
        %v2143 = vld [vmem:[#allocation2 + $0xb8] sm:$0x3]
        %v2144 = vld [vmem:[#allocation2 + $0xc0] sm:$0xff]
        %v2145 = vld [vmem:[#allocation2 + $0xc8] sm:$0xff]
        %v2146 = vld [vmem:[#allocation2 + $0xd0] sm:$0x3]
        %v2147 = vld [vmem:[#allocation2 + $0xd8] sm:$0xff]
        %v2148 = vld [vmem:[#allocation2 + $0xe0] sm:$0xff]
        %v2149 = vld [vmem:[#allocation2 + $0xe8] sm:$0x3]
        %v2174 = vrot.slane %v2120, 1
        %v2175 = vrot.slane %v2121, 1
        %v2176 = vsel %vm362, %v2174, %v2175
        %v2177 = vrot.slane %v2122, 1
        %v2178 = vsel %vm362, %v2175, %v2177
        %v2179 = vrot.slane %v2123, 1
        %v2180 = vrot.slane %v2124, 1
        %v2181 = vsel %vm362, %v2179, %v2180
        %v2182 = vrot.slane %v2125, 1
        %v2183 = vsel %vm362, %v2180, %v2182
        %v2184 = vrot.slane %v2126, 1
        %v2185 = vrot.slane %v2127, 1
        %v2186 = vsel %vm362, %v2184, %v2185
        %v2187 = vrot.slane %v2128, 1
        %v2188 = vsel %vm362, %v2185, %v2187
        %v2189 = vrot.slane %v2129, 1
        %v2190 = vrot.slane %v2130, 1
        %v2191 = vsel %vm362, %v2189, %v2190
        %v2192 = vrot.slane %v2131, 1
        %v2193 = vsel %vm362, %v2190, %v2192
        %v2194 = vrot.slane %v2132, 1
        %v2195 = vrot.slane %v2133, 1
        %v2196 = vsel %vm362, %v2194, %v2195
        %v2197 = vrot.slane %v2134, 1
        %v2198 = vsel %vm362, %v2195, %v2197
        %v2199 = vrot.slane %v2135, 1
        %v2200 = vrot.slane %v2136, 1
        %v2201 = vsel %vm362, %v2199, %v2200
        %v2202 = vrot.slane %v2137, 1
        %v2203 = vsel %vm362, %v2200, %v2202
        %v2204 = vrot.slane %v2138, 1
        %v2205 = vrot.slane %v2139, 1
        %v2206 = vsel %vm362, %v2204, %v2205
        %v2207 = vrot.slane %v2140, 1
        %v2208 = vsel %vm362, %v2205, %v2207
        %v2209 = vrot.slane %v2141, 1
        %v2210 = vrot.slane %v2142, 1
        %v2211 = vsel %vm362, %v2209, %v2210
        %v2212 = vrot.slane %v2143, 1
        %v2213 = vsel %vm362, %v2210, %v2212
        %v2230 = vrot.slane %v2120, 2
        %v2231 = vrot.slane %v2121, 2
        %v2232 = vsel %vm433, %v2230, %v2231
        %v2233 = vrot.slane %v2122, 2
        %v2234 = vsel %vm433, %v2231, %v2233
        %v2235 = vrot.slane %v2123, 2
        %v2236 = vrot.slane %v2124, 2
        %v2237 = vsel %vm433, %v2235, %v2236
        %v2238 = vrot.slane %v2125, 2
        %v2239 = vsel %vm433, %v2236, %v2238
        %v2240 = vrot.slane %v2126, 2
        %v2241 = vrot.slane %v2127, 2
        %v2242 = vsel %vm433, %v2240, %v2241
        %v2243 = vrot.slane %v2128, 2
        %v2244 = vsel %vm433, %v2241, %v2243
        %v2245 = vrot.slane %v2129, 2
        %v2246 = vrot.slane %v2130, 2
        %v2247 = vsel %vm433, %v2245, %v2246
        %v2248 = vrot.slane %v2131, 2
        %v2249 = vsel %vm433, %v2246, %v2248
        %v2250 = vrot.slane %v2132, 2
        %v2251 = vrot.slane %v2133, 2
        %v2252 = vsel %vm433, %v2250, %v2251
        %v2253 = vrot.slane %v2134, 2
        %v2254 = vsel %vm433, %v2251, %v2253
        %v2255 = vrot.slane %v2135, 2
        %v2256 = vrot.slane %v2136, 2
        %v2257 = vsel %vm433, %v2255, %v2256
        %v2258 = vrot.slane %v2137, 2
        %v2259 = vsel %vm433, %v2256, %v2258
        %v2260 = vrot.slane %v2138, 2
        %v2261 = vrot.slane %v2139, 2
        %v2262 = vsel %vm433, %v2260, %v2261
        %v2263 = vrot.slane %v2140, 2
        %v2264 = vsel %vm433, %v2261, %v2263
        %v2265 = vrot.slane %v2141, 2
        %v2266 = vrot.slane %v2142, 2
        %v2267 = vsel %vm433, %v2265, %v2266
        %v2268 = vrot.slane %v2143, 2
        %v2269 = vsel %vm433, %v2266, %v2268
        %v2286 = vpack.c.bf16 %v2121, %v2120
        %v2287 = vpack.c.bf16 %v2178, %v2176
        %v2288 = vpack.c.bf16 %v2234, %v2232
        %v2289 = vpack.c.bf16 %v2124, %v2123
        %v2290 = vpack.c.bf16 %v2183, %v2181
        %v2291 = vpack.c.bf16 %v2239, %v2237
        %v2292 = vpack.c.bf16 %v2127, %v2126
        %v2293 = vpack.c.bf16 %v2188, %v2186
        %v2294 = vpack.c.bf16 %v2244, %v2242
        %v2295 = vpack.c.bf16 %v2130, %v2129
        %v2296 = vpack.c.bf16 %v2193, %v2191
        %v2297 = vpack.c.bf16 %v2249, %v2247
        %v2298 = vpack.c.bf16 %v2133, %v2132
        %v2299 = vpack.c.bf16 %v2198, %v2196
        %v2300 = vpack.c.bf16 %v2254, %v2252
        %v2301 = vpack.c.bf16 %v2136, %v2135
        %v2302 = vpack.c.bf16 %v2203, %v2201
        %v2303 = vpack.c.bf16 %v2259, %v2257
        %v2304 = vpack.c.bf16 %v2139, %v2138
        %v2305 = vpack.c.bf16 %v2208, %v2206
        %v2306 = vpack.c.bf16 %v2264, %v2262
        %v2307 = vpack.c.bf16 %v2142, %v2141
        %v2308 = vpack.c.bf16 %v2213, %v2211
        %v2309 = vpack.c.bf16 %v2269, %v2267
        %v2310 = vld [vmem:[%s3] sm:$0xf]
        %v2311 = vld [vmem:[%s3 + $0x4] sm:$0xf]
        %v2312 = vld [vmem:[%s3 + $0x8] sm:$0xf]
        %v2313 = vld [vmem:[%s3 + $0xc] sm:$0xf]
        %v2314 = vld [vmem:[%s3 + $0x10] sm:$0xf]
        %v2315 = vld [vmem:[%s3 + $0x14] sm:$0xf]
        %v2316 = vld [vmem:[%s3 + $0x18] sm:$0xf]
        %v2317 = vld [vmem:[%s3 + $0x1c] sm:$0xf]
        %v2318 = vld [vmem:[%s3 + $0x20] sm:$0xf]
        %v2319 = vld [vmem:[%s3 + $0x24] sm:$0xf]
        %v2320 = vld [vmem:[%s3 + $0x28] sm:$0xf]
        %v2321 = vld [vmem:[%s3 + $0x2c] sm:$0xf]
        %v2322 = vld [vmem:[%s3 + $0x30] sm:$0xf]
        %v2323 = vld [vmem:[%s3 + $0x34] sm:$0xf]
        %v2324 = vld [vmem:[%s3 + $0x38] sm:$0xf]
        %v2325 = vld [vmem:[%s3 + $0x3c] sm:$0xf]
        %v2326 = vld [vmem:[%s3 + $0x40] sm:$0xf]
        %v2327 = vld [vmem:[%s3 + $0x44] sm:$0xf]
        %v2328 = vld [vmem:[%s3 + $0x48] sm:$0xf]
        %v2329 = vld [vmem:[%s3 + $0x4c] sm:$0xf]
        %v2330 = vld [vmem:[%s3 + $0x50] sm:$0xf]
        %v2331 = vld [vmem:[%s3 + $0x54] sm:$0xf]
        %v2332 = vld [vmem:[%s3 + $0x58] sm:$0xf]
        %v2333 = vld [vmem:[%s3 + $0x5c] sm:$0xf]
        %v2334 = vld [vmem:[%s3 + $0x60] sm:$0xf]
        %v2335 = vld [vmem:[%s3 + $0x64] sm:$0xf]
        %v2336 = vld [vmem:[%s3 + $0x68] sm:$0xf]
        %v2337 = vld [vmem:[%s3 + $0x6c] sm:$0xf]
        %v2338 = vld [vmem:[%s3 + $0x70] sm:$0xf]
        %v2339 = vld [vmem:[%s3 + $0x74] sm:$0xf]
        %v2340 = vld [vmem:[%s3 + $0x78] sm:$0xf]
        %v2341 = vld [vmem:[%s3 + $0x7c] sm:$0xf]
        %v2342 = vld [vmem:[%s3 + $0x80] sm:$0xf]
        %v2343 = vld [vmem:[%s3 + $0x84] sm:$0xf]
        %v2344 = vld [vmem:[%s3 + $0x88] sm:$0xf]
        %v2345 = vld [vmem:[%s3 + $0x8c] sm:$0xf]
        %v2346 = vld [vmem:[%s3 + $0x90] sm:$0xf]
        %v2347 = vld [vmem:[%s3 + $0x94] sm:$0xf]
        %v2348 = vld [vmem:[%s3 + $0x98] sm:$0xf]
        %v2349 = vld [vmem:[%s3 + $0x9c] sm:$0xf]
        %v2350 = vld [vmem:[%s3 + $0xa0] sm:$0xf]
        %v2351 = vld [vmem:[%s3 + $0xa4] sm:$0xf]
        %v2352 = vld [vmem:[%s3 + $0xa8] sm:$0xf]
        %v2353 = vld [vmem:[%s3 + $0xac] sm:$0xf]
        %v2354 = vld [vmem:[%s3 + $0xb0] sm:$0xf]
        %v2355 = vld [vmem:[%s3 + $0xb4] sm:$0xf]
        %v2356 = vld [vmem:[%s3 + $0xb8] sm:$0xf]
        %v2357 = vld [vmem:[%s3 + $0xbc] sm:$0xf]
        %v2361 = vrot.slane %v2144, 1
        %v2362 = vrot.slane %v2145, 1
        %v2363 = vsel %vm362, %v2361, %v2362
        %v2364 = vrot.slane %v2146, 1
        %v2365 = vsel %vm362, %v2362, %v2364
        %v2368 = vrot.slane %v2144, 2
        %v2369 = vrot.slane %v2145, 2
        %v2370 = vsel %vm433, %v2368, %v2369
        %v2371 = vrot.slane %v2146, 2
        %v2372 = vsel %vm433, %v2369, %v2371
        %v2375 = vpack.c.bf16 %v2145, %v2144
        %v2376 = vpack.c.bf16 %v2365, %v2363
        %v2377 = vpack.c.bf16 %v2372, %v2370
        %s2378 = scalar_lea.vmem %s3, 192
        %v2379 = vld [vmem:[%s2378] sm:$0xf]
        %v2380 = vld [vmem:[%s2378 + $0x4] sm:$0xf]
        %v2381 = vld [vmem:[%s2378 + $0x8] sm:$0xf]
        %v2382 = vld [vmem:[%s2378 + $0xc] sm:$0xf]
        %v2383 = vld [vmem:[%s2378 + $0x10] sm:$0xf]
        %v2384 = vld [vmem:[%s2378 + $0x14] sm:$0xf]
        %v2385 = vld [vmem:[%s2378 + $0x18] sm:$0xf]
        %v2386 = vld [vmem:[%s2378 + $0x1c] sm:$0xf]
        %v2387 = vld [vmem:[%s2378 + $0x20] sm:$0xf]
        %v2388 = vld [vmem:[%s2378 + $0x24] sm:$0xf]
        %v2389 = vld [vmem:[%s2378 + $0x28] sm:$0xf]
        %v2390 = vld [vmem:[%s2378 + $0x2c] sm:$0xf]
        %v2391 = vld [vmem:[%s2378 + $0x30] sm:$0xf]
        %v2392 = vld [vmem:[%s2378 + $0x34] sm:$0xf]
        %v2393 = vld [vmem:[%s2378 + $0x38] sm:$0xf]
        %v2394 = vld [vmem:[%s2378 + $0x3c] sm:$0xf]
        %v2395 = vld [vmem:[%s2378 + $0x40] sm:$0xf]
        %v2396 = vld [vmem:[%s2378 + $0x44] sm:$0xf]
        %v2397 = vld [vmem:[%s2378 + $0x48] sm:$0xf]
        %v2398 = vld [vmem:[%s2378 + $0x4c] sm:$0xf]
        %v2399 = vld [vmem:[%s2378 + $0x50] sm:$0xf]
        %v2400 = vld [vmem:[%s2378 + $0x54] sm:$0xf]
        %v2401 = vld [vmem:[%s2378 + $0x58] sm:$0xf]
        %v2402 = vld [vmem:[%s2378 + $0x5c] sm:$0xf]
        %v2403 = vld [vmem:[%s2378 + $0x60] sm:$0xf]
        %v2404 = vld [vmem:[%s2378 + $0x64] sm:$0xf]
        %v2405 = vld [vmem:[%s2378 + $0x68] sm:$0xf]
        %v2406 = vld [vmem:[%s2378 + $0x6c] sm:$0xf]
        %v2407 = vld [vmem:[%s2378 + $0x70] sm:$0xf]
        %v2408 = vld [vmem:[%s2378 + $0x74] sm:$0xf]
        %v2409 = vld [vmem:[%s2378 + $0x78] sm:$0xf]
        %v2410 = vld [vmem:[%s2378 + $0x7c] sm:$0xf]
        %v2411 = vld [vmem:[%s2378 + $0x80] sm:$0xf]
        %v2412 = vld [vmem:[%s2378 + $0x84] sm:$0xf]
        %v2413 = vld [vmem:[%s2378 + $0x88] sm:$0xf]
        %v2414 = vld [vmem:[%s2378 + $0x8c] sm:$0xf]
        %v2415 = vld [vmem:[%s2378 + $0x90] sm:$0xf]
        %v2416 = vld [vmem:[%s2378 + $0x94] sm:$0xf]
        %v2417 = vld [vmem:[%s2378 + $0x98] sm:$0xf]
        %v2418 = vld [vmem:[%s2378 + $0x9c] sm:$0xf]
        %v2419 = vld [vmem:[%s2378 + $0xa0] sm:$0xf]
        %v2420 = vld [vmem:[%s2378 + $0xa4] sm:$0xf]
        %v2421 = vld [vmem:[%s2378 + $0xa8] sm:$0xf]
        %v2422 = vld [vmem:[%s2378 + $0xac] sm:$0xf]
        %v2423 = vld [vmem:[%s2378 + $0xb0] sm:$0xf]
        %v2424 = vld [vmem:[%s2378 + $0xb4] sm:$0xf]
        %v2425 = vld [vmem:[%s2378 + $0xb8] sm:$0xf]
        %v2426 = vld [vmem:[%s2378 + $0xbc] sm:$0xf]
        %v2475 = vunpack.c.l.b16 %v2379
        %v2476 = vunpack.c.l.b16 %v2380
        %v2477 = vunpack.c.l.b16 %v2381
        %v2478 = vunpack.c.l.b16 %v2382
        %v2479 = vunpack.c.l.b16 %v2383
        %v2480 = vunpack.c.l.b16 %v2384
        %v2481 = vunpack.c.l.b16 %v2385
        %v2482 = vunpack.c.l.b16 %v2386
        %v2483 = vunpack.c.l.b16 %v2387
        %v2484 = vunpack.c.l.b16 %v2388
        %v2485 = vunpack.c.l.b16 %v2389
        %v2486 = vunpack.c.l.b16 %v2390
        %v2487 = vunpack.c.l.b16 %v2391
        %v2488 = vunpack.c.l.b16 %v2392
        %v2489 = vunpack.c.l.b16 %v2393
        %v2490 = vunpack.c.l.b16 %v2394
        %v2491 = vunpack.c.l.b16 %v2395
        %v2492 = vunpack.c.l.b16 %v2396
        %v2493 = vunpack.c.l.b16 %v2397
        %v2494 = vunpack.c.l.b16 %v2398
        %v2495 = vunpack.c.l.b16 %v2399
        %v2496 = vunpack.c.l.b16 %v2400
        %v2497 = vunpack.c.l.b16 %v2401
        %v2498 = vunpack.c.l.b16 %v2402
        %v2499 = vunpack.c.l.b16 %v2403
        %v2500 = vunpack.c.l.b16 %v2404
        %v2501 = vunpack.c.l.b16 %v2405
        %v2502 = vunpack.c.l.b16 %v2406
        %v2503 = vunpack.c.l.b16 %v2407
        %v2504 = vunpack.c.l.b16 %v2408
        %v2505 = vunpack.c.l.b16 %v2409
        %v2506 = vunpack.c.l.b16 %v2410
        %v2507 = vunpack.c.l.b16 %v2411
        %v2508 = vunpack.c.l.b16 %v2412
        %v2509 = vunpack.c.l.b16 %v2413
        %v2510 = vunpack.c.l.b16 %v2414
        %v2511 = vunpack.c.l.b16 %v2415
        %v2512 = vunpack.c.l.b16 %v2416
        %v2513 = vunpack.c.l.b16 %v2417
        %v2514 = vunpack.c.l.b16 %v2418
        %v2515 = vunpack.c.l.b16 %v2419
        %v2516 = vunpack.c.l.b16 %v2420
        %v2517 = vunpack.c.l.b16 %v2421
        %v2518 = vunpack.c.l.b16 %v2422
        %v2519 = vunpack.c.l.b16 %v2423
        %v2520 = vunpack.c.l.b16 %v2424
        %v2521 = vunpack.c.l.b16 %v2425
        %v2522 = vunpack.c.l.b16 %v2426
        %v2523 = vpack.c.b16 %v2476, %v2475
        %v2524 = vpack.c.b16 %v2478, %v2477
        %v2525 = vpack.c.b16 %v2480, %v2479
        %v2526 = vpack.c.b16 %v2482, %v2481
        %v2527 = vpack.c.b16 %v2484, %v2483
        %v2528 = vpack.c.b16 %v2486, %v2485
        %v2529 = vpack.c.b16 %v2488, %v2487
        %v2530 = vpack.c.b16 %v2490, %v2489
        %v2531 = vpack.c.b16 %v2492, %v2491
        %v2532 = vpack.c.b16 %v2494, %v2493
        %v2533 = vpack.c.b16 %v2496, %v2495
        %v2534 = vpack.c.b16 %v2498, %v2497
        %v2535 = vpack.c.b16 %v2500, %v2499
        %v2536 = vpack.c.b16 %v2502, %v2501
        %v2537 = vpack.c.b16 %v2504, %v2503
        %v2538 = vpack.c.b16 %v2506, %v2505
        %v2539 = vpack.c.b16 %v2508, %v2507
        %v2540 = vpack.c.b16 %v2510, %v2509
        %v2541 = vpack.c.b16 %v2512, %v2511
        %v2542 = vpack.c.b16 %v2514, %v2513
        %v2543 = vpack.c.b16 %v2516, %v2515
        %v2544 = vpack.c.b16 %v2518, %v2517
        %v2545 = vpack.c.b16 %v2520, %v2519
        %v2546 = vpack.c.b16 %v2522, %v2521
        %2571 = vmatprep.subr.bf16.mxu0 0
        %2572 = vmatpush1.bf16.msra.mxu0 %v2530
        %2573 = vmatprep.subr.bf16.mxu0 0
        %2574 = vmatpush1.bf16.msra.mxu0 %v2529
        %2575 = vmatprep.subr.bf16.mxu0 0
        %2576 = vmatpush1.bf16.msra.mxu0 %v2528
        %2577 = vmatprep.subr.bf16.mxu0 0
        %2578 = vmatpush1.bf16.msra.mxu0 %v2527
        %2579 = vmatprep.subr.bf16.mxu0 0
        %2580 = vmatpush1.bf16.msra.mxu0 %v2526
        %2581 = vmatprep.subr.bf16.mxu0 0
        %2582 = vmatpush1.bf16.msra.mxu0 %v2525
        %2583 = vmatprep.subr.bf16.mxu0 0
        %2584 = vmatpush1.bf16.msra.mxu0 %v2524
        %2585 = vmatprep.subr.bf16.mxu0 0
        %2586 = vmatpush1.bf16.msra.mxu0 %v2523
        %2587 = vmatprep.subr.bf16.mxu0 0
        %2588 = vmatpush2.bf16.msra.mxu0 %v2538
        %2589 = vmatprep.subr.bf16.mxu0 0
        %2590 = vmatpush2.bf16.msra.mxu0 %v2537
        %2591 = vmatprep.subr.bf16.mxu0 0
        %2592 = vmatpush2.bf16.msra.mxu0 %v2536
        %2593 = vmatprep.subr.bf16.mxu0 0
        %2594 = vmatpush2.bf16.msra.mxu0 %v2535
        %2595 = vmatprep.subr.bf16.mxu0 0
        %2596 = vmatpush2.bf16.msra.mxu0 %v2534
        %2597 = vmatprep.subr.bf16.mxu0 0
        %2598 = vmatpush2.bf16.msra.mxu0 %v2533
        %2599 = vmatprep.subr.bf16.mxu0 0
        %2600 = vmatpush2.bf16.msra.mxu0 %v2532
        %2601 = vmatprep.subr.bf16.mxu0 0
        %2602 = vmatpush2.bf16.msra.mxu0 %v2531
        %2603 = vmatprep.mubr.bf16.mxu0 %v2290
        %2604 = vmatmul.mubr.bf16.gmra.mxu0 %v2289
        %v2605 = vpop.f32.mrf.mxu0
        %v2606 = vadd.f32 0.0, %v2605
        %v2607 = vpop.f32.mrf.mxu0
        %v2608 = vpop.f32.mrf.mxu0
        %v2609 = vadd.f32 0.0, %v2608
        %v2610 = vpop.f32.mrf.mxu0
        %2611 = vmatprep.mubr.bf16.mxu0 %v2293
        %2612 = vmatmul.mubr.bf16.gmra.mxu0 %v2292
        %v2613 = vpop.f32.mrf.mxu0
        %v2614 = vadd.f32 0.0, %v2613
        %v2615 = vpop.f32.mrf.mxu0
        %v2616 = vpop.f32.mrf.mxu0
        %v2617 = vadd.f32 0.0, %v2616
        %v2618 = vpop.f32.mrf.mxu0
        %2619 = vmatprep.mubr.bf16.mxu0 %v2296
        %2620 = vmatmul.mubr.bf16.gmra.mxu0 %v2295
        %v2621 = vpop.f32.mrf.mxu0
        %v2622 = vadd.f32 0.0, %v2621
        %v2623 = vpop.f32.mrf.mxu0
        %v2624 = vpop.f32.mrf.mxu0
        %v2625 = vadd.f32 0.0, %v2624
        %v2626 = vpop.f32.mrf.mxu0
        %2627 = vmatprep.mubr.bf16.mxu0 %v2299
        %2628 = vmatmul.mubr.bf16.gmra.mxu0 %v2298
        %v2629 = vpop.f32.mrf.mxu0
        %v2630 = vadd.f32 0.0, %v2629
        %v2631 = vpop.f32.mrf.mxu0
        %v2632 = vpop.f32.mrf.mxu0
        %v2633 = vadd.f32 0.0, %v2632
        %v2634 = vpop.f32.mrf.mxu0
        %2635 = vmatprep.mubr.bf16.mxu0 %v2302
        %2636 = vmatmul.mubr.bf16.gmra.mxu0 %v2301
        %v2637 = vpop.f32.mrf.mxu0
        %v2638 = vadd.f32 0.0, %v2637
        %v2639 = vpop.f32.mrf.mxu0
        %v2640 = vpop.f32.mrf.mxu0
        %v2641 = vadd.f32 0.0, %v2640
        %v2642 = vpop.f32.mrf.mxu0
        %2643 = vmatprep.mubr.bf16.mxu0 %v2305
        %2644 = vmatmul.mubr.bf16.gmra.mxu0 %v2304
        %v2645 = vpop.f32.mrf.mxu0
        %v2646 = vadd.f32 0.0, %v2645
        %v2647 = vpop.f32.mrf.mxu0
        %v2648 = vpop.f32.mrf.mxu0
        %v2649 = vadd.f32 0.0, %v2648
        %v2650 = vpop.f32.mrf.mxu0
        %2651 = vmatprep.mubr.bf16.mxu0 %v2308
        %2652 = vmatmul.mubr.bf16.gmra.mxu0 %v2307
        %v2653 = vpop.f32.mrf.mxu0
        %v2654 = vadd.f32 0.0, %v2653
        %v2655 = vpop.f32.mrf.mxu0
        %v2656 = vpop.f32.mrf.mxu0
        %v2657 = vadd.f32 0.0, %v2656
        %v2658 = vpop.f32.mrf.mxu0
        %2659 = vmatprep.mubr.bf16.mxu0 %v2376
        %2660 = vmatmul.mubr.bf16.gmra.mxu0 %v2375
        %v2661 = vpop.f32.mrf.mxu0
        %v2662 = vadd.f32 0.0, %v2661
        %v2663 = vpop.f32.mrf.mxu0
        %v2664 = vpop.f32.mrf.mxu0
        %v2665 = vadd.f32 0.0, %v2664
        %v2666 = vpop.f32.mrf.mxu0
        %2667 = vdwg.mxu0
        %2668 = vmatprep.subr.bf16.mxu0 0
        %2669 = vmatpush1.bf16.msra.mxu0 %v2546
        %2670 = vmatprep.subr.bf16.mxu0 0
        %2671 = vmatpush1.bf16.msra.mxu0 %v2545
        %2672 = vmatprep.subr.bf16.mxu0 0
        %2673 = vmatpush1.bf16.msra.mxu0 %v2544
        %2674 = vmatprep.subr.bf16.mxu0 0
        %2675 = vmatpush1.bf16.msra.mxu0 %v2543
        %2676 = vmatprep.subr.bf16.mxu0 0
        %2677 = vmatpush1.bf16.msra.mxu0 %v2542
        %2678 = vmatprep.subr.bf16.mxu0 0
        %2679 = vmatpush1.bf16.msra.mxu0 %v2541
        %2680 = vmatprep.subr.bf16.mxu0 0
        %2681 = vmatpush1.bf16.msra.mxu0 %v2540
        %2682 = vmatprep.subr.bf16.mxu0 0
        %2683 = vmatpush1.bf16.msra.mxu0 %v2539
        %2684 = vmatprep.subr.bf16.mxu0 0
        %2685 = vmatpush2.bf16.msra.mxu0 0
        %2686 = vmatprep.subr.bf16.mxu0 0
        %2687 = vmatpush2.bf16.msra.mxu0 0
        %2688 = vmatprep.subr.bf16.mxu0 0
        %2689 = vmatpush2.bf16.msra.mxu0 0
        %2690 = vmatprep.subr.bf16.mxu0 0
        %2691 = vmatpush2.bf16.msra.mxu0 0
        %2692 = vmatprep.subr.bf16.mxu0 0
        %2693 = vmatpush2.bf16.msra.mxu0 0
        %2694 = vmatprep.subr.bf16.mxu0 0
        %2695 = vmatpush2.bf16.msra.mxu0 0
        %2696 = vmatprep.subr.bf16.mxu0 0
        %2697 = vmatpush2.bf16.msra.mxu0 0
        %2698 = vmatprep.subr.bf16.mxu0 0
        %2699 = vmatpush2.bf16.msra.mxu0 0
        %2700 = vmatprep.mubr.bf16.mxu0 0
        %2701 = vmatmul.mubr.bf16.gmra.mxu0 %v2291
        %v2702 = vpop.f32.mrf.mxu0
        %v2703 = vadd.f32 %v2606, %v2702
        %v2704 = vpop.f32.mrf.mxu0
        %v2705 = vpop.f32.mrf.mxu0
        %v2706 = vadd.f32 %v2609, %v2705
        %v2707 = vpop.f32.mrf.mxu0
        %2708 = vmatprep.mubr.bf16.mxu0 0
        %2709 = vmatmul.mubr.bf16.gmra.mxu0 %v2294
        %v2710 = vpop.f32.mrf.mxu0
        %v2711 = vadd.f32 %v2614, %v2710
        %v2712 = vpop.f32.mrf.mxu0
        %v2713 = vpop.f32.mrf.mxu0
        %v2714 = vadd.f32 %v2617, %v2713
        %v2715 = vpop.f32.mrf.mxu0
        %2716 = vmatprep.mubr.bf16.mxu0 0
        %2717 = vmatmul.mubr.bf16.gmra.mxu0 %v2297
        %v2718 = vpop.f32.mrf.mxu0
        %v2719 = vadd.f32 %v2622, %v2718
        %v2720 = vpop.f32.mrf.mxu0
        %v2721 = vpop.f32.mrf.mxu0
        %v2722 = vadd.f32 %v2625, %v2721
        %v2723 = vpop.f32.mrf.mxu0
        %2724 = vmatprep.mubr.bf16.mxu0 0
        %2725 = vmatmul.mubr.bf16.gmra.mxu0 %v2300
        %v2726 = vpop.f32.mrf.mxu0
        %v2727 = vadd.f32 %v2630, %v2726
        %v2728 = vpop.f32.mrf.mxu0
        %v2729 = vpop.f32.mrf.mxu0
        %v2730 = vadd.f32 %v2633, %v2729
        %v2731 = vpop.f32.mrf.mxu0
        %2732 = vmatprep.mubr.bf16.mxu0 0
        %2733 = vmatmul.mubr.bf16.gmra.mxu0 %v2303
        %v2734 = vpop.f32.mrf.mxu0
        %v2735 = vadd.f32 %v2638, %v2734
        %v2736 = vpop.f32.mrf.mxu0
        %v2737 = vpop.f32.mrf.mxu0
        %v2738 = vadd.f32 %v2641, %v2737
        %v2739 = vpop.f32.mrf.mxu0
        %2740 = vmatprep.mubr.bf16.mxu0 0
        %2741 = vmatmul.mubr.bf16.gmra.mxu0 %v2306
        %v2742 = vpop.f32.mrf.mxu0
        %v2743 = vadd.f32 %v2646, %v2742
        %v2744 = vpop.f32.mrf.mxu0
        %v2745 = vpop.f32.mrf.mxu0
        %v2746 = vadd.f32 %v2649, %v2745
        %v2747 = vpop.f32.mrf.mxu0
        %2748 = vmatprep.mubr.bf16.mxu0 0
        %2749 = vmatmul.mubr.bf16.gmra.mxu0 %v2309
        %v2750 = vpop.f32.mrf.mxu0
        %v2751 = vadd.f32 %v2654, %v2750
        %v2752 = vpop.f32.mrf.mxu0
        %v2753 = vpop.f32.mrf.mxu0
        %v2754 = vadd.f32 %v2657, %v2753
        %v2755 = vpop.f32.mrf.mxu0
        %2756 = vmatprep.mubr.bf16.mxu0 0
        %2757 = vmatmul.mubr.bf16.gmra.mxu0 %v2377
        %v2758 = vpop.f32.mrf.mxu0
        %v2759 = vadd.f32 %v2662, %v2758
        %v2760 = vpop.f32.mrf.mxu0
        %v2761 = vpop.f32.mrf.mxu0
        %v2762 = vadd.f32 %v2665, %v2761
        %v2763 = vpop.f32.mrf.mxu0
        %2764 = vdwg.mxu0
        %v2813 = vunpack.c.l.b16 %v2310
        %v2814 = vunpack.c.l.b16 %v2311
        %v2815 = vunpack.c.l.b16 %v2312
        %v2816 = vunpack.c.l.b16 %v2313
        %v2817 = vunpack.c.l.b16 %v2314
        %v2818 = vunpack.c.l.b16 %v2315
        %v2819 = vunpack.c.l.b16 %v2316
        %v2820 = vunpack.c.l.b16 %v2317
        %v2821 = vunpack.c.l.b16 %v2318
        %v2822 = vunpack.c.l.b16 %v2319
        %v2823 = vunpack.c.l.b16 %v2320
        %v2824 = vunpack.c.l.b16 %v2321
        %v2825 = vunpack.c.l.b16 %v2322
        %v2826 = vunpack.c.l.b16 %v2323
        %v2827 = vunpack.c.l.b16 %v2324
        %v2828 = vunpack.c.l.b16 %v2325
        %v2829 = vunpack.c.l.b16 %v2326
        %v2830 = vunpack.c.l.b16 %v2327
        %v2831 = vunpack.c.l.b16 %v2328
        %v2832 = vunpack.c.l.b16 %v2329
        %v2833 = vunpack.c.l.b16 %v2330
        %v2834 = vunpack.c.l.b16 %v2331
        %v2835 = vunpack.c.l.b16 %v2332
        %v2836 = vunpack.c.l.b16 %v2333
        %v2837 = vunpack.c.l.b16 %v2334
        %v2838 = vunpack.c.l.b16 %v2335
        %v2839 = vunpack.c.l.b16 %v2336
        %v2840 = vunpack.c.l.b16 %v2337
        %v2841 = vunpack.c.l.b16 %v2338
        %v2842 = vunpack.c.l.b16 %v2339
        %v2843 = vunpack.c.l.b16 %v2340
        %v2844 = vunpack.c.l.b16 %v2341
        %v2845 = vunpack.c.l.b16 %v2342
        %v2846 = vunpack.c.l.b16 %v2343
        %v2847 = vunpack.c.l.b16 %v2344
        %v2848 = vunpack.c.l.b16 %v2345
        %v2849 = vunpack.c.l.b16 %v2346
        %v2850 = vunpack.c.l.b16 %v2347
        %v2851 = vunpack.c.l.b16 %v2348
        %v2852 = vunpack.c.l.b16 %v2349
        %v2853 = vunpack.c.l.b16 %v2350
        %v2854 = vunpack.c.l.b16 %v2351
        %v2855 = vunpack.c.l.b16 %v2352
        %v2856 = vunpack.c.l.b16 %v2353
        %v2857 = vunpack.c.l.b16 %v2354
        %v2858 = vunpack.c.l.b16 %v2355
        %v2859 = vunpack.c.l.b16 %v2356
        %v2860 = vunpack.c.l.b16 %v2357
        %v2861 = vpack.c.b16 %v2814, %v2813
        %v2862 = vpack.c.b16 %v2816, %v2815
        %v2863 = vpack.c.b16 %v2818, %v2817
        %v2864 = vpack.c.b16 %v2820, %v2819
        %v2865 = vpack.c.b16 %v2822, %v2821
        %v2866 = vpack.c.b16 %v2824, %v2823
        %v2867 = vpack.c.b16 %v2826, %v2825
        %v2868 = vpack.c.b16 %v2828, %v2827
        %v2869 = vpack.c.b16 %v2830, %v2829
        %v2870 = vpack.c.b16 %v2832, %v2831
        %v2871 = vpack.c.b16 %v2834, %v2833
        %v2872 = vpack.c.b16 %v2836, %v2835
        %v2873 = vpack.c.b16 %v2838, %v2837
        %v2874 = vpack.c.b16 %v2840, %v2839
        %v2875 = vpack.c.b16 %v2842, %v2841
        %v2876 = vpack.c.b16 %v2844, %v2843
        %v2877 = vpack.c.b16 %v2846, %v2845
        %v2878 = vpack.c.b16 %v2848, %v2847
        %v2879 = vpack.c.b16 %v2850, %v2849
        %v2880 = vpack.c.b16 %v2852, %v2851
        %v2881 = vpack.c.b16 %v2854, %v2853
        %v2882 = vpack.c.b16 %v2856, %v2855
        %v2883 = vpack.c.b16 %v2858, %v2857
        %v2884 = vpack.c.b16 %v2860, %v2859
        %2909 = vmatprep.subr.bf16.mxu0 0
        %2910 = vmatpush1.bf16.msra.mxu0 %v2868
        %2911 = vmatprep.subr.bf16.mxu0 0
        %2912 = vmatpush1.bf16.msra.mxu0 %v2867
        %2913 = vmatprep.subr.bf16.mxu0 0
        %2914 = vmatpush1.bf16.msra.mxu0 %v2866
        %2915 = vmatprep.subr.bf16.mxu0 0
        %2916 = vmatpush1.bf16.msra.mxu0 %v2865
        %2917 = vmatprep.subr.bf16.mxu0 0
        %2918 = vmatpush1.bf16.msra.mxu0 %v2864
        %2919 = vmatprep.subr.bf16.mxu0 0
        %2920 = vmatpush1.bf16.msra.mxu0 %v2863
        %2921 = vmatprep.subr.bf16.mxu0 0
        %2922 = vmatpush1.bf16.msra.mxu0 %v2862
        %2923 = vmatprep.subr.bf16.mxu0 0
        %2924 = vmatpush1.bf16.msra.mxu0 %v2861
        %2925 = vmatprep.subr.bf16.mxu0 0
        %2926 = vmatpush2.bf16.msra.mxu0 %v2876
        %2927 = vmatprep.subr.bf16.mxu0 0
        %2928 = vmatpush2.bf16.msra.mxu0 %v2875
        %2929 = vmatprep.subr.bf16.mxu0 0
        %2930 = vmatpush2.bf16.msra.mxu0 %v2874
        %2931 = vmatprep.subr.bf16.mxu0 0
        %2932 = vmatpush2.bf16.msra.mxu0 %v2873
        %2933 = vmatprep.subr.bf16.mxu0 0
        %2934 = vmatpush2.bf16.msra.mxu0 %v2872
        %2935 = vmatprep.subr.bf16.mxu0 0
        %2936 = vmatpush2.bf16.msra.mxu0 %v2871
        %2937 = vmatprep.subr.bf16.mxu0 0
        %2938 = vmatpush2.bf16.msra.mxu0 %v2870
        %2939 = vmatprep.subr.bf16.mxu0 0
        %2940 = vmatpush2.bf16.msra.mxu0 %v2869
        %2941 = vmatprep.mubr.bf16.mxu0 %v2287
        %2942 = vmatmul.mubr.bf16.gmra.mxu0 %v2286
        %v2943 = vpop.f32.mrf.mxu0
        %v2944 = vadd.f32 %v2703, %v2943
        %v2945 = vpop.f32.mrf.mxu0
        %v2946 = vpop.f32.mrf.mxu0
        %v2947 = vadd.f32 %v2706, %v2946
        %v2948 = vpop.f32.mrf.mxu0
        %2949 = vmatprep.mubr.bf16.mxu0 %v2290
        %2950 = vmatmul.mubr.bf16.gmra.mxu0 %v2289
        %v2951 = vpop.f32.mrf.mxu0
        %v2952 = vadd.f32 %v2711, %v2951
        %v2953 = vpop.f32.mrf.mxu0
        %v2954 = vpop.f32.mrf.mxu0
        %v2955 = vadd.f32 %v2714, %v2954
        %v2956 = vpop.f32.mrf.mxu0
        %2957 = vmatprep.mubr.bf16.mxu0 %v2293
        %2958 = vmatmul.mubr.bf16.gmra.mxu0 %v2292
        %v2959 = vpop.f32.mrf.mxu0
        %v2960 = vadd.f32 %v2719, %v2959
        %v2961 = vpop.f32.mrf.mxu0
        %v2962 = vpop.f32.mrf.mxu0
        %v2963 = vadd.f32 %v2722, %v2962
        %v2964 = vpop.f32.mrf.mxu0
        %2965 = vmatprep.mubr.bf16.mxu0 %v2296
        %2966 = vmatmul.mubr.bf16.gmra.mxu0 %v2295
        %v2967 = vpop.f32.mrf.mxu0
        %v2968 = vadd.f32 %v2727, %v2967
        %v2969 = vpop.f32.mrf.mxu0
        %v2970 = vpop.f32.mrf.mxu0
        %v2971 = vadd.f32 %v2730, %v2970
        %v2972 = vpop.f32.mrf.mxu0
        %2973 = vmatprep.mubr.bf16.mxu0 %v2299
        %2974 = vmatmul.mubr.bf16.gmra.mxu0 %v2298
        %v2975 = vpop.f32.mrf.mxu0
        %v2976 = vadd.f32 %v2735, %v2975
        %v2977 = vpop.f32.mrf.mxu0
        %v2978 = vpop.f32.mrf.mxu0
        %v2979 = vadd.f32 %v2738, %v2978
        %v2980 = vpop.f32.mrf.mxu0
        %2981 = vmatprep.mubr.bf16.mxu0 %v2302
        %2982 = vmatmul.mubr.bf16.gmra.mxu0 %v2301
        %v2983 = vpop.f32.mrf.mxu0
        %v2984 = vadd.f32 %v2743, %v2983
        %v2985 = vpop.f32.mrf.mxu0
        %v2986 = vpop.f32.mrf.mxu0
        %v2987 = vadd.f32 %v2746, %v2986
        %v2988 = vpop.f32.mrf.mxu0
        %2989 = vmatprep.mubr.bf16.mxu0 %v2305
        %2990 = vmatmul.mubr.bf16.gmra.mxu0 %v2304
        %v2991 = vpop.f32.mrf.mxu0
        %v2992 = vadd.f32 %v2751, %v2991
        %v2993 = vpop.f32.mrf.mxu0
        %v2994 = vpop.f32.mrf.mxu0
        %v2995 = vadd.f32 %v2754, %v2994
        %v2996 = vpop.f32.mrf.mxu0
        %2997 = vmatprep.mubr.bf16.mxu0 %v2308
        %2998 = vmatmul.mubr.bf16.gmra.mxu0 %v2307
        %v2999 = vpop.f32.mrf.mxu0
        %v3000 = vadd.f32 %v2759, %v2999
        %v3001 = vpop.f32.mrf.mxu0
        %v3002 = vpop.f32.mrf.mxu0
        %v3003 = vadd.f32 %v2762, %v3002
        %v3004 = vpop.f32.mrf.mxu0
        %3005 = vdwg.mxu0
        %3006 = vmatprep.subr.bf16.mxu0 0
        %3007 = vmatpush1.bf16.msra.mxu0 %v2884
        %3008 = vmatprep.subr.bf16.mxu0 0
        %3009 = vmatpush1.bf16.msra.mxu0 %v2883
        %3010 = vmatprep.subr.bf16.mxu0 0
        %3011 = vmatpush1.bf16.msra.mxu0 %v2882
        %3012 = vmatprep.subr.bf16.mxu0 0
        %3013 = vmatpush1.bf16.msra.mxu0 %v2881
        %3014 = vmatprep.subr.bf16.mxu0 0
        %3015 = vmatpush1.bf16.msra.mxu0 %v2880
        %3016 = vmatprep.subr.bf16.mxu0 0
        %3017 = vmatpush1.bf16.msra.mxu0 %v2879
        %3018 = vmatprep.subr.bf16.mxu0 0
        %3019 = vmatpush1.bf16.msra.mxu0 %v2878
        %3020 = vmatprep.subr.bf16.mxu0 0
        %3021 = vmatpush1.bf16.msra.mxu0 %v2877
        %3022 = vmatprep.subr.bf16.mxu0 0
        %3023 = vmatpush2.bf16.msra.mxu0 0
        %3024 = vmatprep.subr.bf16.mxu0 0
        %3025 = vmatpush2.bf16.msra.mxu0 0
        %3026 = vmatprep.subr.bf16.mxu0 0
        %3027 = vmatpush2.bf16.msra.mxu0 0
        %3028 = vmatprep.subr.bf16.mxu0 0
        %3029 = vmatpush2.bf16.msra.mxu0 0
        %3030 = vmatprep.subr.bf16.mxu0 0
        %3031 = vmatpush2.bf16.msra.mxu0 0
        %3032 = vmatprep.subr.bf16.mxu0 0
        %3033 = vmatpush2.bf16.msra.mxu0 0
        %3034 = vmatprep.subr.bf16.mxu0 0
        %3035 = vmatpush2.bf16.msra.mxu0 0
        %3036 = vmatprep.subr.bf16.mxu0 0
        %3037 = vmatpush2.bf16.msra.mxu0 0
        %3038 = vmatprep.mubr.bf16.mxu0 0
        %3039 = vmatmul.mubr.bf16.gmra.mxu0 %v2288
        %v3040 = vpop.f32.mrf.mxu0
        %v3041 = vadd.f32 %v2944, %v3040
        %v3042 = vpop.f32.mrf.mxu0
        %v3043 = vpop.f32.mrf.mxu0
        %v3044 = vadd.f32 %v2947, %v3043
        %v3045 = vpop.f32.mrf.mxu0
        %3046 = vmatprep.mubr.bf16.mxu0 0
        %3047 = vmatmul.mubr.bf16.gmra.mxu0 %v2291
        %v3048 = vpop.f32.mrf.mxu0
        %v3049 = vadd.f32 %v2952, %v3048
        %v3050 = vpop.f32.mrf.mxu0
        %v3051 = vpop.f32.mrf.mxu0
        %v3052 = vadd.f32 %v2955, %v3051
        %v3053 = vpop.f32.mrf.mxu0
        %3054 = vmatprep.mubr.bf16.mxu0 0
        %3055 = vmatmul.mubr.bf16.gmra.mxu0 %v2294
        %v3056 = vpop.f32.mrf.mxu0
        %v3057 = vadd.f32 %v2960, %v3056
        %v3058 = vpop.f32.mrf.mxu0
        %v3059 = vpop.f32.mrf.mxu0
        %v3060 = vadd.f32 %v2963, %v3059
        %v3061 = vpop.f32.mrf.mxu0
        %3062 = vmatprep.mubr.bf16.mxu0 0
        %3063 = vmatmul.mubr.bf16.gmra.mxu0 %v2297
        %v3064 = vpop.f32.mrf.mxu0
        %v3065 = vadd.f32 %v2968, %v3064
        %v3066 = vpop.f32.mrf.mxu0
        %v3067 = vpop.f32.mrf.mxu0
        %v3068 = vadd.f32 %v2971, %v3067
        %v3069 = vpop.f32.mrf.mxu0
        %3070 = vmatprep.mubr.bf16.mxu0 0
        %3071 = vmatmul.mubr.bf16.gmra.mxu0 %v2300
        %v3072 = vpop.f32.mrf.mxu0
        %v3073 = vadd.f32 %v2976, %v3072
        %v3074 = vpop.f32.mrf.mxu0
        %v3075 = vpop.f32.mrf.mxu0
        %v3076 = vadd.f32 %v2979, %v3075
        %v3077 = vpop.f32.mrf.mxu0
        %3078 = vmatprep.mubr.bf16.mxu0 0
        %3079 = vmatmul.mubr.bf16.gmra.mxu0 %v2303
        %v3080 = vpop.f32.mrf.mxu0
        %v3081 = vadd.f32 %v2984, %v3080
        %v3082 = vpop.f32.mrf.mxu0
        %v3083 = vpop.f32.mrf.mxu0
        %v3084 = vadd.f32 %v2987, %v3083
        %v3085 = vpop.f32.mrf.mxu0
        %3086 = vmatprep.mubr.bf16.mxu0 0
        %3087 = vmatmul.mubr.bf16.gmra.mxu0 %v2306
        %v3088 = vpop.f32.mrf.mxu0
        %v3089 = vadd.f32 %v2992, %v3088
        %v3090 = vpop.f32.mrf.mxu0
        %v3091 = vpop.f32.mrf.mxu0
        %v3092 = vadd.f32 %v2995, %v3091
        %v3093 = vpop.f32.mrf.mxu0
        %3094 = vmatprep.mubr.bf16.mxu0 0
        %3095 = vmatmul.mubr.bf16.gmra.mxu0 %v2309
        %v3096 = vpop.f32.mrf.mxu0
        %v3097 = vadd.f32 %v3000, %v3096
        %v3098 = vpop.f32.mrf.mxu0
        %v3099 = vpop.f32.mrf.mxu0
        %v3100 = vadd.f32 %v3003, %v3099
        %v3101 = vpop.f32.mrf.mxu0
        %3102 = vdwg.mxu0
        %v3106 = vrot.slane %v2147, 1
        %v3107 = vrot.slane %v2148, 1
        %v3108 = vsel %vm362, %v3106, %v3107
        %v3109 = vrot.slane %v2149, 1
        %v3110 = vsel %vm362, %v3107, %v3109
        %v3113 = vrot.slane %v2147, 2
        %v3114 = vrot.slane %v2148, 2
        %v3115 = vsel %vm433, %v3113, %v3114
        %v3116 = vrot.slane %v2149, 2
        %v3117 = vsel %vm433, %v3114, %v3116
        %v3120 = vpack.c.bf16 %v2148, %v2147
        %v3121 = vpack.c.bf16 %v3110, %v3108
        %v3122 = vpack.c.bf16 %v3117, %v3115
        %s3123 = scalar_lea.vmem %s3, 384
        %v3124 = vld [vmem:[%s3123] sm:$0xf]
        %v3125 = vld [vmem:[%s3123 + $0x4] sm:$0xf]
        %v3126 = vld [vmem:[%s3123 + $0x8] sm:$0xf]
        %v3127 = vld [vmem:[%s3123 + $0xc] sm:$0xf]
        %v3128 = vld [vmem:[%s3123 + $0x10] sm:$0xf]
        %v3129 = vld [vmem:[%s3123 + $0x14] sm:$0xf]
        %v3130 = vld [vmem:[%s3123 + $0x18] sm:$0xf]
        %v3131 = vld [vmem:[%s3123 + $0x1c] sm:$0xf]
        %v3132 = vld [vmem:[%s3123 + $0x20] sm:$0xf]
        %v3133 = vld [vmem:[%s3123 + $0x24] sm:$0xf]
        %v3134 = vld [vmem:[%s3123 + $0x28] sm:$0xf]
        %v3135 = vld [vmem:[%s3123 + $0x2c] sm:$0xf]
        %v3136 = vld [vmem:[%s3123 + $0x30] sm:$0xf]
        %v3137 = vld [vmem:[%s3123 + $0x34] sm:$0xf]
        %v3138 = vld [vmem:[%s3123 + $0x38] sm:$0xf]
        %v3139 = vld [vmem:[%s3123 + $0x3c] sm:$0xf]
        %v3140 = vld [vmem:[%s3123 + $0x40] sm:$0xf]
        %v3141 = vld [vmem:[%s3123 + $0x44] sm:$0xf]
        %v3142 = vld [vmem:[%s3123 + $0x48] sm:$0xf]
        %v3143 = vld [vmem:[%s3123 + $0x4c] sm:$0xf]
        %v3144 = vld [vmem:[%s3123 + $0x50] sm:$0xf]
        %v3145 = vld [vmem:[%s3123 + $0x54] sm:$0xf]
        %v3146 = vld [vmem:[%s3123 + $0x58] sm:$0xf]
        %v3147 = vld [vmem:[%s3123 + $0x5c] sm:$0xf]
        %v3148 = vld [vmem:[%s3123 + $0x60] sm:$0xf]
        %v3149 = vld [vmem:[%s3123 + $0x64] sm:$0xf]
        %v3150 = vld [vmem:[%s3123 + $0x68] sm:$0xf]
        %v3151 = vld [vmem:[%s3123 + $0x6c] sm:$0xf]
        %v3152 = vld [vmem:[%s3123 + $0x70] sm:$0xf]
        %v3153 = vld [vmem:[%s3123 + $0x74] sm:$0xf]
        %v3154 = vld [vmem:[%s3123 + $0x78] sm:$0xf]
        %v3155 = vld [vmem:[%s3123 + $0x7c] sm:$0xf]
        %v3156 = vld [vmem:[%s3123 + $0x80] sm:$0xf]
        %v3157 = vld [vmem:[%s3123 + $0x84] sm:$0xf]
        %v3158 = vld [vmem:[%s3123 + $0x88] sm:$0xf]
        %v3159 = vld [vmem:[%s3123 + $0x8c] sm:$0xf]
        %v3160 = vld [vmem:[%s3123 + $0x90] sm:$0xf]
        %v3161 = vld [vmem:[%s3123 + $0x94] sm:$0xf]
        %v3162 = vld [vmem:[%s3123 + $0x98] sm:$0xf]
        %v3163 = vld [vmem:[%s3123 + $0x9c] sm:$0xf]
        %v3164 = vld [vmem:[%s3123 + $0xa0] sm:$0xf]
        %v3165 = vld [vmem:[%s3123 + $0xa4] sm:$0xf]
        %v3166 = vld [vmem:[%s3123 + $0xa8] sm:$0xf]
        %v3167 = vld [vmem:[%s3123 + $0xac] sm:$0xf]
        %v3168 = vld [vmem:[%s3123 + $0xb0] sm:$0xf]
        %v3169 = vld [vmem:[%s3123 + $0xb4] sm:$0xf]
        %v3170 = vld [vmem:[%s3123 + $0xb8] sm:$0xf]
        %v3171 = vld [vmem:[%s3123 + $0xbc] sm:$0xf]
        %v3220 = vunpack.c.l.b16 %v3124
        %v3221 = vunpack.c.l.b16 %v3125
        %v3222 = vunpack.c.l.b16 %v3126
        %v3223 = vunpack.c.l.b16 %v3127
        %v3224 = vunpack.c.l.b16 %v3128
        %v3225 = vunpack.c.l.b16 %v3129
        %v3226 = vunpack.c.l.b16 %v3130
        %v3227 = vunpack.c.l.b16 %v3131
        %v3228 = vunpack.c.l.b16 %v3132
        %v3229 = vunpack.c.l.b16 %v3133
        %v3230 = vunpack.c.l.b16 %v3134
        %v3231 = vunpack.c.l.b16 %v3135
        %v3232 = vunpack.c.l.b16 %v3136
        %v3233 = vunpack.c.l.b16 %v3137
        %v3234 = vunpack.c.l.b16 %v3138
        %v3235 = vunpack.c.l.b16 %v3139
        %v3236 = vunpack.c.l.b16 %v3140
        %v3237 = vunpack.c.l.b16 %v3141
        %v3238 = vunpack.c.l.b16 %v3142
        %v3239 = vunpack.c.l.b16 %v3143
        %v3240 = vunpack.c.l.b16 %v3144
        %v3241 = vunpack.c.l.b16 %v3145
        %v3242 = vunpack.c.l.b16 %v3146
        %v3243 = vunpack.c.l.b16 %v3147
        %v3244 = vunpack.c.l.b16 %v3148
        %v3245 = vunpack.c.l.b16 %v3149
        %v3246 = vunpack.c.l.b16 %v3150
        %v3247 = vunpack.c.l.b16 %v3151
        %v3248 = vunpack.c.l.b16 %v3152
        %v3249 = vunpack.c.l.b16 %v3153
        %v3250 = vunpack.c.l.b16 %v3154
        %v3251 = vunpack.c.l.b16 %v3155
        %v3252 = vunpack.c.l.b16 %v3156
        %v3253 = vunpack.c.l.b16 %v3157
        %v3254 = vunpack.c.l.b16 %v3158
        %v3255 = vunpack.c.l.b16 %v3159
        %v3256 = vunpack.c.l.b16 %v3160
        %v3257 = vunpack.c.l.b16 %v3161
        %v3258 = vunpack.c.l.b16 %v3162
        %v3259 = vunpack.c.l.b16 %v3163
        %v3260 = vunpack.c.l.b16 %v3164
        %v3261 = vunpack.c.l.b16 %v3165
        %v3262 = vunpack.c.l.b16 %v3166
        %v3263 = vunpack.c.l.b16 %v3167
        %v3264 = vunpack.c.l.b16 %v3168
        %v3265 = vunpack.c.l.b16 %v3169
        %v3266 = vunpack.c.l.b16 %v3170
        %v3267 = vunpack.c.l.b16 %v3171
        %v3268 = vpack.c.b16 %v3221, %v3220
        %v3269 = vpack.c.b16 %v3223, %v3222
        %v3270 = vpack.c.b16 %v3225, %v3224
        %v3271 = vpack.c.b16 %v3227, %v3226
        %v3272 = vpack.c.b16 %v3229, %v3228
        %v3273 = vpack.c.b16 %v3231, %v3230
        %v3274 = vpack.c.b16 %v3233, %v3232
        %v3275 = vpack.c.b16 %v3235, %v3234
        %v3276 = vpack.c.b16 %v3237, %v3236
        %v3277 = vpack.c.b16 %v3239, %v3238
        %v3278 = vpack.c.b16 %v3241, %v3240
        %v3279 = vpack.c.b16 %v3243, %v3242
        %v3280 = vpack.c.b16 %v3245, %v3244
        %v3281 = vpack.c.b16 %v3247, %v3246
        %v3282 = vpack.c.b16 %v3249, %v3248
        %v3283 = vpack.c.b16 %v3251, %v3250
        %v3284 = vpack.c.b16 %v3253, %v3252
        %v3285 = vpack.c.b16 %v3255, %v3254
        %v3286 = vpack.c.b16 %v3257, %v3256
        %v3287 = vpack.c.b16 %v3259, %v3258
        %v3288 = vpack.c.b16 %v3261, %v3260
        %v3289 = vpack.c.b16 %v3263, %v3262
        %v3290 = vpack.c.b16 %v3265, %v3264
        %v3291 = vpack.c.b16 %v3267, %v3266
        %3316 = vmatprep.subr.bf16.mxu0 0
        %3317 = vmatpush1.bf16.msra.mxu0 %v3275
        %3318 = vmatprep.subr.bf16.mxu0 0
        %3319 = vmatpush1.bf16.msra.mxu0 %v3274
        %3320 = vmatprep.subr.bf16.mxu0 0
        %3321 = vmatpush1.bf16.msra.mxu0 %v3273
        %3322 = vmatprep.subr.bf16.mxu0 0
        %3323 = vmatpush1.bf16.msra.mxu0 %v3272
        %3324 = vmatprep.subr.bf16.mxu0 0
        %3325 = vmatpush1.bf16.msra.mxu0 %v3271
        %3326 = vmatprep.subr.bf16.mxu0 0
        %3327 = vmatpush1.bf16.msra.mxu0 %v3270
        %3328 = vmatprep.subr.bf16.mxu0 0
        %3329 = vmatpush1.bf16.msra.mxu0 %v3269
        %3330 = vmatprep.subr.bf16.mxu0 0
        %3331 = vmatpush1.bf16.msra.mxu0 %v3268
        %3332 = vmatprep.subr.bf16.mxu0 0
        %3333 = vmatpush2.bf16.msra.mxu0 %v3283
        %3334 = vmatprep.subr.bf16.mxu0 0
        %3335 = vmatpush2.bf16.msra.mxu0 %v3282
        %3336 = vmatprep.subr.bf16.mxu0 0
        %3337 = vmatpush2.bf16.msra.mxu0 %v3281
        %3338 = vmatprep.subr.bf16.mxu0 0
        %3339 = vmatpush2.bf16.msra.mxu0 %v3280
        %3340 = vmatprep.subr.bf16.mxu0 0
        %3341 = vmatpush2.bf16.msra.mxu0 %v3279
        %3342 = vmatprep.subr.bf16.mxu0 0
        %3343 = vmatpush2.bf16.msra.mxu0 %v3278
        %3344 = vmatprep.subr.bf16.mxu0 0
        %3345 = vmatpush2.bf16.msra.mxu0 %v3277
        %3346 = vmatprep.subr.bf16.mxu0 0
        %3347 = vmatpush2.bf16.msra.mxu0 %v3276
        %3348 = vmatprep.mubr.bf16.mxu0 %v2293
        %3349 = vmatmul.mubr.bf16.gmra.mxu0 %v2292
        %v3350 = vpop.f32.mrf.mxu0
        %v3351 = vadd.f32 0.0, %v3350
        %v3352 = vpop.f32.mrf.mxu0
        %v3353 = vpop.f32.mrf.mxu0
        %v3354 = vadd.f32 0.0, %v3353
        %v3355 = vpop.f32.mrf.mxu0
        %3356 = vmatprep.mubr.bf16.mxu0 %v2296
        %3357 = vmatmul.mubr.bf16.gmra.mxu0 %v2295
        %v3358 = vpop.f32.mrf.mxu0
        %v3359 = vadd.f32 0.0, %v3358
        %v3360 = vpop.f32.mrf.mxu0
        %v3361 = vpop.f32.mrf.mxu0
        %v3362 = vadd.f32 0.0, %v3361
        %v3363 = vpop.f32.mrf.mxu0
        %3364 = vmatprep.mubr.bf16.mxu0 %v2299
        %3365 = vmatmul.mubr.bf16.gmra.mxu0 %v2298
        %v3366 = vpop.f32.mrf.mxu0
        %v3367 = vadd.f32 0.0, %v3366
        %v3368 = vpop.f32.mrf.mxu0
        %v3369 = vpop.f32.mrf.mxu0
        %v3370 = vadd.f32 0.0, %v3369
        %v3371 = vpop.f32.mrf.mxu0
        %3372 = vmatprep.mubr.bf16.mxu0 %v2302
        %3373 = vmatmul.mubr.bf16.gmra.mxu0 %v2301
        %v3374 = vpop.f32.mrf.mxu0
        %v3375 = vadd.f32 0.0, %v3374
        %v3376 = vpop.f32.mrf.mxu0
        %v3377 = vpop.f32.mrf.mxu0
        %v3378 = vadd.f32 0.0, %v3377
        %v3379 = vpop.f32.mrf.mxu0
        %3380 = vmatprep.mubr.bf16.mxu0 %v2305
        %3381 = vmatmul.mubr.bf16.gmra.mxu0 %v2304
        %v3382 = vpop.f32.mrf.mxu0
        %v3383 = vadd.f32 0.0, %v3382
        %v3384 = vpop.f32.mrf.mxu0
        %v3385 = vpop.f32.mrf.mxu0
        %v3386 = vadd.f32 0.0, %v3385
        %v3387 = vpop.f32.mrf.mxu0
        %3388 = vmatprep.mubr.bf16.mxu0 %v2308
        %3389 = vmatmul.mubr.bf16.gmra.mxu0 %v2307
        %v3390 = vpop.f32.mrf.mxu0
        %v3391 = vadd.f32 0.0, %v3390
        %v3392 = vpop.f32.mrf.mxu0
        %v3393 = vpop.f32.mrf.mxu0
        %v3394 = vadd.f32 0.0, %v3393
        %v3395 = vpop.f32.mrf.mxu0
        %3396 = vmatprep.mubr.bf16.mxu0 %v2376
        %3397 = vmatmul.mubr.bf16.gmra.mxu0 %v2375
        %v3398 = vpop.f32.mrf.mxu0
        %v3399 = vadd.f32 0.0, %v3398
        %v3400 = vpop.f32.mrf.mxu0
        %v3401 = vpop.f32.mrf.mxu0
        %v3402 = vadd.f32 0.0, %v3401
        %v3403 = vpop.f32.mrf.mxu0
        %3404 = vmatprep.mubr.bf16.mxu0 %v3121
        %3405 = vmatmul.mubr.bf16.gmra.mxu0 %v3120
        %v3406 = vpop.f32.mrf.mxu0
        %v3407 = vadd.f32 0.0, %v3406
        %v3408 = vpop.f32.mrf.mxu0
        %v3409 = vpop.f32.mrf.mxu0
        %v3410 = vadd.f32 0.0, %v3409
        %v3411 = vpop.f32.mrf.mxu0
        %3412 = vdwg.mxu0
        %3413 = vmatprep.subr.bf16.mxu0 0
        %3414 = vmatpush1.bf16.msra.mxu0 %v3291
        %3415 = vmatprep.subr.bf16.mxu0 0
        %3416 = vmatpush1.bf16.msra.mxu0 %v3290
        %3417 = vmatprep.subr.bf16.mxu0 0
        %3418 = vmatpush1.bf16.msra.mxu0 %v3289
        %3419 = vmatprep.subr.bf16.mxu0 0
        %3420 = vmatpush1.bf16.msra.mxu0 %v3288
        %3421 = vmatprep.subr.bf16.mxu0 0
        %3422 = vmatpush1.bf16.msra.mxu0 %v3287
        %3423 = vmatprep.subr.bf16.mxu0 0
        %3424 = vmatpush1.bf16.msra.mxu0 %v3286
        %3425 = vmatprep.subr.bf16.mxu0 0
        %3426 = vmatpush1.bf16.msra.mxu0 %v3285
        %3427 = vmatprep.subr.bf16.mxu0 0
        %3428 = vmatpush1.bf16.msra.mxu0 %v3284
        %3429 = vmatprep.subr.bf16.mxu0 0
        %3430 = vmatpush2.bf16.msra.mxu0 0
        %3431 = vmatprep.subr.bf16.mxu0 0
        %3432 = vmatpush2.bf16.msra.mxu0 0
        %3433 = vmatprep.subr.bf16.mxu0 0
        %3434 = vmatpush2.bf16.msra.mxu0 0
        %3435 = vmatprep.subr.bf16.mxu0 0
        %3436 = vmatpush2.bf16.msra.mxu0 0
        %3437 = vmatprep.subr.bf16.mxu0 0
        %3438 = vmatpush2.bf16.msra.mxu0 0
        %3439 = vmatprep.subr.bf16.mxu0 0
        %3440 = vmatpush2.bf16.msra.mxu0 0
        %3441 = vmatprep.subr.bf16.mxu0 0
        %3442 = vmatpush2.bf16.msra.mxu0 0
        %3443 = vmatprep.subr.bf16.mxu0 0
        %3444 = vmatpush2.bf16.msra.mxu0 0
        %3445 = vmatprep.mubr.bf16.mxu0 0
        %3446 = vmatmul.mubr.bf16.gmra.mxu0 %v2294
        %v3447 = vpop.f32.mrf.mxu0
        %v3448 = vadd.f32 %v3351, %v3447
        %v3449 = vpop.f32.mrf.mxu0
        %v3450 = vpop.f32.mrf.mxu0
        %v3451 = vadd.f32 %v3354, %v3450
        %v3452 = vpop.f32.mrf.mxu0
        %3453 = vmatprep.mubr.bf16.mxu0 0
        %3454 = vmatmul.mubr.bf16.gmra.mxu0 %v2297
        %v3455 = vpop.f32.mrf.mxu0
        %v3456 = vadd.f32 %v3359, %v3455
        %v3457 = vpop.f32.mrf.mxu0
        %v3458 = vpop.f32.mrf.mxu0
        %v3459 = vadd.f32 %v3362, %v3458
        %v3460 = vpop.f32.mrf.mxu0
        %3461 = vmatprep.mubr.bf16.mxu0 0
        %3462 = vmatmul.mubr.bf16.gmra.mxu0 %v2300
        %v3463 = vpop.f32.mrf.mxu0
        %v3464 = vadd.f32 %v3367, %v3463
        %v3465 = vpop.f32.mrf.mxu0
        %v3466 = vpop.f32.mrf.mxu0
        %v3467 = vadd.f32 %v3370, %v3466
        %v3468 = vpop.f32.mrf.mxu0
        %3469 = vmatprep.mubr.bf16.mxu0 0
        %3470 = vmatmul.mubr.bf16.gmra.mxu0 %v2303
        %v3471 = vpop.f32.mrf.mxu0
        %v3472 = vadd.f32 %v3375, %v3471
        %v3473 = vpop.f32.mrf.mxu0
        %v3474 = vpop.f32.mrf.mxu0
        %v3475 = vadd.f32 %v3378, %v3474
        %v3476 = vpop.f32.mrf.mxu0
        %3477 = vmatprep.mubr.bf16.mxu0 0
        %3478 = vmatmul.mubr.bf16.gmra.mxu0 %v2306
        %v3479 = vpop.f32.mrf.mxu0
        %v3480 = vadd.f32 %v3383, %v3479
        %v3481 = vpop.f32.mrf.mxu0
        %v3482 = vpop.f32.mrf.mxu0
        %v3483 = vadd.f32 %v3386, %v3482
        %v3484 = vpop.f32.mrf.mxu0
        %3485 = vmatprep.mubr.bf16.mxu0 0
        %3486 = vmatmul.mubr.bf16.gmra.mxu0 %v2309
        %v3487 = vpop.f32.mrf.mxu0
        %v3488 = vadd.f32 %v3391, %v3487
        %v3489 = vpop.f32.mrf.mxu0
        %v3490 = vpop.f32.mrf.mxu0
        %v3491 = vadd.f32 %v3394, %v3490
        %v3492 = vpop.f32.mrf.mxu0
        %3493 = vmatprep.mubr.bf16.mxu0 0
        %3494 = vmatmul.mubr.bf16.gmra.mxu0 %v2377
        %v3495 = vpop.f32.mrf.mxu0
        %v3496 = vadd.f32 %v3399, %v3495
        %v3497 = vpop.f32.mrf.mxu0
        %v3498 = vpop.f32.mrf.mxu0
        %v3499 = vadd.f32 %v3402, %v3498
        %v3500 = vpop.f32.mrf.mxu0
        %3501 = vmatprep.mubr.bf16.mxu0 0
        %3502 = vmatmul.mubr.bf16.gmra.mxu0 %v3122
        %v3503 = vpop.f32.mrf.mxu0
        %v3504 = vadd.f32 %v3407, %v3503
        %v3505 = vpop.f32.mrf.mxu0
        %v3506 = vpop.f32.mrf.mxu0
        %v3507 = vadd.f32 %v3410, %v3506
        %v3508 = vpop.f32.mrf.mxu0
        %3509 = vdwg.mxu0
        %v3510 = vadd.f32 %v3041, %v3448
        %v3511 = vadd.f32 %v3044, %v3451
        %v3512 = vadd.f32 %v3049, %v3456
        %v3513 = vadd.f32 %v3052, %v3459
        %v3514 = vadd.f32 %v3057, %v3464
        %v3515 = vadd.f32 %v3060, %v3467
        %v3516 = vadd.f32 %v3065, %v3472
        %v3517 = vadd.f32 %v3068, %v3475
        %v3518 = vadd.f32 %v3073, %v3480
        %v3519 = vadd.f32 %v3076, %v3483
        %v3520 = vadd.f32 %v3081, %v3488
        %v3521 = vadd.f32 %v3084, %v3491
        %v3522 = vadd.f32 %v3089, %v3496
        %v3523 = vadd.f32 %v3092, %v3499
        %v3524 = vadd.f32 %v3097, %v3504
        %v3525 = vadd.f32 %v3100, %v3507
        %v3526 = vld [vmem:[%s4] sm:$0x1]
        %v3528 = vlaneseq
        %v3529 = vshrl.u32 %v3528, 7
        %v3530 = vsub.s32 0, %v3529
        %v3531 = vrot.slane %v3526, %v3530
        %v3533 = vadd.f32 %v3510, %v3531
        %v3534 = vadd.f32 %v3511, %v3531
        %v3535 = vadd.f32 %v3512, %v3531
        %v3536 = vadd.f32 %v3513, %v3531
        %v3537 = vadd.f32 %v3514, %v3531
        %v3538 = vadd.f32 %v3515, %v3531
        %v3539 = vadd.f32 %v3516, %v3531
        %v3540 = vadd.f32 %v3517, %v3531
        %v3541 = vadd.f32 %v3518, %v3531
        %v3542 = vadd.f32 %v3519, %v3531
        %v3543 = vadd.f32 %v3520, %v3531
        %v3544 = vadd.f32 %v3521, %v3531
        %v3545 = vadd.f32 %v3522, %v3531
        %v3546 = vadd.f32 %v3523, %v3531
        %v3547 = vadd.f32 %v3524, %v3531
        %v3548 = vadd.f32 %v3525, %v3531
        %v3549 = vadd.f32 %v3533, %v2003
        %v3550 = vadd.f32 %v3534, %v2006
        %v3551 = vadd.f32 %v3535, %v2011
        %v3552 = vadd.f32 %v3536, %v2014
        %v3553 = vadd.f32 %v3537, %v2019
        %v3554 = vadd.f32 %v3538, %v2022
        %v3555 = vadd.f32 %v3539, %v2027
        %v3556 = vadd.f32 %v3540, %v2030
        %v3557 = vadd.f32 %v3541, %v2035
        %v3558 = vadd.f32 %v3542, %v2038
        %v3559 = vadd.f32 %v3543, %v2043
        %v3560 = vadd.f32 %v3544, %v2046
        %v3561 = vadd.f32 %v3545, %v2051
        %v3562 = vadd.f32 %v3546, %v2054
        %v3563 = vadd.f32 %v3547, %v2059
        %v3564 = vadd.f32 %v3548, %v2062
        %v3565 = vmax.f32 %v3549, 0.0
        %v3566 = vmax.f32 %v3550, 0.0
        %v3567 = vmax.f32 %v3551, 0.0
        %v3568 = vmax.f32 %v3552, 0.0
        %v3569 = vmax.f32 %v3553, 0.0
        %v3570 = vmax.f32 %v3554, 0.0
        %v3571 = vmax.f32 %v3555, 0.0
        %v3572 = vmax.f32 %v3556, 0.0
        %v3573 = vmax.f32 %v3557, 0.0
        %v3574 = vmax.f32 %v3558, 0.0
        %v3575 = vmax.f32 %v3559, 0.0
        %v3576 = vmax.f32 %v3560, 0.0
        %v3577 = vmax.f32 %v3561, 0.0
        %v3578 = vmax.f32 %v3562, 0.0
        %v3579 = vmax.f32 %v3563, 0.0
        %v3580 = vmax.f32 %v3564, 0.0
        %3581 = vst [vmem:[%s285] sm:$0xff] %v3565
        %3582 = vst [vmem:[%s285 + $0x8] sm:$0xff] %v3566
        %3583 = vst [vmem:[%s285 + $0x10] sm:$0xff] %v3567
        %3584 = vst [vmem:[%s285 + $0x18] sm:$0xff] %v3568
        %3585 = vst [vmem:[%s285 + $0x20] sm:$0xff] %v3569
        %3586 = vst [vmem:[%s285 + $0x28] sm:$0xff] %v3570
        %3587 = vst [vmem:[%s285 + $0x30] sm:$0xff] %v3571
        %3588 = vst [vmem:[%s285 + $0x38] sm:$0xff] %v3572
        %3589 = vst [vmem:[%s285 + $0x40] sm:$0xff] %v3573
        %3590 = vst [vmem:[%s285 + $0x48] sm:$0xff] %v3574
        %3591 = vst [vmem:[%s285 + $0x50] sm:$0xff] %v3575
        %3592 = vst [vmem:[%s285 + $0x58] sm:$0xff] %v3576
        %3593 = vst [vmem:[%s285 + $0x60] sm:$0xff] %v3577
        %3594 = vst [vmem:[%s285 + $0x68] sm:$0xff] %v3578
        %3595 = vst [vmem:[%s285 + $0x70] sm:$0xff] %v3579
        %3596 = vst [vmem:[%s285 + $0x78] sm:$0xff] %v3580
        %s3597 = sand.u32 %s195, 1
        %s3598 = scalar_lea.sflag [#allocation4], %s3597
        %s3599 = sand.u32 %s195, 1
        %s3600 = smul.addr %s3599, 128
        %s3601 = scalar_lea.vmem [#allocation3], %s3600
        // Predicated region
        $region57: #{tpu_custom_call.1} parent=47 // pred_check
          %p3602 = pneg %p205
        $region58: #{tpu_custom_call.1} parent=47 // pred_check_branch
          %3604 = sbr.rel (%p3602) target = $region60
        $region59: #{tpu_custom_call.1} parent=47 // pred_region
          %s3605 = smul.u32 16, %s26
          %s3607 = ssub.s32 2048, 2048
          %3608 = vsyncadd %s3598, %s3607
          %s3609 = smul.addr %s25, 32
          %s3610 = sadd.s32 %s3605, %s3609
          %s3611 = smul.addr %s3610, 128
          %s3612 = scalar_lea.hbm %s7, %s3611
          %s3613 = sshll.u32 %s3601, 4
          %s3614 = int_to_ptr.vmem [resolvable:$true] %s3613
          %3619 = dma.vmem_to_hbm [thread:$0]  %s3614, 2048, %s3612, %s3598, 128, 128, 8
        $region60: #{tpu_custom_call.1} parent=47 // pred_fallthru
          _
      $region48: #{tpu_custom_call.1} parent=5 // pred_fallthru
        _
      %p3620 = scmp.le.s32.totalorder 2, %s16
      // Predicated region
      $region61: #{tpu_custom_call.1} parent=5 // pred_check
        %p3621 = pneg %p3620
      $region62: #{tpu_custom_call.1} parent=5 // pred_check_branch
        %3623 = sbr.rel (%p3621) target = $region64
      $region63: #{tpu_custom_call.1} parent=5 // pred_region
        %s3624 = ssub.s32 %s16, 2
        // Predicated region
        $region65: #{tpu_custom_call.1} parent=63 // pred_check
          %p3625 = pneg %p211
        $region66: #{tpu_custom_call.1} parent=63 // pred_check_branch
          %3627 = sbr.rel (%p3625) target = $region68
        $region67: #{tpu_custom_call.1} parent=63 // pred_region
          %s3628 = sand.u32 %s196, 1
          %s3629 = scalar_lea.sflag [#allocation4], %s3628
          %s3630 = sand.u32 %s196, 1
          %s3631 = smul.addr %s3630, 128
          %s3632 = scalar_lea.vmem [#allocation3], %s3631
          %3633 = dma.done %s3629, 2048
        $region68: #{tpu_custom_call.1} parent=63 // pred_fallthru
          _
      $region64: #{tpu_custom_call.1} parent=5 // pred_fallthru
        _
    $region6: #{tpu_custom_call.1} parent=1 // loop_footer
      %s20 = sadd.s32 1, %s16
    $region7: #{tpu_custom_call.1} parent=1 // loop_footer_branch
      %15 = sbr.rel target = $region3
    $region8: #{tpu_custom_call.1} parent=1 // loop_exit
      _
    %3634 = vsyncpa [#allocation4], 1
    %s3635 = scalar_lea.sflag [#allocation4], 1
    %3636 = vsyncpa %s3635, 1

</llo_original>
